<compile_context>
chip_gen: v6e
topology: v6e:2x2x1
jax: 0.10.0
libtpu: 0.0.40
codegen_flags: <defaults>
</compile_context>

<pallas_src>
import numpy as np
import jax
import jax.numpy as jnp
from jax.experimental import pallas as pl
from jax.experimental.pallas import tpu as pltpu

EPS = 1e-5  # SeparatedBatchNorm1d default eps


def _bn(x, gamma, beta, mean, var):
    """Eval-mode SeparatedBatchNorm1d (reference form, unfolded)."""
    return (x - mean) * jax.lax.rsqrt(var + EPS) * gamma + beta


# ---------------------------------------------------------------------------
# Pallas kernel
# ---------------------------------------------------------------------------
def make_bnlstm_kernel(T, H):
    def lstm_step(wi, h, c, w_hh_ref, stats):
        """One BN-LSTM cell step.

        wi:    (B, 4H) pre-computed input projection for this step
        h, c:  (B, H) carried state (vreg-resident)
        stats: (8, 4H) folded per-t BN table:
               row 0 = s_ih, 1 = s_hh, 2 = shift (both BN shifts + bias),
               row 3 = c_scale (first H lanes valid), 4 = c_shift.
        """
        wh = jnp.dot(h, w_hh_ref[...], preferred_element_type=jnp.float32)
        pre = wi * stats[0:1, :] + wh * stats[1:2, :] + stats[2:3, :]
        f = pre[:, 0 * H:1 * H]
        i = pre[:, 1 * H:2 * H]
        o = pre[:, 2 * H:3 * H]
        g = pre[:, 3 * H:4 * H]
        c_new = jax.nn.sigmoid(f) * c + jax.nn.sigmoid(i) * jnp.tanh(g)
        bn_c = c_new * stats[3:4, :H] + stats[4:5, :H]
        h_new = jax.nn.sigmoid(o) * jnp.tanh(bn_c)
        return h_new, c_new

    def kernel(x_ref, w_ih0_ref, w_hh0_ref, tbl0_ref,
               w_ih1_ref, w_hh1_ref, tbl1_ref,
               fc_w_ref, fc_b_ref, out_ref):
        B = out_ref.shape[0]

        # Layer-0 input projection for all timesteps: no recurrent dependency,
        # so it is a single MXU matmul hoisted in front of the serial loop
        # (off the critical recurrence path, overlapped by the scheduler).
        wi0_all = jnp.dot(x_ref[...], w_ih0_ref[...],
                          preferred_element_type=jnp.float32)       # (T*B, 4H)

        h0 = jnp.zeros((B, H), jnp.float32)
        c0 = jnp.zeros((B, H), jnp.float32)
        h1 = jnp.zeros((B, H), jnp.float32)
        c1 = jnp.zeros((B, H), jnp.float32)

        # Static unroll over time: T is tiny, all indexing below is static,
        # (h, c) of both layers stay in vregs across steps.
        for t in range(T):
            stats0 = tbl0_ref[t]                                    # (8, 4H)
            stats1 = tbl1_ref[t]                                    # (8, 4H)
            wi0 = wi0_all[t * B:(t + 1) * B, :]                     # (B, 4H)
            # Layer 0: only the recurrent h @ W_hh matmul is on the serial path.
            h0, c0 = lstm_step(wi0, h0, c0, w_hh0_ref, stats0)
            # dropout(p=0.0) between layers is the identity.
            wi1 = jnp.dot(h0, w_ih1_ref[...],
                          preferred_element_type=jnp.float32)
            h1, c1 = lstm_step(wi1, h1, c1, w_hh1_ref, stats1)

        # Final Linear exactly once, after the recurrence.
        out_ref[...] = (jnp.dot(h1, fc_w_ref[...],
                                preferred_element_type=jnp.float32)
                        + fc_b_ref[...]).astype(out_ref.dtype)

    return kernel


# ---------------------------------------------------------------------------
# Wrapper: BN folding (parameter-only) + single pallas_call
# ---------------------------------------------------------------------------
def _fold_bn_table(p, layer, T, H):
    """Fold eval-mode BN (+ bias) into a lane-dense (T, 8, 4H) scale/shift table."""
    p4 = p[f"bn4p{layer}"]          # (4, 4H): gamma_ih, beta_ih, gamma_hh, beta_hh
    s4 = p[f"bn4s{layer}"]          # (T, 4, 4H): mean_ih, var_ih, mean_hh, var_hh
    pc = p[f"bncp{layer}"]          # (2, H):  gamma_c, beta_c
    sc = p[f"bncs{layer}"]          # (T, 2, H): mean_c, var_c
    b = p[f"b{layer}"]              # (1, 4H)

    s_ih = p4[0] * jax.lax.rsqrt(s4[:, 1] + EPS)                    # (T, 4H)
    s_hh = p4[2] * jax.lax.rsqrt(s4[:, 3] + EPS)                    # (T, 4H)
    shift = (p4[1] - s4[:, 0] * s_ih) + (p4[3] - s4[:, 2] * s_hh) + b  # (T, 4H)
    c_scale = pc[0] * jax.lax.rsqrt(sc[:, 1] + EPS)                 # (T, H)
    c_shift = pc[1] - sc[:, 0] * c_scale                            # (T, H)

    pad = 4 * H - H                                                 # pad c rows to 4H lanes
    c_scale = jnp.pad(c_scale, ((0, 0), (0, pad)))
    c_shift = jnp.pad(c_shift, ((0, 0), (0, pad)))
    tbl = jnp.stack([s_ih, s_hh, shift, c_scale, c_shift], axis=1)  # (T, 5, 4H)
    tbl = jnp.concatenate(
        [tbl, jnp.zeros((T, 3, 4 * H), jnp.float32)], axis=1)       # (T, 8, 4H)
    return tbl.astype(jnp.float32)


@jax.jit
def bnlstm_forward(x, params):
    """x: (B, T, I) batch-first float32 -> (B, lstm_output_size)."""
    B, T, I = x.shape
    H = params["w_hh0"].shape[0]
    O = params["fc_w"].shape[1]

    # Layout plumbing only: time-major, rows packed as (t0 b0, t0 b1, t1 b0, ...).
    x_tb = jnp.transpose(x, (1, 0, 2)).astype(jnp.float32).reshape(T * B, I)
    # Parameter-only preprocessing (a caller would cache these across calls).
    tbl0 = _fold_bn_table(params, 0, T, H)
    tbl1 = _fold_bn_table(params, 1, T, H)

    vmem = pl.BlockSpec(memory_space=pltpu.MemorySpace.VMEM)
    return pl.pallas_call(
        make_bnlstm_kernel(T, H),
        out_shape=jax.ShapeDtypeStruct((B, O), jnp.float32),
        in_specs=[vmem] * 9,
        out_specs=vmem,
    )(x_tb, params["w_ih0"], params["w_hh0"], tbl0,
      params["w_ih1"], params["w_hh1"], tbl1,
      params["fc_w"], params["fc_b"])


# ---------------------------------------------------------------------------
# Pure-JAX reference (unfolded eval-mode BN) and synthetic parameters
# ---------------------------------------------------------------------------
def bnlstm_reference(x, p):
    x = jnp.transpose(x, (1, 0, 2)).astype(jnp.float32)
    T, B, _ = x.shape
    H = p["w_hh0"].shape[0]

    def run_layer(inp, l):
        w_ih, w_hh = p[f"w_ih{l}"], p[f"w_hh{l}"]
        b = p[f"b{l}"][0]
        p4, s4 = p[f"bn4p{l}"], p[f"bn4s{l}"]
        pc, sc = p[f"bncp{l}"], p[f"bncs{l}"]
        h = jnp.zeros((B, H), jnp.float32)
        c = jnp.zeros((B, H), jnp.float32)
        outs = []
        for t in range(T):
            wi = inp[t] @ w_ih
            wh = h @ w_hh
            pre = (_bn(wi, p4[0], p4[1], s4[t, 0], s4[t, 1])
                   + _bn(wh, p4[2], p4[3], s4[t, 2], s4[t, 3]) + b)
            f, i, o, g = jnp.split(pre, 4, axis=1)
            c = jax.nn.sigmoid(f) * c + jax.nn.sigmoid(i) * jnp.tanh(g)
            h = jax.nn.sigmoid(o) * jnp.tanh(
                _bn(c, pc[0], pc[1], sc[t, 0], sc[t, 1]))
            outs.append(h)
        return jnp.stack(outs, 0), h

    out0, _ = run_layer(x, 0)
    _, h_last = run_layer(out0, 1)
    return h_last @ p["fc_w"] + p["fc_b"][0]


def init_params(key, I, H, O, T):
    """Deterministic synthetic parameters matching the module's shapes.

    weight_ih: random; weight_hh: identity tiled (per the module init); bias 0;
    BN gamma=0.1, beta=0 (per the module init); per-time-step running stats are
    randomized (mean small, var ~1) so the BN math is actually exercised.
    """
    ks = iter(jax.random.split(key, 24))
    p = {}
    for l, in_sz in ((0, I), (1, H)):
        p[f"w_ih{l}"] = (jax.random.normal(next(ks), (in_sz, 4 * H), jnp.float32)
                         / np.sqrt(in_sz))
        p[f"w_hh{l}"] = jnp.tile(jnp.eye(H, dtype=jnp.float32), (1, 4))
        p[f"b{l}"] = jnp.zeros((1, 4 * H), jnp.float32)
        gamma4 = jnp.full((4 * H,), 0.1, jnp.float32)
        beta4 = jnp.zeros((4 * H,), jnp.float32)
        p[f"bn4p{l}"] = jnp.stack([gamma4, beta4, gamma4, beta4], 0)  # (4, 4H)
        mean_ih = 0.05 * jax.random.normal(next(ks), (T, 4 * H), jnp.float32)
        var_ih = 0.9 + 0.2 * jax.random.uniform(next(ks), (T, 4 * H), jnp.float32)
        mean_hh = 0.05 * jax.random.normal(next(ks), (T, 4 * H), jnp.float32)
        var_hh = 0.9 + 0.2 * jax.random.uniform(next(ks), (T, 4 * H), jnp.float32)
        p[f"bn4s{l}"] = jnp.stack([mean_ih, var_ih, mean_hh, var_hh], 1)  # (T,4,4H)
        gamma_c = jnp.full((H,), 0.1, jnp.float32)
        beta_c = jnp.zeros((H,), jnp.float32)
        p[f"bncp{l}"] = jnp.stack([gamma_c, beta_c], 0)                   # (2, H)
        mean_c = 0.05 * jax.random.normal(next(ks), (T, H), jnp.float32)
        var_c = 0.9 + 0.2 * jax.random.uniform(next(ks), (T, H), jnp.float32)
        p[f"bncs{l}"] = jnp.stack([mean_c, var_c], 1)                     # (T,2,H)
    p["fc_w"] = (jax.random.normal(next(ks), (H, O), jnp.float32)
                 / np.sqrt(H))
    p["fc_b"] = (jax.random.normal(next(ks), (1, O), jnp.float32)
                 / np.sqrt(H))
    return p


if __name__ == "__main__":
    # Small shapes consistent with the module: batch=2, seq=8, input_size=16,
    # hidden_size=32, lstm_output_size=8 (max_length >= seq, so time index == t).
    B, T, I, H, O = 2, 8, 16, 32, 8
    root = jax.random.PRNGKey(0)
    k_params, k_x = jax.random.split(root)
    params = init_params(k_params, I, H, O, T)
    x = jax.random.normal(k_x, (B, T, I), jnp.float32)

    out = jax.block_until_ready(bnlstm_forward(x, params))
    ref = jax.block_until_ready(bnlstm_reference(x, params))

    assert out.shape == (B, O), out.shape
    np.testing.assert_allclose(np.asarray(out), np.asarray(ref),
                               rtol=2e-3, atol=2e-3)
    print("KERNEL_OK")
</pallas_src>

<mosaic_0001>
module attributes {stable_mosaic.version = 11 : i64} {
  func.func @kernel(%arg0: memref<16x16xf32, #tpu.memory_space<vmem>>, %arg1: memref<16x128xf32, #tpu.memory_space<vmem>>, %arg2: memref<32x128xf32, #tpu.memory_space<vmem>>, %arg3: memref<8x8x128xf32, #tpu.memory_space<vmem>>, %arg4: memref<32x128xf32, #tpu.memory_space<vmem>>, %arg5: memref<32x128xf32, #tpu.memory_space<vmem>>, %arg6: memref<8x8x128xf32, #tpu.memory_space<vmem>>, %arg7: memref<32x8xf32, #tpu.memory_space<vmem>>, %arg8: memref<1x8xf32, #tpu.memory_space<vmem>>, %arg9: memref<2x8xf32, #tpu.memory_space<vmem>>) attributes {dimension_semantics = [], scalar_prefetch = 0 : i64, scratch_operands = 0 : i64, tpu.core_type = #tpu.core_type<tc>} {
    %c0 = arith.constant 0 : index
    %c0_0 = arith.constant 0 : index
    %0 = vector.load %arg0[%c0, %c0_0] : memref<16x16xf32, #tpu.memory_space<vmem>>, vector<16x16xf32>
    %c0_1 = arith.constant 0 : index
    %c0_2 = arith.constant 0 : index
    %1 = vector.load %arg1[%c0_1, %c0_2] : memref<16x128xf32, #tpu.memory_space<vmem>>, vector<16x128xf32>
    %cst = arith.constant dense<0.000000e+00> : vector<16x128xf32>
    %2 = tpu.matmul %0, %1, %cst {dimension_numbers = #tpu.dot_dimension_numbers<[1], [0], [0], [1], [0, 0, 1, 1], [], []>} : vector<16x16xf32>, vector<16x128xf32>, vector<16x128xf32> -> vector<16x128xf32>
    %cst_3 = arith.constant 0.000000e+00 : f32
    %3 = vector.broadcast %cst_3 : f32 to vector<2x32xf32>
    %cst_4 = arith.constant 0.000000e+00 : f32
    %4 = vector.broadcast %cst_4 : f32 to vector<2x32xf32>
    %cst_5 = arith.constant 0.000000e+00 : f32
    %5 = vector.broadcast %cst_5 : f32 to vector<2x32xf32>
    %cst_6 = arith.constant 0.000000e+00 : f32
    %6 = vector.broadcast %cst_6 : f32 to vector<2x32xf32>
    %c0_7 = arith.constant 0 : index
    %c0_8 = arith.constant 0 : index
    %c0_9 = arith.constant 0 : index
    %7 = vector.load %arg3[%c0_7, %c0_8, %c0_9] : memref<8x8x128xf32, #tpu.memory_space<vmem>>, vector<1x8x128xf32>
    %8 = vector.shape_cast %7 : vector<1x8x128xf32> to vector<8x128xf32>
    %c0_10 = arith.constant 0 : index
    %c0_11 = arith.constant 0 : index
    %c0_12 = arith.constant 0 : index
    %9 = vector.load %arg6[%c0_10, %c0_11, %c0_12] : memref<8x8x128xf32, #tpu.memory_space<vmem>>, vector<1x8x128xf32>
    %10 = vector.shape_cast %9 : vector<1x8x128xf32> to vector<8x128xf32>
    %11 = vector.extract_strided_slice %2 {offsets = [0, 0], sizes = [2, 128], strides = [1, 1]} : vector<16x128xf32> to vector<2x128xf32>
    %c0_13 = arith.constant 0 : index
    %c0_14 = arith.constant 0 : index
    %12 = vector.load %arg2[%c0_13, %c0_14] : memref<32x128xf32, #tpu.memory_space<vmem>>, vector<32x128xf32>
    %cst_15 = arith.constant dense<0.000000e+00> : vector<2x128xf32>
    %13 = tpu.matmul %3, %12, %cst_15 {dimension_numbers = #tpu.dot_dimension_numbers<[1], [0], [0], [1], [0, 0, 1, 1], [], []>} : vector<2x32xf32>, vector<32x128xf32>, vector<2x128xf32> -> vector<2x128xf32>
    %14 = vector.extract_strided_slice %8 {offsets = [0, 0], sizes = [1, 128], strides = [1, 1]} : vector<8x128xf32> to vector<1x128xf32>
    %15 = vector.broadcast %14 : vector<1x128xf32> to vector<2x128xf32>
    %16 = arith.mulf %11, %15 : vector<2x128xf32>
    %17 = vector.extract_strided_slice %8 {offsets = [1, 0], sizes = [1, 128], strides = [1, 1]} : vector<8x128xf32> to vector<1x128xf32>
    %18 = vector.broadcast %17 : vector<1x128xf32> to vector<2x128xf32>
    %19 = arith.mulf %13, %18 : vector<2x128xf32>
    %20 = arith.addf %16, %19 : vector<2x128xf32>
    %21 = vector.extract_strided_slice %8 {offsets = [2, 0], sizes = [1, 128], strides = [1, 1]} : vector<8x128xf32> to vector<1x128xf32>
    %22 = vector.broadcast %21 : vector<1x128xf32> to vector<2x128xf32>
    %23 = arith.addf %20, %22 : vector<2x128xf32>
    %24 = vector.extract_strided_slice %23 {offsets = [0, 0], sizes = [2, 32], strides = [1, 1]} : vector<2x128xf32> to vector<2x32xf32>
    %25 = vector.extract_strided_slice %23 {offsets = [0, 32], sizes = [2, 32], strides = [1, 1]} : vector<2x128xf32> to vector<2x32xf32>
    %26 = vector.extract_strided_slice %23 {offsets = [0, 64], sizes = [2, 32], strides = [1, 1]} : vector<2x128xf32> to vector<2x32xf32>
    %27 = vector.extract_strided_slice %23 {offsets = [0, 96], sizes = [2, 32], strides = [1, 1]} : vector<2x128xf32> to vector<2x32xf32>
    %28 = arith.negf %24 : vector<2x32xf32>
    %29 = math.exp %28 : vector<2x32xf32>
    %cst_16 = arith.constant 1.000000e+00 : f32
    %30 = vector.broadcast %cst_16 : f32 to vector<2x32xf32>
    %31 = arith.addf %30, %29 : vector<2x32xf32>
    %32 = arith.divf %30, %31 : vector<2x32xf32>
    %33 = arith.mulf %32, %4 : vector<2x32xf32>
    %34 = arith.negf %25 : vector<2x32xf32>
    %35 = math.exp %34 : vector<2x32xf32>
    %cst_17 = arith.constant 1.000000e+00 : f32
    %36 = vector.broadcast %cst_17 : f32 to vector<2x32xf32>
    %37 = arith.addf %36, %35 : vector<2x32xf32>
    %38 = arith.divf %36, %37 : vector<2x32xf32>
    %39 = math.tanh %27 : vector<2x32xf32>
    %40 = arith.mulf %38, %39 : vector<2x32xf32>
    %41 = arith.addf %33, %40 : vector<2x32xf32>
    %42 = vector.extract_strided_slice %8 {offsets = [3, 0], sizes = [1, 32], strides = [1, 1]} : vector<8x128xf32> to vector<1x32xf32>
    %43 = vector.broadcast %42 : vector<1x32xf32> to vector<2x32xf32>
    %44 = arith.mulf %41, %43 : vector<2x32xf32>
    %45 = vector.extract_strided_slice %8 {offsets = [4, 0], sizes = [1, 32], strides = [1, 1]} : vector<8x128xf32> to vector<1x32xf32>
    %46 = vector.broadcast %45 : vector<1x32xf32> to vector<2x32xf32>
    %47 = arith.addf %44, %46 : vector<2x32xf32>
    %48 = arith.negf %26 : vector<2x32xf32>
    %49 = math.exp %48 : vector<2x32xf32>
    %cst_18 = arith.constant 1.000000e+00 : f32
    %50 = vector.broadcast %cst_18 : f32 to vector<2x32xf32>
    %51 = arith.addf %50, %49 : vector<2x32xf32>
    %52 = arith.divf %50, %51 : vector<2x32xf32>
    %53 = math.tanh %47 : vector<2x32xf32>
    %54 = arith.mulf %52, %53 : vector<2x32xf32>
    %c0_19 = arith.constant 0 : index
    %c0_20 = arith.constant 0 : index
    %55 = vector.load %arg4[%c0_19, %c0_20] : memref<32x128xf32, #tpu.memory_space<vmem>>, vector<32x128xf32>
    %cst_21 = arith.constant dense<0.000000e+00> : vector<2x128xf32>
    %56 = tpu.matmul %54, %55, %cst_21 {dimension_numbers = #tpu.dot_dimension_numbers<[1], [0], [0], [1], [0, 0, 1, 1], [], []>} : vector<2x32xf32>, vector<32x128xf32>, vector<2x128xf32> -> vector<2x128xf32>
    %c0_22 = arith.constant 0 : index
    %c0_23 = arith.constant 0 : index
    %57 = vector.load %arg5[%c0_22, %c0_23] : memref<32x128xf32, #tpu.memory_space<vmem>>, vector<32x128xf32>
    %cst_24 = arith.constant dense<0.000000e+00> : vector<2x128xf32>
    %58 = tpu.matmul %5, %57, %cst_24 {dimension_numbers = #tpu.dot_dimension_numbers<[1], [0], [0], [1], [0, 0, 1, 1], [], []>} : vector<2x32xf32>, vector<32x128xf32>, vector<2x128xf32> -> vector<2x128xf32>
    %59 = vector.extract_strided_slice %10 {offsets = [0, 0], sizes = [1, 128], strides = [1, 1]} : vector<8x128xf32> to vector<1x128xf32>
    %60 = vector.broadcast %59 : vector<1x128xf32> to vector<2x128xf32>
    %61 = arith.mulf %56, %60 : vector<2x128xf32>
    %62 = vector.extract_strided_slice %10 {offsets = [1, 0], sizes = [1, 128], strides = [1, 1]} : vector<8x128xf32> to vector<1x128xf32>
    %63 = vector.broadcast %62 : vector<1x128xf32> to vector<2x128xf32>
    %64 = arith.mulf %58, %63 : vector<2x128xf32>
    %65 = arith.addf %61, %64 : vector<2x128xf32>
    %66 = vector.extract_strided_slice %10 {offsets = [2, 0], sizes = [1, 128], strides = [1, 1]} : vector<8x128xf32> to vector<1x128xf32>
    %67 = vector.broadcast %66 : vector<1x128xf32> to vector<2x128xf32>
    %68 = arith.addf %65, %67 : vector<2x128xf32>
    %69 = vector.extract_strided_slice %68 {offsets = [0, 0], sizes = [2, 32], strides = [1, 1]} : vector<2x128xf32> to vector<2x32xf32>
    %70 = vector.extract_strided_slice %68 {offsets = [0, 32], sizes = [2, 32], strides = [1, 1]} : vector<2x128xf32> to vector<2x32xf32>
    %71 = vector.extract_strided_slice %68 {offsets = [0, 64], sizes = [2, 32], strides = [1, 1]} : vector<2x128xf32> to vector<2x32xf32>
    %72 = vector.extract_strided_slice %68 {offsets = [0, 96], sizes = [2, 32], strides = [1, 1]} : vector<2x128xf32> to vector<2x32xf32>
    %73 = arith.negf %69 : vector<2x32xf32>
    %74 = math.exp %73 : vector<2x32xf32>
    %cst_25 = arith.constant 1.000000e+00 : f32
    %75 = vector.broadcast %cst_25 : f32 to vector<2x32xf32>
    %76 = arith.addf %75, %74 : vector<2x32xf32>
    %77 = arith.divf %75, %76 : vector<2x32xf32>
    %78 = arith.mulf %77, %6 : vector<2x32xf32>
    %79 = arith.negf %70 : vector<2x32xf32>
    %80 = math.exp %79 : vector<2x32xf32>
    %cst_26 = arith.constant 1.000000e+00 : f32
    %81 = vector.broadcast %cst_26 : f32 to vector<2x32xf32>
    %82 = arith.addf %81, %80 : vector<2x32xf32>
    %83 = arith.divf %81, %82 : vector<2x32xf32>
    %84 = math.tanh %72 : vector<2x32xf32>
    %85 = arith.mulf %83, %84 : vector<2x32xf32>
    %86 = arith.addf %78, %85 : vector<2x32xf32>
    %87 = vector.extract_strided_slice %10 {offsets = [3, 0], sizes = [1, 32], strides = [1, 1]} : vector<8x128xf32> to vector<1x32xf32>
    %88 = vector.broadcast %87 : vector<1x32xf32> to vector<2x32xf32>
    %89 = arith.mulf %86, %88 : vector<2x32xf32>
    %90 = vector.extract_strided_slice %10 {offsets = [4, 0], sizes = [1, 32], strides = [1, 1]} : vector<8x128xf32> to vector<1x32xf32>
    %91 = vector.broadcast %90 : vector<1x32xf32> to vector<2x32xf32>
    %92 = arith.addf %89, %91 : vector<2x32xf32>
    %93 = arith.negf %71 : vector<2x32xf32>
    %94 = math.exp %93 : vector<2x32xf32>
    %cst_27 = arith.constant 1.000000e+00 : f32
    %95 = vector.broadcast %cst_27 : f32 to vector<2x32xf32>
    %96 = arith.addf %95, %94 : vector<2x32xf32>
    %97 = arith.divf %95, %96 : vector<2x32xf32>
    %98 = math.tanh %92 : vector<2x32xf32>
    %99 = arith.mulf %97, %98 : vector<2x32xf32>
    %c1 = arith.constant 1 : index
    %c0_28 = arith.constant 0 : index
    %c0_29 = arith.constant 0 : index
    %100 = vector.load %arg3[%c1, %c0_28, %c0_29] : memref<8x8x128xf32, #tpu.memory_space<vmem>>, vector<1x8x128xf32>
    %101 = vector.shape_cast %100 : vector<1x8x128xf32> to vector<8x128xf32>
    %c1_30 = arith.constant 1 : index
    %c0_31 = arith.constant 0 : index
    %c0_32 = arith.constant 0 : index
    %102 = vector.load %arg6[%c1_30, %c0_31, %c0_32] : memref<8x8x128xf32, #tpu.memory_space<vmem>>, vector<1x8x128xf32>
    %103 = vector.shape_cast %102 : vector<1x8x128xf32> to vector<8x128xf32>
    %104 = vector.extract_strided_slice %2 {offsets = [2, 0], sizes = [2, 128], strides = [1, 1]} : vector<16x128xf32> to vector<2x128xf32>
    %c0_33 = arith.constant 0 : index
    %c0_34 = arith.constant 0 : index
    %105 = vector.load %arg2[%c0_33, %c0_34] : memref<32x128xf32, #tpu.memory_space<vmem>>, vector<32x128xf32>
    %cst_35 = arith.constant dense<0.000000e+00> : vector<2x128xf32>
    %106 = tpu.matmul %54, %105, %cst_35 {dimension_numbers = #tpu.dot_dimension_numbers<[1], [0], [0], [1], [0, 0, 1, 1], [], []>} : vector<2x32xf32>, vector<32x128xf32>, vector<2x128xf32> -> vector<2x128xf32>
    %107 = vector.extract_strided_slice %101 {offsets = [0, 0], sizes = [1, 128], strides = [1, 1]} : vector<8x128xf32> to vector<1x128xf32>
    %108 = vector.broadcast %107 : vector<1x128xf32> to vector<2x128xf32>
    %109 = arith.mulf %104, %108 : vector<2x128xf32>
    %110 = vector.extract_strided_slice %101 {offsets = [1, 0], sizes = [1, 128], strides = [1, 1]} : vector<8x128xf32> to vector<1x128xf32>
    %111 = vector.broadcast %110 : vector<1x128xf32> to vector<2x128xf32>
    %112 = arith.mulf %106, %111 : vector<2x128xf32>
    %113 = arith.addf %109, %112 : vector<2x128xf32>
    %114 = vector.extract_strided_slice %101 {offsets = [2, 0], sizes = [1, 128], strides = [1, 1]} : vector<8x128xf32> to vector<1x128xf32>
    %115 = vector.broadcast %114 : vector<1x128xf32> to vector<2x128xf32>
    %116 = arith.addf %113, %115 : vector<2x128xf32>
    %117 = vector.extract_strided_slice %116 {offsets = [0, 0], sizes = [2, 32], strides = [1, 1]} : vector<2x128xf32> to vector<2x32xf32>
    %118 = vector.extract_strided_slice %116 {offsets = [0, 32], sizes = [2, 32], strides = [1, 1]} : vector<2x128xf32> to vector<2x32xf32>
    %119 = vector.extract_strided_slice %116 {offsets = [0, 64], sizes = [2, 32], strides = [1, 1]} : vector<2x128xf32> to vector<2x32xf32>
    %120 = vector.extract_strided_slice %116 {offsets = [0, 96], sizes = [2, 32], strides = [1, 1]} : vector<2x128xf32> to vector<2x32xf32>
    %121 = arith.negf %117 : vector<2x32xf32>
    %122 = math.exp %121 : vector<2x32xf32>
    %cst_36 = arith.constant 1.000000e+00 : f32
    %123 = vector.broadcast %cst_36 : f32 to vector<2x32xf32>
    %124 = arith.addf %123, %122 : vector<2x32xf32>
    %125 = arith.divf %123, %124 : vector<2x32xf32>
    %126 = arith.mulf %125, %41 : vector<2x32xf32>
    %127 = arith.negf %118 : vector<2x32xf32>
    %128 = math.exp %127 : vector<2x32xf32>
    %cst_37 = arith.constant 1.000000e+00 : f32
    %129 = vector.broadcast %cst_37 : f32 to vector<2x32xf32>
    %130 = arith.addf %129, %128 : vector<2x32xf32>
    %131 = arith.divf %129, %130 : vector<2x32xf32>
    %132 = math.tanh %120 : vector<2x32xf32>
    %133 = arith.mulf %131, %132 : vector<2x32xf32>
    %134 = arith.addf %126, %133 : vector<2x32xf32>
    %135 = vector.extract_strided_slice %101 {offsets = [3, 0], sizes = [1, 32], strides = [1, 1]} : vector<8x128xf32> to vector<1x32xf32>
    %136 = vector.broadcast %135 : vector<1x32xf32> to vector<2x32xf32>
    %137 = arith.mulf %134, %136 : vector<2x32xf32>
    %138 = vector.extract_strided_slice %101 {offsets = [4, 0], sizes = [1, 32], strides = [1, 1]} : vector<8x128xf32> to vector<1x32xf32>
    %139 = vector.broadcast %138 : vector<1x32xf32> to vector<2x32xf32>
    %140 = arith.addf %137, %139 : vector<2x32xf32>
    %141 = arith.negf %119 : vector<2x32xf32>
    %142 = math.exp %141 : vector<2x32xf32>
    %cst_38 = arith.constant 1.000000e+00 : f32
    %143 = vector.broadcast %cst_38 : f32 to vector<2x32xf32>
    %144 = arith.addf %143, %142 : vector<2x32xf32>
    %145 = arith.divf %143, %144 : vector<2x32xf32>
    %146 = math.tanh %140 : vector<2x32xf32>
    %147 = arith.mulf %145, %146 : vector<2x32xf32>
    %c0_39 = arith.constant 0 : index
    %c0_40 = arith.constant 0 : index
    %148 = vector.load %arg4[%c0_39, %c0_40] : memref<32x128xf32, #tpu.memory_space<vmem>>, vector<32x128xf32>
    %cst_41 = arith.constant dense<0.000000e+00> : vector<2x128xf32>
    %149 = tpu.matmul %147, %148, %cst_41 {dimension_numbers = #tpu.dot_dimension_numbers<[1], [0], [0], [1], [0, 0, 1, 1], [], []>} : vector<2x32xf32>, vector<32x128xf32>, vector<2x128xf32> -> vector<2x128xf32>
    %c0_42 = arith.constant 0 : index
    %c0_43 = arith.constant 0 : index
    %150 = vector.load %arg5[%c0_42, %c0_43] : memref<32x128xf32, #tpu.memory_space<vmem>>, vector<32x128xf32>
    %cst_44 = arith.constant dense<0.000000e+00> : vector<2x128xf32>
    %151 = tpu.matmul %99, %150, %cst_44 {dimension_numbers = #tpu.dot_dimension_numbers<[1], [0], [0], [1], [0, 0, 1, 1], [], []>} : vector<2x32xf32>, vector<32x128xf32>, vector<2x128xf32> -> vector<2x128xf32>
    %152 = vector.extract_strided_slice %103 {offsets = [0, 0], sizes = [1, 128], strides = [1, 1]} : vector<8x128xf32> to vector<1x128xf32>
    %153 = vector.broadcast %152 : vector<1x128xf32> to vector<2x128xf32>
    %154 = arith.mulf %149, %153 : vector<2x128xf32>
    %155 = vector.extract_strided_slice %103 {offsets = [1, 0], sizes = [1, 128], strides = [1, 1]} : vector<8x128xf32> to vector<1x128xf32>
    %156 = vector.broadcast %155 : vector<1x128xf32> to vector<2x128xf32>
    %157 = arith.mulf %151, %156 : vector<2x128xf32>
    %158 = arith.addf %154, %157 : vector<2x128xf32>
    %159 = vector.extract_strided_slice %103 {offsets = [2, 0], sizes = [1, 128], strides = [1, 1]} : vector<8x128xf32> to vector<1x128xf32>
    %160 = vector.broadcast %159 : vector<1x128xf32> to vector<2x128xf32>
    %161 = arith.addf %158, %160 : vector<2x128xf32>
    %162 = vector.extract_strided_slice %161 {offsets = [0, 0], sizes = [2, 32], strides = [1, 1]} : vector<2x128xf32> to vector<2x32xf32>
    %163 = vector.extract_strided_slice %161 {offsets = [0, 32], sizes = [2, 32], strides = [1, 1]} : vector<2x128xf32> to vector<2x32xf32>
    %164 = vector.extract_strided_slice %161 {offsets = [0, 64], sizes = [2, 32], strides = [1, 1]} : vector<2x128xf32> to vector<2x32xf32>
    %165 = vector.extract_strided_slice %161 {offsets = [0, 96], sizes = [2, 32], strides = [1, 1]} : vector<2x128xf32> to vector<2x32xf32>
    %166 = arith.negf %162 : vector<2x32xf32>
    %167 = math.exp %166 : vector<2x32xf32>
    %cst_45 = arith.constant 1.000000e+00 : f32
    %168 = vector.broadcast %cst_45 : f32 to vector<2x32xf32>
    %169 = arith.addf %168, %167 : vector<2x32xf32>
    %170 = arith.divf %168, %169 : vector<2x32xf32>
    %171 = arith.mulf %170, %86 : vector<2x32xf32>
    %172 = arith.negf %163 : vector<2x32xf32>
    %173 = math.exp %172 : vector<2x32xf32>
    %cst_46 = arith.constant 1.000000e+00 : f32
    %174 = vector.broadcast %cst_46 : f32 to vector<2x32xf32>
    %175 = arith.addf %174, %173 : vector<2x32xf32>
    %176 = arith.divf %174, %175 : vector<2x32xf32>
    %177 = math.tanh %165 : vector<2x32xf32>
    %178 = arith.mulf %176, %177 : vector<2x32xf32>
    %179 = arith.addf %171, %178 : vector<2x32xf32>
    %180 = vector.extract_strided_slice %103 {offsets = [3, 0], sizes = [1, 32], strides = [1, 1]} : vector<8x128xf32> to vector<1x32xf32>
    %181 = vector.broadcast %180 : vector<1x32xf32> to vector<2x32xf32>
    %182 = arith.mulf %179, %181 : vector<2x32xf32>
    %183 = vector.extract_strided_slice %103 {offsets = [4, 0], sizes = [1, 32], strides = [1, 1]} : vector<8x128xf32> to vector<1x32xf32>
    %184 = vector.broadcast %183 : vector<1x32xf32> to vector<2x32xf32>
    %185 = arith.addf %182, %184 : vector<2x32xf32>
    %186 = arith.negf %164 : vector<2x32xf32>
    %187 = math.exp %186 : vector<2x32xf32>
    %cst_47 = arith.constant 1.000000e+00 : f32
    %188 = vector.broadcast %cst_47 : f32 to vector<2x32xf32>
    %189 = arith.addf %188, %187 : vector<2x32xf32>
    %190 = arith.divf %188, %189 : vector<2x32xf32>
    %191 = math.tanh %185 : vector<2x32xf32>
    %192 = arith.mulf %190, %191 : vector<2x32xf32>
    %c2 = arith.constant 2 : index
    %c0_48 = arith.constant 0 : index
    %c0_49 = arith.constant 0 : index
    %193 = vector.load %arg3[%c2, %c0_48, %c0_49] : memref<8x8x128xf32, #tpu.memory_space<vmem>>, vector<1x8x128xf32>
    %194 = vector.shape_cast %193 : vector<1x8x128xf32> to vector<8x128xf32>
    %c2_50 = arith.constant 2 : index
    %c0_51 = arith.constant 0 : index
    %c0_52 = arith.constant 0 : index
    %195 = vector.load %arg6[%c2_50, %c0_51, %c0_52] : memref<8x8x128xf32, #tpu.memory_space<vmem>>, vector<1x8x128xf32>
    %196 = vector.shape_cast %195 : vector<1x8x128xf32> to vector<8x128xf32>
    %197 = vector.extract_strided_slice %2 {offsets = [4, 0], sizes = [2, 128], strides = [1, 1]} : vector<16x128xf32> to vector<2x128xf32>
    %c0_53 = arith.constant 0 : index
    %c0_54 = arith.constant 0 : index
    %198 = vector.load %arg2[%c0_53, %c0_54] : memref<32x128xf32, #tpu.memory_space<vmem>>, vector<32x128xf32>
    %cst_55 = arith.constant dense<0.000000e+00> : vector<2x128xf32>
    %199 = tpu.matmul %147, %198, %cst_55 {dimension_numbers = #tpu.dot_dimension_numbers<[1], [0], [0], [1], [0, 0, 1, 1], [], []>} : vector<2x32xf32>, vector<32x128xf32>, vector<2x128xf32> -> vector<2x128xf32>
    %200 = vector.extract_strided_slice %194 {offsets = [0, 0], sizes = [1, 128], strides = [1, 1]} : vector<8x128xf32> to vector<1x128xf32>
    %201 = vector.broadcast %200 : vector<1x128xf32> to vector<2x128xf32>
    %202 = arith.mulf %197, %201 : vector<2x128xf32>
    %203 = vector.extract_strided_slice %194 {offsets = [1, 0], sizes = [1, 128], strides = [1, 1]} : vector<8x128xf32> to vector<1x128xf32>
    %204 = vector.broadcast %203 : vector<1x128xf32> to vector<2x128xf32>
    %205 = arith.mulf %199, %204 : vector<2x128xf32>
    %206 = arith.addf %202, %205 : vector<2x128xf32>
    %207 = vector.extract_strided_slice %194 {offsets = [2, 0], sizes = [1, 128], strides = [1, 1]} : vector<8x128xf32> to vector<1x128xf32>
    %208 = vector.broadcast %207 : vector<1x128xf32> to vector<2x128xf32>
    %209 = arith.addf %206, %208 : vector<2x128xf32>
    %210 = vector.extract_strided_slice %209 {offsets = [0, 0], sizes = [2, 32], strides = [1, 1]} : vector<2x128xf32> to vector<2x32xf32>
    %211 = vector.extract_strided_slice %209 {offsets = [0, 32], sizes = [2, 32], strides = [1, 1]} : vector<2x128xf32> to vector<2x32xf32>
    %212 = vector.extract_strided_slice %209 {offsets = [0, 64], sizes = [2, 32], strides = [1, 1]} : vector<2x128xf32> to vector<2x32xf32>
    %213 = vector.extract_strided_slice %209 {offsets = [0, 96], sizes = [2, 32], strides = [1, 1]} : vector<2x128xf32> to vector<2x32xf32>
    %214 = arith.negf %210 : vector<2x32xf32>
    %215 = math.exp %214 : vector<2x32xf32>
    %cst_56 = arith.constant 1.000000e+00 : f32
    %216 = vector.broadcast %cst_56 : f32 to vector<2x32xf32>
    %217 = arith.addf %216, %215 : vector<2x32xf32>
    %218 = arith.divf %216, %217 : vector<2x32xf32>
    %219 = arith.mulf %218, %134 : vector<2x32xf32>
    %220 = arith.negf %211 : vector<2x32xf32>
    %221 = math.exp %220 : vector<2x32xf32>
    %cst_57 = arith.constant 1.000000e+00 : f32
    %222 = vector.broadcast %cst_57 : f32 to vector<2x32xf32>
    %223 = arith.addf %222, %221 : vector<2x32xf32>
    %224 = arith.divf %222, %223 : vector<2x32xf32>
    %225 = math.tanh %213 : vector<2x32xf32>
    %226 = arith.mulf %224, %225 : vector<2x32xf32>
    %227 = arith.addf %219, %226 : vector<2x32xf32>
    %228 = vector.extract_strided_slice %194 {offsets = [3, 0], sizes = [1, 32], strides = [1, 1]} : vector<8x128xf32> to vector<1x32xf32>
    %229 = vector.broadcast %228 : vector<1x32xf32> to vector<2x32xf32>
    %230 = arith.mulf %227, %229 : vector<2x32xf32>
    %231 = vector.extract_strided_slice %194 {offsets = [4, 0], sizes = [1, 32], strides = [1, 1]} : vector<8x128xf32> to vector<1x32xf32>
    %232 = vector.broadcast %231 : vector<1x32xf32> to vector<2x32xf32>
    %233 = arith.addf %230, %232 : vector<2x32xf32>
    %234 = arith.negf %212 : vector<2x32xf32>
    %235 = math.exp %234 : vector<2x32xf32>
    %cst_58 = arith.constant 1.000000e+00 : f32
    %236 = vector.broadcast %cst_58 : f32 to vector<2x32xf32>
    %237 = arith.addf %236, %235 : vector<2x32xf32>
    %238 = arith.divf %236, %237 : vector<2x32xf32>
    %239 = math.tanh %233 : vector<2x32xf32>
    %240 = arith.mulf %238, %239 : vector<2x32xf32>
    %c0_59 = arith.constant 0 : index
    %c0_60 = arith.constant 0 : index
    %241 = vector.load %arg4[%c0_59, %c0_60] : memref<32x128xf32, #tpu.memory_space<vmem>>, vector<32x128xf32>
    %cst_61 = arith.constant dense<0.000000e+00> : vector<2x128xf32>
    %242 = tpu.matmul %240, %241, %cst_61 {dimension_numbers = #tpu.dot_dimension_numbers<[1], [0], [0], [1], [0, 0, 1, 1], [], []>} : vector<2x32xf32>, vector<32x128xf32>, vector<2x128xf32> -> vector<2x128xf32>
    %c0_62 = arith.constant 0 : index
    %c0_63 = arith.constant 0 : index
    %243 = vector.load %arg5[%c0_62, %c0_63] : memref<32x128xf32, #tpu.memory_space<vmem>>, vector<32x128xf32>
    %cst_64 = arith.constant dense<0.000000e+00> : vector<2x128xf32>
    %244 = tpu.matmul %192, %243, %cst_64 {dimension_numbers = #tpu.dot_dimension_numbers<[1], [0], [0], [1], [0, 0, 1, 1], [], []>} : vector<2x32xf32>, vector<32x128xf32>, vector<2x128xf32> -> vector<2x128xf32>
    %245 = vector.extract_strided_slice %196 {offsets = [0, 0], sizes = [1, 128], strides = [1, 1]} : vector<8x128xf32> to vector<1x128xf32>
    %246 = vector.broadcast %245 : vector<1x128xf32> to vector<2x128xf32>
    %247 = arith.mulf %242, %246 : vector<2x128xf32>
    %248 = vector.extract_strided_slice %196 {offsets = [1, 0], sizes = [1, 128], strides = [1, 1]} : vector<8x128xf32> to vector<1x128xf32>
    %249 = vector.broadcast %248 : vector<1x128xf32> to vector<2x128xf32>
    %250 = arith.mulf %244, %249 : vector<2x128xf32>
    %251 = arith.addf %247, %250 : vector<2x128xf32>
    %252 = vector.extract_strided_slice %196 {offsets = [2, 0], sizes = [1, 128], strides = [1, 1]} : vector<8x128xf32> to vector<1x128xf32>
    %253 = vector.broadcast %252 : vector<1x128xf32> to vector<2x128xf32>
    %254 = arith.addf %251, %253 : vector<2x128xf32>
    %255 = vector.extract_strided_slice %254 {offsets = [0, 0], sizes = [2, 32], strides = [1, 1]} : vector<2x128xf32> to vector<2x32xf32>
    %256 = vector.extract_strided_slice %254 {offsets = [0, 32], sizes = [2, 32], strides = [1, 1]} : vector<2x128xf32> to vector<2x32xf32>
    %257 = vector.extract_strided_slice %254 {offsets = [0, 64], sizes = [2, 32], strides = [1, 1]} : vector<2x128xf32> to vector<2x32xf32>
    %258 = vector.extract_strided_slice %254 {offsets = [0, 96], sizes = [2, 32], strides = [1, 1]} : vector<2x128xf32> to vector<2x32xf32>
    %259 = arith.negf %255 : vector<2x32xf32>
    %260 = math.exp %259 : vector<2x32xf32>
    %cst_65 = arith.constant 1.000000e+00 : f32
    %261 = vector.broadcast %cst_65 : f32 to vector<2x32xf32>
    %262 = arith.addf %261, %260 : vector<2x32xf32>
    %263 = arith.divf %261, %262 : vector<2x32xf32>
    %264 = arith.mulf %263, %179 : vector<2x32xf32>
    %265 = arith.negf %256 : vector<2x32xf32>
    %266 = math.exp %265 : vector<2x32xf32>
    %cst_66 = arith.constant 1.000000e+00 : f32
    %267 = vector.broadcast %cst_66 : f32 to vector<2x32xf32>
    %268 = arith.addf %267, %266 : vector<2x32xf32>
    %269 = arith.divf %267, %268 : vector<2x32xf32>
    %270 = math.tanh %258 : vector<2x32xf32>
    %271 = arith.mulf %269, %270 : vector<2x32xf32>
    %272 = arith.addf %264, %271 : vector<2x32xf32>
    %273 = vector.extract_strided_slice %196 {offsets = [3, 0], sizes = [1, 32], strides = [1, 1]} : vector<8x128xf32> to vector<1x32xf32>
    %274 = vector.broadcast %273 : vector<1x32xf32> to vector<2x32xf32>
    %275 = arith.mulf %272, %274 : vector<2x32xf32>
    %276 = vector.extract_strided_slice %196 {offsets = [4, 0], sizes = [1, 32], strides = [1, 1]} : vector<8x128xf32> to vector<1x32xf32>
    %277 = vector.broadcast %276 : vector<1x32xf32> to vector<2x32xf32>
    %278 = arith.addf %275, %277 : vector<2x32xf32>
    %279 = arith.negf %257 : vector<2x32xf32>
    %280 = math.exp %279 : vector<2x32xf32>
    %cst_67 = arith.constant 1.000000e+00 : f32
    %281 = vector.broadcast %cst_67 : f32 to vector<2x32xf32>
    %282 = arith.addf %281, %280 : vector<2x32xf32>
    %283 = arith.divf %281, %282 : vector<2x32xf32>
    %284 = math.tanh %278 : vector<2x32xf32>
    %285 = arith.mulf %283, %284 : vector<2x32xf32>
    %c3 = arith.constant 3 : index
    %c0_68 = arith.constant 0 : index
    %c0_69 = arith.constant 0 : index
    %286 = vector.load %arg3[%c3, %c0_68, %c0_69] : memref<8x8x128xf32, #tpu.memory_space<vmem>>, vector<1x8x128xf32>
    %287 = vector.shape_cast %286 : vector<1x8x128xf32> to vector<8x128xf32>
    %c3_70 = arith.constant 3 : index
    %c0_71 = arith.constant 0 : index
    %c0_72 = arith.constant 0 : index
    %288 = vector.load %arg6[%c3_70, %c0_71, %c0_72] : memref<8x8x128xf32, #tpu.memory_space<vmem>>, vector<1x8x128xf32>
    %289 = vector.shape_cast %288 : vector<1x8x128xf32> to vector<8x128xf32>
    %290 = vector.extract_strided_slice %2 {offsets = [6, 0], sizes = [2, 128], strides = [1, 1]} : vector<16x128xf32> to vector<2x128xf32>
    %c0_73 = arith.constant 0 : index
    %c0_74 = arith.constant 0 : index
    %291 = vector.load %arg2[%c0_73, %c0_74] : memref<32x128xf32, #tpu.memory_space<vmem>>, vector<32x128xf32>
    %cst_75 = arith.constant dense<0.000000e+00> : vector<2x128xf32>
    %292 = tpu.matmul %240, %291, %cst_75 {dimension_numbers = #tpu.dot_dimension_numbers<[1], [0], [0], [1], [0, 0, 1, 1], [], []>} : vector<2x32xf32>, vector<32x128xf32>, vector<2x128xf32> -> vector<2x128xf32>
    %293 = vector.extract_strided_slice %287 {offsets = [0, 0], sizes = [1, 128], strides = [1, 1]} : vector<8x128xf32> to vector<1x128xf32>
    %294 = vector.broadcast %293 : vector<1x128xf32> to vector<2x128xf32>
    %295 = arith.mulf %290, %294 : vector<2x128xf32>
    %296 = vector.extract_strided_slice %287 {offsets = [1, 0], sizes = [1, 128], strides = [1, 1]} : vector<8x128xf32> to vector<1x128xf32>
    %297 = vector.broadcast %296 : vector<1x128xf32> to vector<2x128xf32>
    %298 = arith.mulf %292, %297 : vector<2x128xf32>
    %299 = arith.addf %295, %298 : vector<2x128xf32>
    %300 = vector.extract_strided_slice %287 {offsets = [2, 0], sizes = [1, 128], strides = [1, 1]} : vector<8x128xf32> to vector<1x128xf32>
    %301 = vector.broadcast %300 : vector<1x128xf32> to vector<2x128xf32>
    %302 = arith.addf %299, %301 : vector<2x128xf32>
    %303 = vector.extract_strided_slice %302 {offsets = [0, 0], sizes = [2, 32], strides = [1, 1]} : vector<2x128xf32> to vector<2x32xf32>
    %304 = vector.extract_strided_slice %302 {offsets = [0, 32], sizes = [2, 32], strides = [1, 1]} : vector<2x128xf32> to vector<2x32xf32>
    %305 = vector.extract_strided_slice %302 {offsets = [0, 64], sizes = [2, 32], strides = [1, 1]} : vector<2x128xf32> to vector<2x32xf32>
    %306 = vector.extract_strided_slice %302 {offsets = [0, 96], sizes = [2, 32], strides = [1, 1]} : vector<2x128xf32> to vector<2x32xf32>
    %307 = arith.negf %303 : vector<2x32xf32>
    %308 = math.exp %307 : vector<2x32xf32>
    %cst_76 = arith.constant 1.000000e+00 : f32
    %309 = vector.broadcast %cst_76 : f32 to vector<2x32xf32>
    %310 = arith.addf %309, %308 : vector<2x32xf32>
    %311 = arith.divf %309, %310 : vector<2x32xf32>
    %312 = arith.mulf %311, %227 : vector<2x32xf32>
    %313 = arith.negf %304 : vector<2x32xf32>
    %314 = math.exp %313 : vector<2x32xf32>
    %cst_77 = arith.constant 1.000000e+00 : f32
    %315 = vector.broadcast %cst_77 : f32 to vector<2x32xf32>
    %316 = arith.addf %315, %314 : vector<2x32xf32>
    %317 = arith.divf %315, %316 : vector<2x32xf32>
    %318 = math.tanh %306 : vector<2x32xf32>
    %319 = arith.mulf %317, %318 : vector<2x32xf32>
    %320 = arith.addf %312, %319 : vector<2x32xf32>
    %321 = vector.extract_strided_slice %287 {offsets = [3, 0], sizes = [1, 32], strides = [1, 1]} : vector<8x128xf32> to vector<1x32xf32>
    %322 = vector.broadcast %321 : vector<1x32xf32> to vector<2x32xf32>
    %323 = arith.mulf %320, %322 : vector<2x32xf32>
    %324 = vector.extract_strided_slice %287 {offsets = [4, 0], sizes = [1, 32], strides = [1, 1]} : vector<8x128xf32> to vector<1x32xf32>
    %325 = vector.broadcast %324 : vector<1x32xf32> to vector<2x32xf32>
    %326 = arith.addf %323, %325 : vector<2x32xf32>
    %327 = arith.negf %305 : vector<2x32xf32>
    %328 = math.exp %327 : vector<2x32xf32>
    %cst_78 = arith.constant 1.000000e+00 : f32
    %329 = vector.broadcast %cst_78 : f32 to vector<2x32xf32>
    %330 = arith.addf %329, %328 : vector<2x32xf32>
    %331 = arith.divf %329, %330 : vector<2x32xf32>
    %332 = math.tanh %326 : vector<2x32xf32>
    %333 = arith.mulf %331, %332 : vector<2x32xf32>
    %c0_79 = arith.constant 0 : index
    %c0_80 = arith.constant 0 : index
    %334 = vector.load %arg4[%c0_79, %c0_80] : memref<32x128xf32, #tpu.memory_space<vmem>>, vector<32x128xf32>
    %cst_81 = arith.constant dense<0.000000e+00> : vector<2x128xf32>
    %335 = tpu.matmul %333, %334, %cst_81 {dimension_numbers = #tpu.dot_dimension_numbers<[1], [0], [0], [1], [0, 0, 1, 1], [], []>} : vector<2x32xf32>, vector<32x128xf32>, vector<2x128xf32> -> vector<2x128xf32>
    %c0_82 = arith.constant 0 : index
    %c0_83 = arith.constant 0 : index
    %336 = vector.load %arg5[%c0_82, %c0_83] : memref<32x128xf32, #tpu.memory_space<vmem>>, vector<32x128xf32>
    %cst_84 = arith.constant dense<0.000000e+00> : vector<2x128xf32>
    %337 = tpu.matmul %285, %336, %cst_84 {dimension_numbers = #tpu.dot_dimension_numbers<[1], [0], [0], [1], [0, 0, 1, 1], [], []>} : vector<2x32xf32>, vector<32x128xf32>, vector<2x128xf32> -> vector<2x128xf32>
    %338 = vector.extract_strided_slice %289 {offsets = [0, 0], sizes = [1, 128], strides = [1, 1]} : vector<8x128xf32> to vector<1x128xf32>
    %339 = vector.broadcast %338 : vector<1x128xf32> to vector<2x128xf32>
    %340 = arith.mulf %335, %339 : vector<2x128xf32>
    %341 = vector.extract_strided_slice %289 {offsets = [1, 0], sizes = [1, 128], strides = [1, 1]} : vector<8x128xf32> to vector<1x128xf32>
    %342 = vector.broadcast %341 : vector<1x128xf32> to vector<2x128xf32>
    %343 = arith.mulf %337, %342 : vector<2x128xf32>
    %344 = arith.addf %340, %343 : vector<2x128xf32>
    %345 = vector.extract_strided_slice %289 {offsets = [2, 0], sizes = [1, 128], strides = [1, 1]} : vector<8x128xf32> to vector<1x128xf32>
    %346 = vector.broadcast %345 : vector<1x128xf32> to vector<2x128xf32>
    %347 = arith.addf %344, %346 : vector<2x128xf32>
    %348 = vector.extract_strided_slice %347 {offsets = [0, 0], sizes = [2, 32], strides = [1, 1]} : vector<2x128xf32> to vector<2x32xf32>
    %349 = vector.extract_strided_slice %347 {offsets = [0, 32], sizes = [2, 32], strides = [1, 1]} : vector<2x128xf32> to vector<2x32xf32>
    %350 = vector.extract_strided_slice %347 {offsets = [0, 64], sizes = [2, 32], strides = [1, 1]} : vector<2x128xf32> to vector<2x32xf32>
    %351 = vector.extract_strided_slice %347 {offsets = [0, 96], sizes = [2, 32], strides = [1, 1]} : vector<2x128xf32> to vector<2x32xf32>
    %352 = arith.negf %348 : vector<2x32xf32>
    %353 = math.exp %352 : vector<2x32xf32>
    %cst_85 = arith.constant 1.000000e+00 : f32
    %354 = vector.broadcast %cst_85 : f32 to vector<2x32xf32>
    %355 = arith.addf %354, %353 : vector<2x32xf32>
    %356 = arith.divf %354, %355 : vector<2x32xf32>
    %357 = arith.mulf %356, %272 : vector<2x32xf32>
    %358 = arith.negf %349 : vector<2x32xf32>
    %359 = math.exp %358 : vector<2x32xf32>
    %cst_86 = arith.constant 1.000000e+00 : f32
    %360 = vector.broadcast %cst_86 : f32 to vector<2x32xf32>
    %361 = arith.addf %360, %359 : vector<2x32xf32>
    %362 = arith.divf %360, %361 : vector<2x32xf32>
    %363 = math.tanh %351 : vector<2x32xf32>
    %364 = arith.mulf %362, %363 : vector<2x32xf32>
    %365 = arith.addf %357, %364 : vector<2x32xf32>
    %366 = vector.extract_strided_slice %289 {offsets = [3, 0], sizes = [1, 32], strides = [1, 1]} : vector<8x128xf32> to vector<1x32xf32>
    %367 = vector.broadcast %366 : vector<1x32xf32> to vector<2x32xf32>
    %368 = arith.mulf %365, %367 : vector<2x32xf32>
    %369 = vector.extract_strided_slice %289 {offsets = [4, 0], sizes = [1, 32], strides = [1, 1]} : vector<8x128xf32> to vector<1x32xf32>
    %370 = vector.broadcast %369 : vector<1x32xf32> to vector<2x32xf32>
    %371 = arith.addf %368, %370 : vector<2x32xf32>
    %372 = arith.negf %350 : vector<2x32xf32>
    %373 = math.exp %372 : vector<2x32xf32>
    %cst_87 = arith.constant 1.000000e+00 : f32
    %374 = vector.broadcast %cst_87 : f32 to vector<2x32xf32>
    %375 = arith.addf %374, %373 : vector<2x32xf32>
    %376 = arith.divf %374, %375 : vector<2x32xf32>
    %377 = math.tanh %371 : vector<2x32xf32>
    %378 = arith.mulf %376, %377 : vector<2x32xf32>
    %c4 = arith.constant 4 : index
    %c0_88 = arith.constant 0 : index
    %c0_89 = arith.constant 0 : index
    %379 = vector.load %arg3[%c4, %c0_88, %c0_89] : memref<8x8x128xf32, #tpu.memory_space<vmem>>, vector<1x8x128xf32>
    %380 = vector.shape_cast %379 : vector<1x8x128xf32> to vector<8x128xf32>
    %c4_90 = arith.constant 4 : index
    %c0_91 = arith.constant 0 : index
    %c0_92 = arith.constant 0 : index
    %381 = vector.load %arg6[%c4_90, %c0_91, %c0_92] : memref<8x8x128xf32, #tpu.memory_space<vmem>>, vector<1x8x128xf32>
    %382 = vector.shape_cast %381 : vector<1x8x128xf32> to vector<8x128xf32>
    %383 = vector.extract_strided_slice %2 {offsets = [8, 0], sizes = [2, 128], strides = [1, 1]} : vector<16x128xf32> to vector<2x128xf32>
    %c0_93 = arith.constant 0 : index
    %c0_94 = arith.constant 0 : index
    %384 = vector.load %arg2[%c0_93, %c0_94] : memref<32x128xf32, #tpu.memory_space<vmem>>, vector<32x128xf32>
    %cst_95 = arith.constant dense<0.000000e+00> : vector<2x128xf32>
    %385 = tpu.matmul %333, %384, %cst_95 {dimension_numbers = #tpu.dot_dimension_numbers<[1], [0], [0], [1], [0, 0, 1, 1], [], []>} : vector<2x32xf32>, vector<32x128xf32>, vector<2x128xf32> -> vector<2x128xf32>
    %386 = vector.extract_strided_slice %380 {offsets = [0, 0], sizes = [1, 128], strides = [1, 1]} : vector<8x128xf32> to vector<1x128xf32>
    %387 = vector.broadcast %386 : vector<1x128xf32> to vector<2x128xf32>
    %388 = arith.mulf %383, %387 : vector<2x128xf32>
    %389 = vector.extract_strided_slice %380 {offsets = [1, 0], sizes = [1, 128], strides = [1, 1]} : vector<8x128xf32> to vector<1x128xf32>
    %390 = vector.broadcast %389 : vector<1x128xf32> to vector<2x128xf32>
    %391 = arith.mulf %385, %390 : vector<2x128xf32>
    %392 = arith.addf %388, %391 : vector<2x128xf32>
    %393 = vector.extract_strided_slice %380 {offsets = [2, 0], sizes = [1, 128], strides = [1, 1]} : vector<8x128xf32> to vector<1x128xf32>
    %394 = vector.broadcast %393 : vector<1x128xf32> to vector<2x128xf32>
    %395 = arith.addf %392, %394 : vector<2x128xf32>
    %396 = vector.extract_strided_slice %395 {offsets = [0, 0], sizes = [2, 32], strides = [1, 1]} : vector<2x128xf32> to vector<2x32xf32>
    %397 = vector.extract_strided_slice %395 {offsets = [0, 32], sizes = [2, 32], strides = [1, 1]} : vector<2x128xf32> to vector<2x32xf32>
    %398 = vector.extract_strided_slice %395 {offsets = [0, 64], sizes = [2, 32], strides = [1, 1]} : vector<2x128xf32> to vector<2x32xf32>
    %399 = vector.extract_strided_slice %395 {offsets = [0, 96], sizes = [2, 32], strides = [1, 1]} : vector<2x128xf32> to vector<2x32xf32>
    %400 = arith.negf %396 : vector<2x32xf32>
    %401 = math.exp %400 : vector<2x32xf32>
    %cst_96 = arith.constant 1.000000e+00 : f32
    %402 = vector.broadcast %cst_96 : f32 to vector<2x32xf32>
    %403 = arith.addf %402, %401 : vector<2x32xf32>
    %404 = arith.divf %402, %403 : vector<2x32xf32>
    %405 = arith.mulf %404, %320 : vector<2x32xf32>
    %406 = arith.negf %397 : vector<2x32xf32>
    %407 = math.exp %406 : vector<2x32xf32>
    %cst_97 = arith.constant 1.000000e+00 : f32
    %408 = vector.broadcast %cst_97 : f32 to vector<2x32xf32>
    %409 = arith.addf %408, %407 : vector<2x32xf32>
    %410 = arith.divf %408, %409 : vector<2x32xf32>
    %411 = math.tanh %399 : vector<2x32xf32>
    %412 = arith.mulf %410, %411 : vector<2x32xf32>
    %413 = arith.addf %405, %412 : vector<2x32xf32>
    %414 = vector.extract_strided_slice %380 {offsets = [3, 0], sizes = [1, 32], strides = [1, 1]} : vector<8x128xf32> to vector<1x32xf32>
    %415 = vector.broadcast %414 : vector<1x32xf32> to vector<2x32xf32>
    %416 = arith.mulf %413, %415 : vector<2x32xf32>
    %417 = vector.extract_strided_slice %380 {offsets = [4, 0], sizes = [1, 32], strides = [1, 1]} : vector<8x128xf32> to vector<1x32xf32>
    %418 = vector.broadcast %417 : vector<1x32xf32> to vector<2x32xf32>
    %419 = arith.addf %416, %418 : vector<2x32xf32>
    %420 = arith.negf %398 : vector<2x32xf32>
    %421 = math.exp %420 : vector<2x32xf32>
    %cst_98 = arith.constant 1.000000e+00 : f32
    %422 = vector.broadcast %cst_98 : f32 to vector<2x32xf32>
    %423 = arith.addf %422, %421 : vector<2x32xf32>
    %424 = arith.divf %422, %423 : vector<2x32xf32>
    %425 = math.tanh %419 : vector<2x32xf32>
    %426 = arith.mulf %424, %425 : vector<2x32xf32>
    %c0_99 = arith.constant 0 : index
    %c0_100 = arith.constant 0 : index
    %427 = vector.load %arg4[%c0_99, %c0_100] : memref<32x128xf32, #tpu.memory_space<vmem>>, vector<32x128xf32>
    %cst_101 = arith.constant dense<0.000000e+00> : vector<2x128xf32>
    %428 = tpu.matmul %426, %427, %cst_101 {dimension_numbers = #tpu.dot_dimension_numbers<[1], [0], [0], [1], [0, 0, 1, 1], [], []>} : vector<2x32xf32>, vector<32x128xf32>, vector<2x128xf32> -> vector<2x128xf32>
    %c0_102 = arith.constant 0 : index
    %c0_103 = arith.constant 0 : index
    %429 = vector.load %arg5[%c0_102, %c0_103] : memref<32x128xf32, #tpu.memory_space<vmem>>, vector<32x128xf32>
    %cst_104 = arith.constant dense<0.000000e+00> : vector<2x128xf32>
    %430 = tpu.matmul %378, %429, %cst_104 {dimension_numbers = #tpu.dot_dimension_numbers<[1], [0], [0], [1], [0, 0, 1, 1], [], []>} : vector<2x32xf32>, vector<32x128xf32>, vector<2x128xf32> -> vector<2x128xf32>
    %431 = vector.extract_strided_slice %382 {offsets = [0, 0], sizes = [1, 128], strides = [1, 1]} : vector<8x128xf32> to vector<1x128xf32>
    %432 = vector.broadcast %431 : vector<1x128xf32> to vector<2x128xf32>
    %433 = arith.mulf %428, %432 : vector<2x128xf32>
    %434 = vector.extract_strided_slice %382 {offsets = [1, 0], sizes = [1, 128], strides = [1, 1]} : vector<8x128xf32> to vector<1x128xf32>
    %435 = vector.broadcast %434 : vector<1x128xf32> to vector<2x128xf32>
    %436 = arith.mulf %430, %435 : vector<2x128xf32>
    %437 = arith.addf %433, %436 : vector<2x128xf32>
    %438 = vector.extract_strided_slice %382 {offsets = [2, 0], sizes = [1, 128], strides = [1, 1]} : vector<8x128xf32> to vector<1x128xf32>
    %439 = vector.broadcast %438 : vector<1x128xf32> to vector<2x128xf32>
    %440 = arith.addf %437, %439 : vector<2x128xf32>
    %441 = vector.extract_strided_slice %440 {offsets = [0, 0], sizes = [2, 32], strides = [1, 1]} : vector<2x128xf32> to vector<2x32xf32>
    %442 = vector.extract_strided_slice %440 {offsets = [0, 32], sizes = [2, 32], strides = [1, 1]} : vector<2x128xf32> to vector<2x32xf32>
    %443 = vector.extract_strided_slice %440 {offsets = [0, 64], sizes = [2, 32], strides = [1, 1]} : vector<2x128xf32> to vector<2x32xf32>
    %444 = vector.extract_strided_slice %440 {offsets = [0, 96], sizes = [2, 32], strides = [1, 1]} : vector<2x128xf32> to vector<2x32xf32>
    %445 = arith.negf %441 : vector<2x32xf32>
    %446 = math.exp %445 : vector<2x32xf32>
    %cst_105 = arith.constant 1.000000e+00 : f32
    %447 = vector.broadcast %cst_105 : f32 to vector<2x32xf32>
    %448 = arith.addf %447, %446 : vector<2x32xf32>
    %449 = arith.divf %447, %448 : vector<2x32xf32>
    %450 = arith.mulf %449, %365 : vector<2x32xf32>
    %451 = arith.negf %442 : vector<2x32xf32>
    %452 = math.exp %451 : vector<2x32xf32>
    %cst_106 = arith.constant 1.000000e+00 : f32
    %453 = vector.broadcast %cst_106 : f32 to vector<2x32xf32>
    %454 = arith.addf %453, %452 : vector<2x32xf32>
    %455 = arith.divf %453, %454 : vector<2x32xf32>
    %456 = math.tanh %444 : vector<2x32xf32>
    %457 = arith.mulf %455, %456 : vector<2x32xf32>
    %458 = arith.addf %450, %457 : vector<2x32xf32>
    %459 = vector.extract_strided_slice %382 {offsets = [3, 0], sizes = [1, 32], strides = [1, 1]} : vector<8x128xf32> to vector<1x32xf32>
    %460 = vector.broadcast %459 : vector<1x32xf32> to vector<2x32xf32>
    %461 = arith.mulf %458, %460 : vector<2x32xf32>
    %462 = vector.extract_strided_slice %382 {offsets = [4, 0], sizes = [1, 32], strides = [1, 1]} : vector<8x128xf32> to vector<1x32xf32>
    %463 = vector.broadcast %462 : vector<1x32xf32> to vector<2x32xf32>
    %464 = arith.addf %461, %463 : vector<2x32xf32>
    %465 = arith.negf %443 : vector<2x32xf32>
    %466 = math.exp %465 : vector<2x32xf32>
    %cst_107 = arith.constant 1.000000e+00 : f32
    %467 = vector.broadcast %cst_107 : f32 to vector<2x32xf32>
    %468 = arith.addf %467, %466 : vector<2x32xf32>
    %469 = arith.divf %467, %468 : vector<2x32xf32>
    %470 = math.tanh %464 : vector<2x32xf32>
    %471 = arith.mulf %469, %470 : vector<2x32xf32>
    %c5 = arith.constant 5 : index
    %c0_108 = arith.constant 0 : index
    %c0_109 = arith.constant 0 : index
    %472 = vector.load %arg3[%c5, %c0_108, %c0_109] : memref<8x8x128xf32, #tpu.memory_space<vmem>>, vector<1x8x128xf32>
    %473 = vector.shape_cast %472 : vector<1x8x128xf32> to vector<8x128xf32>
    %c5_110 = arith.constant 5 : index
    %c0_111 = arith.constant 0 : index
    %c0_112 = arith.constant 0 : index
    %474 = vector.load %arg6[%c5_110, %c0_111, %c0_112] : memref<8x8x128xf32, #tpu.memory_space<vmem>>, vector<1x8x128xf32>
    %475 = vector.shape_cast %474 : vector<1x8x128xf32> to vector<8x128xf32>
    %476 = vector.extract_strided_slice %2 {offsets = [10, 0], sizes = [2, 128], strides = [1, 1]} : vector<16x128xf32> to vector<2x128xf32>
    %c0_113 = arith.constant 0 : index
    %c0_114 = arith.constant 0 : index
    %477 = vector.load %arg2[%c0_113, %c0_114] : memref<32x128xf32, #tpu.memory_space<vmem>>, vector<32x128xf32>
    %cst_115 = arith.constant dense<0.000000e+00> : vector<2x128xf32>
    %478 = tpu.matmul %426, %477, %cst_115 {dimension_numbers = #tpu.dot_dimension_numbers<[1], [0], [0], [1], [0, 0, 1, 1], [], []>} : vector<2x32xf32>, vector<32x128xf32>, vector<2x128xf32> -> vector<2x128xf32>
    %479 = vector.extract_strided_slice %473 {offsets = [0, 0], sizes = [1, 128], strides = [1, 1]} : vector<8x128xf32> to vector<1x128xf32>
    %480 = vector.broadcast %479 : vector<1x128xf32> to vector<2x128xf32>
    %481 = arith.mulf %476, %480 : vector<2x128xf32>
    %482 = vector.extract_strided_slice %473 {offsets = [1, 0], sizes = [1, 128], strides = [1, 1]} : vector<8x128xf32> to vector<1x128xf32>
    %483 = vector.broadcast %482 : vector<1x128xf32> to vector<2x128xf32>
    %484 = arith.mulf %478, %483 : vector<2x128xf32>
    %485 = arith.addf %481, %484 : vector<2x128xf32>
    %486 = vector.extract_strided_slice %473 {offsets = [2, 0], sizes = [1, 128], strides = [1, 1]} : vector<8x128xf32> to vector<1x128xf32>
    %487 = vector.broadcast %486 : vector<1x128xf32> to vector<2x128xf32>
    %488 = arith.addf %485, %487 : vector<2x128xf32>
    %489 = vector.extract_strided_slice %488 {offsets = [0, 0], sizes = [2, 32], strides = [1, 1]} : vector<2x128xf32> to vector<2x32xf32>
    %490 = vector.extract_strided_slice %488 {offsets = [0, 32], sizes = [2, 32], strides = [1, 1]} : vector<2x128xf32> to vector<2x32xf32>
    %491 = vector.extract_strided_slice %488 {offsets = [0, 64], sizes = [2, 32], strides = [1, 1]} : vector<2x128xf32> to vector<2x32xf32>
    %492 = vector.extract_strided_slice %488 {offsets = [0, 96], sizes = [2, 32], strides = [1, 1]} : vector<2x128xf32> to vector<2x32xf32>
    %493 = arith.negf %489 : vector<2x32xf32>
    %494 = math.exp %493 : vector<2x32xf32>
    %cst_116 = arith.constant 1.000000e+00 : f32
    %495 = vector.broadcast %cst_116 : f32 to vector<2x32xf32>
    %496 = arith.addf %495, %494 : vector<2x32xf32>
    %497 = arith.divf %495, %496 : vector<2x32xf32>
    %498 = arith.mulf %497, %413 : vector<2x32xf32>
    %499 = arith.negf %490 : vector<2x32xf32>
    %500 = math.exp %499 : vector<2x32xf32>
    %cst_117 = arith.constant 1.000000e+00 : f32
    %501 = vector.broadcast %cst_117 : f32 to vector<2x32xf32>
    %502 = arith.addf %501, %500 : vector<2x32xf32>
    %503 = arith.divf %501, %502 : vector<2x32xf32>
    %504 = math.tanh %492 : vector<2x32xf32>
    %505 = arith.mulf %503, %504 : vector<2x32xf32>
    %506 = arith.addf %498, %505 : vector<2x32xf32>
    %507 = vector.extract_strided_slice %473 {offsets = [3, 0], sizes = [1, 32], strides = [1, 1]} : vector<8x128xf32> to vector<1x32xf32>
    %508 = vector.broadcast %507 : vector<1x32xf32> to vector<2x32xf32>
    %509 = arith.mulf %506, %508 : vector<2x32xf32>
    %510 = vector.extract_strided_slice %473 {offsets = [4, 0], sizes = [1, 32], strides = [1, 1]} : vector<8x128xf32> to vector<1x32xf32>
    %511 = vector.broadcast %510 : vector<1x32xf32> to vector<2x32xf32>
    %512 = arith.addf %509, %511 : vector<2x32xf32>
    %513 = arith.negf %491 : vector<2x32xf32>
    %514 = math.exp %513 : vector<2x32xf32>
    %cst_118 = arith.constant 1.000000e+00 : f32
    %515 = vector.broadcast %cst_118 : f32 to vector<2x32xf32>
    %516 = arith.addf %515, %514 : vector<2x32xf32>
    %517 = arith.divf %515, %516 : vector<2x32xf32>
    %518 = math.tanh %512 : vector<2x32xf32>
    %519 = arith.mulf %517, %518 : vector<2x32xf32>
    %c0_119 = arith.constant 0 : index
    %c0_120 = arith.constant 0 : index
    %520 = vector.load %arg4[%c0_119, %c0_120] : memref<32x128xf32, #tpu.memory_space<vmem>>, vector<32x128xf32>
    %cst_121 = arith.constant dense<0.000000e+00> : vector<2x128xf32>
    %521 = tpu.matmul %519, %520, %cst_121 {dimension_numbers = #tpu.dot_dimension_numbers<[1], [0], [0], [1], [0, 0, 1, 1], [], []>} : vector<2x32xf32>, vector<32x128xf32>, vector<2x128xf32> -> vector<2x128xf32>
    %c0_122 = arith.constant 0 : index
    %c0_123 = arith.constant 0 : index
    %522 = vector.load %arg5[%c0_122, %c0_123] : memref<32x128xf32, #tpu.memory_space<vmem>>, vector<32x128xf32>
    %cst_124 = arith.constant dense<0.000000e+00> : vector<2x128xf32>
    %523 = tpu.matmul %471, %522, %cst_124 {dimension_numbers = #tpu.dot_dimension_numbers<[1], [0], [0], [1], [0, 0, 1, 1], [], []>} : vector<2x32xf32>, vector<32x128xf32>, vector<2x128xf32> -> vector<2x128xf32>
    %524 = vector.extract_strided_slice %475 {offsets = [0, 0], sizes = [1, 128], strides = [1, 1]} : vector<8x128xf32> to vector<1x128xf32>
    %525 = vector.broadcast %524 : vector<1x128xf32> to vector<2x128xf32>
    %526 = arith.mulf %521, %525 : vector<2x128xf32>
    %527 = vector.extract_strided_slice %475 {offsets = [1, 0], sizes = [1, 128], strides = [1, 1]} : vector<8x128xf32> to vector<1x128xf32>
    %528 = vector.broadcast %527 : vector<1x128xf32> to vector<2x128xf32>
    %529 = arith.mulf %523, %528 : vector<2x128xf32>
    %530 = arith.addf %526, %529 : vector<2x128xf32>
    %531 = vector.extract_strided_slice %475 {offsets = [2, 0], sizes = [1, 128], strides = [1, 1]} : vector<8x128xf32> to vector<1x128xf32>
    %532 = vector.broadcast %531 : vector<1x128xf32> to vector<2x128xf32>
    %533 = arith.addf %530, %532 : vector<2x128xf32>
    %534 = vector.extract_strided_slice %533 {offsets = [0, 0], sizes = [2, 32], strides = [1, 1]} : vector<2x128xf32> to vector<2x32xf32>
    %535 = vector.extract_strided_slice %533 {offsets = [0, 32], sizes = [2, 32], strides = [1, 1]} : vector<2x128xf32> to vector<2x32xf32>
    %536 = vector.extract_strided_slice %533 {offsets = [0, 64], sizes = [2, 32], strides = [1, 1]} : vector<2x128xf32> to vector<2x32xf32>
    %537 = vector.extract_strided_slice %533 {offsets = [0, 96], sizes = [2, 32], strides = [1, 1]} : vector<2x128xf32> to vector<2x32xf32>
    %538 = arith.negf %534 : vector<2x32xf32>
    %539 = math.exp %538 : vector<2x32xf32>
    %cst_125 = arith.constant 1.000000e+00 : f32
    %540 = vector.broadcast %cst_125 : f32 to vector<2x32xf32>
    %541 = arith.addf %540, %539 : vector<2x32xf32>
    %542 = arith.divf %540, %541 : vector<2x32xf32>
    %543 = arith.mulf %542, %458 : vector<2x32xf32>
    %544 = arith.negf %535 : vector<2x32xf32>
    %545 = math.exp %544 : vector<2x32xf32>
    %cst_126 = arith.constant 1.000000e+00 : f32
    %546 = vector.broadcast %cst_126 : f32 to vector<2x32xf32>
    %547 = arith.addf %546, %545 : vector<2x32xf32>
    %548 = arith.divf %546, %547 : vector<2x32xf32>
    %549 = math.tanh %537 : vector<2x32xf32>
    %550 = arith.mulf %548, %549 : vector<2x32xf32>
    %551 = arith.addf %543, %550 : vector<2x32xf32>
    %552 = vector.extract_strided_slice %475 {offsets = [3, 0], sizes = [1, 32], strides = [1, 1]} : vector<8x128xf32> to vector<1x32xf32>
    %553 = vector.broadcast %552 : vector<1x32xf32> to vector<2x32xf32>
    %554 = arith.mulf %551, %553 : vector<2x32xf32>
    %555 = vector.extract_strided_slice %475 {offsets = [4, 0], sizes = [1, 32], strides = [1, 1]} : vector<8x128xf32> to vector<1x32xf32>
    %556 = vector.broadcast %555 : vector<1x32xf32> to vector<2x32xf32>
    %557 = arith.addf %554, %556 : vector<2x32xf32>
    %558 = arith.negf %536 : vector<2x32xf32>
    %559 = math.exp %558 : vector<2x32xf32>
    %cst_127 = arith.constant 1.000000e+00 : f32
    %560 = vector.broadcast %cst_127 : f32 to vector<2x32xf32>
    %561 = arith.addf %560, %559 : vector<2x32xf32>
    %562 = arith.divf %560, %561 : vector<2x32xf32>
    %563 = math.tanh %557 : vector<2x32xf32>
    %564 = arith.mulf %562, %563 : vector<2x32xf32>
    %c6 = arith.constant 6 : index
    %c0_128 = arith.constant 0 : index
    %c0_129 = arith.constant 0 : index
    %565 = vector.load %arg3[%c6, %c0_128, %c0_129] : memref<8x8x128xf32, #tpu.memory_space<vmem>>, vector<1x8x128xf32>
    %566 = vector.shape_cast %565 : vector<1x8x128xf32> to vector<8x128xf32>
    %c6_130 = arith.constant 6 : index
    %c0_131 = arith.constant 0 : index
    %c0_132 = arith.constant 0 : index
    %567 = vector.load %arg6[%c6_130, %c0_131, %c0_132] : memref<8x8x128xf32, #tpu.memory_space<vmem>>, vector<1x8x128xf32>
    %568 = vector.shape_cast %567 : vector<1x8x128xf32> to vector<8x128xf32>
    %569 = vector.extract_strided_slice %2 {offsets = [12, 0], sizes = [2, 128], strides = [1, 1]} : vector<16x128xf32> to vector<2x128xf32>
    %c0_133 = arith.constant 0 : index
    %c0_134 = arith.constant 0 : index
    %570 = vector.load %arg2[%c0_133, %c0_134] : memref<32x128xf32, #tpu.memory_space<vmem>>, vector<32x128xf32>
    %cst_135 = arith.constant dense<0.000000e+00> : vector<2x128xf32>
    %571 = tpu.matmul %519, %570, %cst_135 {dimension_numbers = #tpu.dot_dimension_numbers<[1], [0], [0], [1], [0, 0, 1, 1], [], []>} : vector<2x32xf32>, vector<32x128xf32>, vector<2x128xf32> -> vector<2x128xf32>
    %572 = vector.extract_strided_slice %566 {offsets = [0, 0], sizes = [1, 128], strides = [1, 1]} : vector<8x128xf32> to vector<1x128xf32>
    %573 = vector.broadcast %572 : vector<1x128xf32> to vector<2x128xf32>
    %574 = arith.mulf %569, %573 : vector<2x128xf32>
    %575 = vector.extract_strided_slice %566 {offsets = [1, 0], sizes = [1, 128], strides = [1, 1]} : vector<8x128xf32> to vector<1x128xf32>
    %576 = vector.broadcast %575 : vector<1x128xf32> to vector<2x128xf32>
    %577 = arith.mulf %571, %576 : vector<2x128xf32>
    %578 = arith.addf %574, %577 : vector<2x128xf32>
    %579 = vector.extract_strided_slice %566 {offsets = [2, 0], sizes = [1, 128], strides = [1, 1]} : vector<8x128xf32> to vector<1x128xf32>
    %580 = vector.broadcast %579 : vector<1x128xf32> to vector<2x128xf32>
    %581 = arith.addf %578, %580 : vector<2x128xf32>
    %582 = vector.extract_strided_slice %581 {offsets = [0, 0], sizes = [2, 32], strides = [1, 1]} : vector<2x128xf32> to vector<2x32xf32>
    %583 = vector.extract_strided_slice %581 {offsets = [0, 32], sizes = [2, 32], strides = [1, 1]} : vector<2x128xf32> to vector<2x32xf32>
    %584 = vector.extract_strided_slice %581 {offsets = [0, 64], sizes = [2, 32], strides = [1, 1]} : vector<2x128xf32> to vector<2x32xf32>
    %585 = vector.extract_strided_slice %581 {offsets = [0, 96], sizes = [2, 32], strides = [1, 1]} : vector<2x128xf32> to vector<2x32xf32>
    %586 = arith.negf %582 : vector<2x32xf32>
    %587 = math.exp %586 : vector<2x32xf32>
    %cst_136 = arith.constant 1.000000e+00 : f32
    %588 = vector.broadcast %cst_136 : f32 to vector<2x32xf32>
    %589 = arith.addf %588, %587 : vector<2x32xf32>
    %590 = arith.divf %588, %589 : vector<2x32xf32>
    %591 = arith.mulf %590, %506 : vector<2x32xf32>
    %592 = arith.negf %583 : vector<2x32xf32>
    %593 = math.exp %592 : vector<2x32xf32>
    %cst_137 = arith.constant 1.000000e+00 : f32
    %594 = vector.broadcast %cst_137 : f32 to vector<2x32xf32>
    %595 = arith.addf %594, %593 : vector<2x32xf32>
    %596 = arith.divf %594, %595 : vector<2x32xf32>
    %597 = math.tanh %585 : vector<2x32xf32>
    %598 = arith.mulf %596, %597 : vector<2x32xf32>
    %599 = arith.addf %591, %598 : vector<2x32xf32>
    %600 = vector.extract_strided_slice %566 {offsets = [3, 0], sizes = [1, 32], strides = [1, 1]} : vector<8x128xf32> to vector<1x32xf32>
    %601 = vector.broadcast %600 : vector<1x32xf32> to vector<2x32xf32>
    %602 = arith.mulf %599, %601 : vector<2x32xf32>
    %603 = vector.extract_strided_slice %566 {offsets = [4, 0], sizes = [1, 32], strides = [1, 1]} : vector<8x128xf32> to vector<1x32xf32>
    %604 = vector.broadcast %603 : vector<1x32xf32> to vector<2x32xf32>
    %605 = arith.addf %602, %604 : vector<2x32xf32>
    %606 = arith.negf %584 : vector<2x32xf32>
    %607 = math.exp %606 : vector<2x32xf32>
    %cst_138 = arith.constant 1.000000e+00 : f32
    %608 = vector.broadcast %cst_138 : f32 to vector<2x32xf32>
    %609 = arith.addf %608, %607 : vector<2x32xf32>
    %610 = arith.divf %608, %609 : vector<2x32xf32>
    %611 = math.tanh %605 : vector<2x32xf32>
    %612 = arith.mulf %610, %611 : vector<2x32xf32>
    %c0_139 = arith.constant 0 : index
    %c0_140 = arith.constant 0 : index
    %613 = vector.load %arg4[%c0_139, %c0_140] : memref<32x128xf32, #tpu.memory_space<vmem>>, vector<32x128xf32>
    %cst_141 = arith.constant dense<0.000000e+00> : vector<2x128xf32>
    %614 = tpu.matmul %612, %613, %cst_141 {dimension_numbers = #tpu.dot_dimension_numbers<[1], [0], [0], [1], [0, 0, 1, 1], [], []>} : vector<2x32xf32>, vector<32x128xf32>, vector<2x128xf32> -> vector<2x128xf32>
    %c0_142 = arith.constant 0 : index
    %c0_143 = arith.constant 0 : index
    %615 = vector.load %arg5[%c0_142, %c0_143] : memref<32x128xf32, #tpu.memory_space<vmem>>, vector<32x128xf32>
    %cst_144 = arith.constant dense<0.000000e+00> : vector<2x128xf32>
    %616 = tpu.matmul %564, %615, %cst_144 {dimension_numbers = #tpu.dot_dimension_numbers<[1], [0], [0], [1], [0, 0, 1, 1], [], []>} : vector<2x32xf32>, vector<32x128xf32>, vector<2x128xf32> -> vector<2x128xf32>
    %617 = vector.extract_strided_slice %568 {offsets = [0, 0], sizes = [1, 128], strides = [1, 1]} : vector<8x128xf32> to vector<1x128xf32>
    %618 = vector.broadcast %617 : vector<1x128xf32> to vector<2x128xf32>
    %619 = arith.mulf %614, %618 : vector<2x128xf32>
    %620 = vector.extract_strided_slice %568 {offsets = [1, 0], sizes = [1, 128], strides = [1, 1]} : vector<8x128xf32> to vector<1x128xf32>
    %621 = vector.broadcast %620 : vector<1x128xf32> to vector<2x128xf32>
    %622 = arith.mulf %616, %621 : vector<2x128xf32>
    %623 = arith.addf %619, %622 : vector<2x128xf32>
    %624 = vector.extract_strided_slice %568 {offsets = [2, 0], sizes = [1, 128], strides = [1, 1]} : vector<8x128xf32> to vector<1x128xf32>
    %625 = vector.broadcast %624 : vector<1x128xf32> to vector<2x128xf32>
    %626 = arith.addf %623, %625 : vector<2x128xf32>
    %627 = vector.extract_strided_slice %626 {offsets = [0, 0], sizes = [2, 32], strides = [1, 1]} : vector<2x128xf32> to vector<2x32xf32>
    %628 = vector.extract_strided_slice %626 {offsets = [0, 32], sizes = [2, 32], strides = [1, 1]} : vector<2x128xf32> to vector<2x32xf32>
    %629 = vector.extract_strided_slice %626 {offsets = [0, 64], sizes = [2, 32], strides = [1, 1]} : vector<2x128xf32> to vector<2x32xf32>
    %630 = vector.extract_strided_slice %626 {offsets = [0, 96], sizes = [2, 32], strides = [1, 1]} : vector<2x128xf32> to vector<2x32xf32>
    %631 = arith.negf %627 : vector<2x32xf32>
    %632 = math.exp %631 : vector<2x32xf32>
    %cst_145 = arith.constant 1.000000e+00 : f32
    %633 = vector.broadcast %cst_145 : f32 to vector<2x32xf32>
    %634 = arith.addf %633, %632 : vector<2x32xf32>
    %635 = arith.divf %633, %634 : vector<2x32xf32>
    %636 = arith.mulf %635, %551 : vector<2x32xf32>
    %637 = arith.negf %628 : vector<2x32xf32>
    %638 = math.exp %637 : vector<2x32xf32>
    %cst_146 = arith.constant 1.000000e+00 : f32
    %639 = vector.broadcast %cst_146 : f32 to vector<2x32xf32>
    %640 = arith.addf %639, %638 : vector<2x32xf32>
    %641 = arith.divf %639, %640 : vector<2x32xf32>
    %642 = math.tanh %630 : vector<2x32xf32>
    %643 = arith.mulf %641, %642 : vector<2x32xf32>
    %644 = arith.addf %636, %643 : vector<2x32xf32>
    %645 = vector.extract_strided_slice %568 {offsets = [3, 0], sizes = [1, 32], strides = [1, 1]} : vector<8x128xf32> to vector<1x32xf32>
    %646 = vector.broadcast %645 : vector<1x32xf32> to vector<2x32xf32>
    %647 = arith.mulf %644, %646 : vector<2x32xf32>
    %648 = vector.extract_strided_slice %568 {offsets = [4, 0], sizes = [1, 32], strides = [1, 1]} : vector<8x128xf32> to vector<1x32xf32>
    %649 = vector.broadcast %648 : vector<1x32xf32> to vector<2x32xf32>
    %650 = arith.addf %647, %649 : vector<2x32xf32>
    %651 = arith.negf %629 : vector<2x32xf32>
    %652 = math.exp %651 : vector<2x32xf32>
    %cst_147 = arith.constant 1.000000e+00 : f32
    %653 = vector.broadcast %cst_147 : f32 to vector<2x32xf32>
    %654 = arith.addf %653, %652 : vector<2x32xf32>
    %655 = arith.divf %653, %654 : vector<2x32xf32>
    %656 = math.tanh %650 : vector<2x32xf32>
    %657 = arith.mulf %655, %656 : vector<2x32xf32>
    %c7 = arith.constant 7 : index
    %c0_148 = arith.constant 0 : index
    %c0_149 = arith.constant 0 : index
    %658 = vector.load %arg3[%c7, %c0_148, %c0_149] : memref<8x8x128xf32, #tpu.memory_space<vmem>>, vector<1x8x128xf32>
    %659 = vector.shape_cast %658 : vector<1x8x128xf32> to vector<8x128xf32>
    %c7_150 = arith.constant 7 : index
    %c0_151 = arith.constant 0 : index
    %c0_152 = arith.constant 0 : index
    %660 = vector.load %arg6[%c7_150, %c0_151, %c0_152] : memref<8x8x128xf32, #tpu.memory_space<vmem>>, vector<1x8x128xf32>
    %661 = vector.shape_cast %660 : vector<1x8x128xf32> to vector<8x128xf32>
    %662 = vector.extract_strided_slice %2 {offsets = [14, 0], sizes = [2, 128], strides = [1, 1]} : vector<16x128xf32> to vector<2x128xf32>
    %c0_153 = arith.constant 0 : index
    %c0_154 = arith.constant 0 : index
    %663 = vector.load %arg2[%c0_153, %c0_154] : memref<32x128xf32, #tpu.memory_space<vmem>>, vector<32x128xf32>
    %cst_155 = arith.constant dense<0.000000e+00> : vector<2x128xf32>
    %664 = tpu.matmul %612, %663, %cst_155 {dimension_numbers = #tpu.dot_dimension_numbers<[1], [0], [0], [1], [0, 0, 1, 1], [], []>} : vector<2x32xf32>, vector<32x128xf32>, vector<2x128xf32> -> vector<2x128xf32>
    %665 = vector.extract_strided_slice %659 {offsets = [0, 0], sizes = [1, 128], strides = [1, 1]} : vector<8x128xf32> to vector<1x128xf32>
    %666 = vector.broadcast %665 : vector<1x128xf32> to vector<2x128xf32>
    %667 = arith.mulf %662, %666 : vector<2x128xf32>
    %668 = vector.extract_strided_slice %659 {offsets = [1, 0], sizes = [1, 128], strides = [1, 1]} : vector<8x128xf32> to vector<1x128xf32>
    %669 = vector.broadcast %668 : vector<1x128xf32> to vector<2x128xf32>
    %670 = arith.mulf %664, %669 : vector<2x128xf32>
    %671 = arith.addf %667, %670 : vector<2x128xf32>
    %672 = vector.extract_strided_slice %659 {offsets = [2, 0], sizes = [1, 128], strides = [1, 1]} : vector<8x128xf32> to vector<1x128xf32>
    %673 = vector.broadcast %672 : vector<1x128xf32> to vector<2x128xf32>
    %674 = arith.addf %671, %673 : vector<2x128xf32>
    %675 = vector.extract_strided_slice %674 {offsets = [0, 0], sizes = [2, 32], strides = [1, 1]} : vector<2x128xf32> to vector<2x32xf32>
    %676 = vector.extract_strided_slice %674 {offsets = [0, 32], sizes = [2, 32], strides = [1, 1]} : vector<2x128xf32> to vector<2x32xf32>
    %677 = vector.extract_strided_slice %674 {offsets = [0, 64], sizes = [2, 32], strides = [1, 1]} : vector<2x128xf32> to vector<2x32xf32>
    %678 = vector.extract_strided_slice %674 {offsets = [0, 96], sizes = [2, 32], strides = [1, 1]} : vector<2x128xf32> to vector<2x32xf32>
    %679 = arith.negf %675 : vector<2x32xf32>
    %680 = math.exp %679 : vector<2x32xf32>
    %cst_156 = arith.constant 1.000000e+00 : f32
    %681 = vector.broadcast %cst_156 : f32 to vector<2x32xf32>
    %682 = arith.addf %681, %680 : vector<2x32xf32>
    %683 = arith.divf %681, %682 : vector<2x32xf32>
    %684 = arith.mulf %683, %599 : vector<2x32xf32>
    %685 = arith.negf %676 : vector<2x32xf32>
    %686 = math.exp %685 : vector<2x32xf32>
    %cst_157 = arith.constant 1.000000e+00 : f32
    %687 = vector.broadcast %cst_157 : f32 to vector<2x32xf32>
    %688 = arith.addf %687, %686 : vector<2x32xf32>
    %689 = arith.divf %687, %688 : vector<2x32xf32>
    %690 = math.tanh %678 : vector<2x32xf32>
    %691 = arith.mulf %689, %690 : vector<2x32xf32>
    %692 = arith.addf %684, %691 : vector<2x32xf32>
    %693 = vector.extract_strided_slice %659 {offsets = [3, 0], sizes = [1, 32], strides = [1, 1]} : vector<8x128xf32> to vector<1x32xf32>
    %694 = vector.broadcast %693 : vector<1x32xf32> to vector<2x32xf32>
    %695 = arith.mulf %692, %694 : vector<2x32xf32>
    %696 = vector.extract_strided_slice %659 {offsets = [4, 0], sizes = [1, 32], strides = [1, 1]} : vector<8x128xf32> to vector<1x32xf32>
    %697 = vector.broadcast %696 : vector<1x32xf32> to vector<2x32xf32>
    %698 = arith.addf %695, %697 : vector<2x32xf32>
    %699 = arith.negf %677 : vector<2x32xf32>
    %700 = math.exp %699 : vector<2x32xf32>
    %cst_158 = arith.constant 1.000000e+00 : f32
    %701 = vector.broadcast %cst_158 : f32 to vector<2x32xf32>
    %702 = arith.addf %701, %700 : vector<2x32xf32>
    %703 = arith.divf %701, %702 : vector<2x32xf32>
    %704 = math.tanh %698 : vector<2x32xf32>
    %705 = arith.mulf %703, %704 : vector<2x32xf32>
    %c0_159 = arith.constant 0 : index
    %c0_160 = arith.constant 0 : index
    %706 = vector.load %arg4[%c0_159, %c0_160] : memref<32x128xf32, #tpu.memory_space<vmem>>, vector<32x128xf32>
    %cst_161 = arith.constant dense<0.000000e+00> : vector<2x128xf32>
    %707 = tpu.matmul %705, %706, %cst_161 {dimension_numbers = #tpu.dot_dimension_numbers<[1], [0], [0], [1], [0, 0, 1, 1], [], []>} : vector<2x32xf32>, vector<32x128xf32>, vector<2x128xf32> -> vector<2x128xf32>
    %c0_162 = arith.constant 0 : index
    %c0_163 = arith.constant 0 : index
    %708 = vector.load %arg5[%c0_162, %c0_163] : memref<32x128xf32, #tpu.memory_space<vmem>>, vector<32x128xf32>
    %cst_164 = arith.constant dense<0.000000e+00> : vector<2x128xf32>
    %709 = tpu.matmul %657, %708, %cst_164 {dimension_numbers = #tpu.dot_dimension_numbers<[1], [0], [0], [1], [0, 0, 1, 1], [], []>} : vector<2x32xf32>, vector<32x128xf32>, vector<2x128xf32> -> vector<2x128xf32>
    %710 = vector.extract_strided_slice %661 {offsets = [0, 0], sizes = [1, 128], strides = [1, 1]} : vector<8x128xf32> to vector<1x128xf32>
    %711 = vector.broadcast %710 : vector<1x128xf32> to vector<2x128xf32>
    %712 = arith.mulf %707, %711 : vector<2x128xf32>
    %713 = vector.extract_strided_slice %661 {offsets = [1, 0], sizes = [1, 128], strides = [1, 1]} : vector<8x128xf32> to vector<1x128xf32>
    %714 = vector.broadcast %713 : vector<1x128xf32> to vector<2x128xf32>
    %715 = arith.mulf %709, %714 : vector<2x128xf32>
    %716 = arith.addf %712, %715 : vector<2x128xf32>
    %717 = vector.extract_strided_slice %661 {offsets = [2, 0], sizes = [1, 128], strides = [1, 1]} : vector<8x128xf32> to vector<1x128xf32>
    %718 = vector.broadcast %717 : vector<1x128xf32> to vector<2x128xf32>
    %719 = arith.addf %716, %718 : vector<2x128xf32>
    %720 = vector.extract_strided_slice %719 {offsets = [0, 0], sizes = [2, 32], strides = [1, 1]} : vector<2x128xf32> to vector<2x32xf32>
    %721 = vector.extract_strided_slice %719 {offsets = [0, 32], sizes = [2, 32], strides = [1, 1]} : vector<2x128xf32> to vector<2x32xf32>
    %722 = vector.extract_strided_slice %719 {offsets = [0, 64], sizes = [2, 32], strides = [1, 1]} : vector<2x128xf32> to vector<2x32xf32>
    %723 = vector.extract_strided_slice %719 {offsets = [0, 96], sizes = [2, 32], strides = [1, 1]} : vector<2x128xf32> to vector<2x32xf32>
    %724 = arith.negf %720 : vector<2x32xf32>
    %725 = math.exp %724 : vector<2x32xf32>
    %cst_165 = arith.constant 1.000000e+00 : f32
    %726 = vector.broadcast %cst_165 : f32 to vector<2x32xf32>
    %727 = arith.addf %726, %725 : vector<2x32xf32>
    %728 = arith.divf %726, %727 : vector<2x32xf32>
    %729 = arith.mulf %728, %644 : vector<2x32xf32>
    %730 = arith.negf %721 : vector<2x32xf32>
    %731 = math.exp %730 : vector<2x32xf32>
    %cst_166 = arith.constant 1.000000e+00 : f32
    %732 = vector.broadcast %cst_166 : f32 to vector<2x32xf32>
    %733 = arith.addf %732, %731 : vector<2x32xf32>
    %734 = arith.divf %732, %733 : vector<2x32xf32>
    %735 = math.tanh %723 : vector<2x32xf32>
    %736 = arith.mulf %734, %735 : vector<2x32xf32>
    %737 = arith.addf %729, %736 : vector<2x32xf32>
    %738 = vector.extract_strided_slice %661 {offsets = [3, 0], sizes = [1, 32], strides = [1, 1]} : vector<8x128xf32> to vector<1x32xf32>
    %739 = vector.broadcast %738 : vector<1x32xf32> to vector<2x32xf32>
    %740 = arith.mulf %737, %739 : vector<2x32xf32>
    %741 = vector.extract_strided_slice %661 {offsets = [4, 0], sizes = [1, 32], strides = [1, 1]} : vector<8x128xf32> to vector<1x32xf32>
    %742 = vector.broadcast %741 : vector<1x32xf32> to vector<2x32xf32>
    %743 = arith.addf %740, %742 : vector<2x32xf32>
    %744 = arith.negf %722 : vector<2x32xf32>
    %745 = math.exp %744 : vector<2x32xf32>
    %cst_167 = arith.constant 1.000000e+00 : f32
    %746 = vector.broadcast %cst_167 : f32 to vector<2x32xf32>
    %747 = arith.addf %746, %745 : vector<2x32xf32>
    %748 = arith.divf %746, %747 : vector<2x32xf32>
    %749 = math.tanh %743 : vector<2x32xf32>
    %750 = arith.mulf %748, %749 : vector<2x32xf32>
    %c0_168 = arith.constant 0 : index
    %c0_169 = arith.constant 0 : index
    %751 = vector.load %arg7[%c0_168, %c0_169] : memref<32x8xf32, #tpu.memory_space<vmem>>, vector<32x8xf32>
    %cst_170 = arith.constant dense<0.000000e+00> : vector<2x8xf32>
    %752 = tpu.matmul %750, %751, %cst_170 {dimension_numbers = #tpu.dot_dimension_numbers<[1], [0], [0], [1], [0, 0, 1, 1], [], []>} : vector<2x32xf32>, vector<32x8xf32>, vector<2x8xf32> -> vector<2x8xf32>
    %c0_171 = arith.constant 0 : index
    %c0_172 = arith.constant 0 : index
    %753 = vector.load %arg8[%c0_171, %c0_172] : memref<1x8xf32, #tpu.memory_space<vmem>>, vector<1x8xf32>
    %754 = vector.broadcast %753 : vector<1x8xf32> to vector<2x8xf32>
    %755 = arith.addf %752, %754 : vector<2x8xf32>
    %c0_173 = arith.constant 0 : index
    %c0_174 = arith.constant 0 : index
    %756 = vector.load %arg9[%c0_173, %c0_174] : memref<2x8xf32, #tpu.memory_space<vmem>>, vector<2x8xf32>
    tpu.vector_store %arg9[%c0_173, %c0_174], %755 {strides = array<i32>} : memref<2x8xf32, #tpu.memory_space<vmem>>, vector<2x8xf32>,
    return
  }
}

</mosaic_0001>

<llo_original>
// kernel: bnlstm_forward.1
$region0: #{bnlstm_forward.1}
  #allocation0 [shape = 'u32[]', space=smem, size = 0x4, offset = 0x4, fixed_abs, tag = 'smem constant byte address 0x4 - core index']
  #allocation1 [shape = 'u32[144,128]{1,0:T(1,128)}', space=vmem, size = 0x12000, scoped, tag = 'internal scratch']
  %s0 = inlined_call_operand.vmem [shape: f32[16,16], index: 0, kind: input, shape index: {}]
  %s1 = inlined_call_operand.vmem [shape: f32[16,128], index: 1, kind: input, shape index: {}]
  %s2 = inlined_call_operand.vmem [shape: f32[32,128], index: 2, kind: input, shape index: {}]
  %s3 = inlined_call_operand.vmem [shape: f32[8,8,128], index: 3, kind: input, shape index: {}]
  %s4 = inlined_call_operand.vmem [shape: f32[32,128], index: 4, kind: input, shape index: {}]
  %s5 = inlined_call_operand.vmem [shape: f32[32,128], index: 5, kind: input, shape index: {}]
  %s6 = inlined_call_operand.vmem [shape: f32[8,8,128], index: 6, kind: input, shape index: {}]
  %s7 = inlined_call_operand.vmem [shape: f32[32,8], index: 7, kind: input, shape index: {}]
  %s8 = inlined_call_operand.vmem [shape: f32[1,8], index: 8, kind: input, shape index: {}]
  %s9 = inlined_call_operand.hbm [shape: f32[2,8], index: 9, kind: output, shape index: {}]
  %s10 = sld [smem:[#allocation0]]
  $region46: #{bnlstm_forward.1} parent=0
    _
  %s12 = ssub.s32 1, %s10
  %s13 = scalar_select 0, %s12, %s10
  $region1: #{bnlstm_forward.1} parent=0
    #allocation2 [shape = 'u8[1024]{0}', space=vmem, size = 0x400, scoped, tag = 'output window, operand 0, single buffered']
    #allocation3 [shape = 's32[1]{0}', space=sflag, size = 0x4, scoped, tag = 'scoped memory for bnlstm_forward.1']
    %14 = vsyncpa [#allocation3], 0
    // Predicated region
    $region2: #{bnlstm_forward.1} parent=1 // pred_check
      _
    $region3: #{bnlstm_forward.1} parent=1 // pred_check_branch
      %16 = sbr.rel (0) target = $region5
    $region4: #{bnlstm_forward.1} parent=1 // pred_region
      _
    $region5: #{bnlstm_forward.1} parent=1 // pred_fallthru
      _
    // Predicated region
    $region6: #{bnlstm_forward.1} parent=1 // pred_check
      _
    $region7: #{bnlstm_forward.1} parent=1 // pred_check_branch
      %18 = sbr.rel (0) target = $region9
    $region8: #{bnlstm_forward.1} parent=1 // pred_region
      _
    $region9: #{bnlstm_forward.1} parent=1 // pred_fallthru
      _
    // Predicated region
    $region10: #{bnlstm_forward.1} parent=1 // pred_check
      _
    $region11: #{bnlstm_forward.1} parent=1 // pred_check_branch
      %20 = sbr.rel (0) target = $region13
    $region12: #{bnlstm_forward.1} parent=1 // pred_region
      _
    $region13: #{bnlstm_forward.1} parent=1 // pred_fallthru
      _
    // Predicated region
    $region14: #{bnlstm_forward.1} parent=1 // pred_check
      _
    $region15: #{bnlstm_forward.1} parent=1 // pred_check_branch
      %22 = sbr.rel (0) target = $region17
    $region16: #{bnlstm_forward.1} parent=1 // pred_region
      _
    $region17: #{bnlstm_forward.1} parent=1 // pred_fallthru
      _
    // Predicated region
    $region18: #{bnlstm_forward.1} parent=1 // pred_check
      _
    $region19: #{bnlstm_forward.1} parent=1 // pred_check_branch
      %24 = sbr.rel (0) target = $region21
    $region20: #{bnlstm_forward.1} parent=1 // pred_region
      _
    $region21: #{bnlstm_forward.1} parent=1 // pred_fallthru
      _
    // Predicated region
    $region22: #{bnlstm_forward.1} parent=1 // pred_check
      _
    $region23: #{bnlstm_forward.1} parent=1 // pred_check_branch
      %26 = sbr.rel (0) target = $region25
    $region24: #{bnlstm_forward.1} parent=1 // pred_region
      _
    $region25: #{bnlstm_forward.1} parent=1 // pred_fallthru
      _
    // Predicated region
    $region26: #{bnlstm_forward.1} parent=1 // pred_check
      _
    $region27: #{bnlstm_forward.1} parent=1 // pred_check_branch
      %28 = sbr.rel (0) target = $region29
    $region28: #{bnlstm_forward.1} parent=1 // pred_region
      _
    $region29: #{bnlstm_forward.1} parent=1 // pred_fallthru
      _
    // Predicated region
    $region30: #{bnlstm_forward.1} parent=1 // pred_check
      _
    $region31: #{bnlstm_forward.1} parent=1 // pred_check_branch
      %30 = sbr.rel (0) target = $region33
    $region32: #{bnlstm_forward.1} parent=1 // pred_region
      _
    $region33: #{bnlstm_forward.1} parent=1 // pred_fallthru
      _
    // Predicated region
    $region34: #{bnlstm_forward.1} parent=1 // pred_check
      _
    $region35: #{bnlstm_forward.1} parent=1 // pred_check_branch
      %32 = sbr.rel (0) target = $region37
    $region36: #{bnlstm_forward.1} parent=1 // pred_region
      _
    $region37: #{bnlstm_forward.1} parent=1 // pred_fallthru
      _
    %v33 = vld [vmem:[%s0] sm:$0xff]
    %v34 = vld [vmem:[%s0 + $0x8] sm:$0xff]
    %v35 = vld [vmem:[%s1] sm:$0xff]
    %v36 = vld [vmem:[%s1 + $0x8] sm:$0xff]
    %vm37 = vcmask 130048
    %v39 = vsel %vm37, %v33, 0
    %v42 = vsel %vm37, %v34, 0
    %44 = vmatprep.subr.mxu0 0.0
    %45 = vmatpush1.msra.mxu0 0.0
    %46 = vmatprep.subr.mxu0 0.0
    %47 = vmatpush1.msra.mxu0 0.0
    %48 = vmatprep.subr.mxu0 0.0
    %49 = vmatpush1.msra.mxu0 0.0
    %50 = vmatprep.subr.mxu0 0.0
    %51 = vmatpush1.msra.mxu0 0.0
    %52 = vmatprep.subr.mxu0 0.0
    %53 = vmatpush1.msra.mxu0 0.0
    %54 = vmatprep.subr.mxu0 0.0
    %55 = vmatpush1.msra.mxu0 0.0
    %56 = vmatprep.subr.mxu0 0.0
    %57 = vmatpush1.msra.mxu0 0.0
    %58 = vmatprep.subr.mxu0 0.0
    %59 = vmatpush1.msra.mxu0 0.0
    %60 = vmatprep.subr.mxu0 0.0
    %61 = vmatpush1.msra.mxu0 0.0
    %62 = vmatprep.subr.mxu0 0.0
    %63 = vmatpush1.msra.mxu0 0.0
    %64 = vmatprep.subr.mxu0 0.0
    %65 = vmatpush1.msra.mxu0 0.0
    %66 = vmatprep.subr.mxu0 0.0
    %67 = vmatpush1.msra.mxu0 0.0
    %68 = vmatprep.subr.mxu0 0.0
    %69 = vmatpush1.msra.mxu0 0.0
    %70 = vmatprep.subr.mxu0 0.0
    %71 = vmatpush1.msra.mxu0 0.0
    %72 = vmatprep.subr.mxu0 0.0
    %73 = vmatpush1.msra.mxu0 %v36
    %74 = vmatprep.subr.mxu0 0.0
    %75 = vmatpush1.msra.mxu0 %v35
    %76 = vmatprep.subr.mxu0 0.0
    %77 = vmatpush2.msra.mxu0 0.0
    %78 = vmatprep.subr.mxu0 0.0
    %79 = vmatpush2.msra.mxu0 0.0
    %80 = vmatprep.subr.mxu0 0.0
    %81 = vmatpush2.msra.mxu0 0.0
    %82 = vmatprep.subr.mxu0 0.0
    %83 = vmatpush2.msra.mxu0 0.0
    %84 = vmatprep.subr.mxu0 0.0
    %85 = vmatpush2.msra.mxu0 0.0
    %86 = vmatprep.subr.mxu0 0.0
    %87 = vmatpush2.msra.mxu0 0.0
    %88 = vmatprep.subr.mxu0 0.0
    %89 = vmatpush2.msra.mxu0 0.0
    %90 = vmatprep.subr.mxu0 0.0
    %91 = vmatpush2.msra.mxu0 0.0
    %92 = vmatprep.subr.mxu0 0.0
    %93 = vmatpush2.msra.mxu0 0.0
    %94 = vmatprep.subr.mxu0 0.0
    %95 = vmatpush2.msra.mxu0 0.0
    %96 = vmatprep.subr.mxu0 0.0
    %97 = vmatpush2.msra.mxu0 0.0
    %98 = vmatprep.subr.mxu0 0.0
    %99 = vmatpush2.msra.mxu0 0.0
    %100 = vmatprep.subr.mxu0 0.0
    %101 = vmatpush2.msra.mxu0 0.0
    %102 = vmatprep.subr.mxu0 0.0
    %103 = vmatpush2.msra.mxu0 0.0
    %104 = vmatprep.subr.mxu0 0.0
    %105 = vmatpush2.msra.mxu0 0.0
    %106 = vmatprep.subr.mxu0 0.0
    %107 = vmatpush2.msra.mxu0 0.0
    %108 = vmatprep.mubr.f32.mxu0 0.0
    %109 = vmatmul.mubr.f32.gmra.mxu0 %v39
    %v110 = vpop.f32.mrf.mxu0
    %v111 = vadd.f32 0.0, %v110
    %v112 = vpop.f32.mrf.mxu0
    %113 = vmatprep.mubr.f32.mxu0 0.0
    %114 = vmatmul.mubr.f32.gmra.mxu0 %v42
    %v115 = vpop.f32.mrf.mxu0
    %v116 = vadd.f32 0.0, %v115
    %v117 = vpop.f32.mrf.mxu0
    %118 = vdwg.mxu0
    %v119 = vld [vmem:[%s3] sm:$0xff]
    %v120 = vld [vmem:[%s6] sm:$0xff]
    %v121 = vld [vmem:[%s2] sm:$0xff]
    %v122 = vld [vmem:[%s2 + $0x8] sm:$0xff]
    %v123 = vld [vmem:[%s2 + $0x10] sm:$0xff]
    %v124 = vld [vmem:[%s2 + $0x18] sm:$0xff]
    %vm125 = vcmask 261120
    %v127 = vsel %vm125, 0.0, 0
    %129 = vmatprep.subr.mxu0 0.0
    %130 = vmatpush1.msra.mxu0 0.0
    %131 = vmatprep.subr.mxu0 0.0
    %132 = vmatpush1.msra.mxu0 0.0
    %133 = vmatprep.subr.mxu0 0.0
    %134 = vmatpush1.msra.mxu0 0.0
    %135 = vmatprep.subr.mxu0 0.0
    %136 = vmatpush1.msra.mxu0 0.0
    %137 = vmatprep.subr.mxu0 0.0
    %138 = vmatpush1.msra.mxu0 0.0
    %139 = vmatprep.subr.mxu0 0.0
    %140 = vmatpush1.msra.mxu0 0.0
    %141 = vmatprep.subr.mxu0 0.0
    %142 = vmatpush1.msra.mxu0 0.0
    %143 = vmatprep.subr.mxu0 0.0
    %144 = vmatpush1.msra.mxu0 0.0
    %145 = vmatprep.subr.mxu0 0.0
    %146 = vmatpush1.msra.mxu0 0.0
    %147 = vmatprep.subr.mxu0 0.0
    %148 = vmatpush1.msra.mxu0 0.0
    %149 = vmatprep.subr.mxu0 0.0
    %150 = vmatpush1.msra.mxu0 0.0
    %151 = vmatprep.subr.mxu0 0.0
    %152 = vmatpush1.msra.mxu0 0.0
    %153 = vmatprep.subr.mxu0 0.0
    %154 = vmatpush1.msra.mxu0 %v124
    %155 = vmatprep.subr.mxu0 0.0
    %156 = vmatpush1.msra.mxu0 %v123
    %157 = vmatprep.subr.mxu0 0.0
    %158 = vmatpush1.msra.mxu0 %v122
    %159 = vmatprep.subr.mxu0 0.0
    %160 = vmatpush1.msra.mxu0 %v121
    %161 = vmatprep.subr.mxu0 0.0
    %162 = vmatpush2.msra.mxu0 0.0
    %163 = vmatprep.subr.mxu0 0.0
    %164 = vmatpush2.msra.mxu0 0.0
    %165 = vmatprep.subr.mxu0 0.0
    %166 = vmatpush2.msra.mxu0 0.0
    %167 = vmatprep.subr.mxu0 0.0
    %168 = vmatpush2.msra.mxu0 0.0
    %169 = vmatprep.subr.mxu0 0.0
    %170 = vmatpush2.msra.mxu0 0.0
    %171 = vmatprep.subr.mxu0 0.0
    %172 = vmatpush2.msra.mxu0 0.0
    %173 = vmatprep.subr.mxu0 0.0
    %174 = vmatpush2.msra.mxu0 0.0
    %175 = vmatprep.subr.mxu0 0.0
    %176 = vmatpush2.msra.mxu0 0.0
    %177 = vmatprep.subr.mxu0 0.0
    %178 = vmatpush2.msra.mxu0 0.0
    %179 = vmatprep.subr.mxu0 0.0
    %180 = vmatpush2.msra.mxu0 0.0
    %181 = vmatprep.subr.mxu0 0.0
    %182 = vmatpush2.msra.mxu0 0.0
    %183 = vmatprep.subr.mxu0 0.0
    %184 = vmatpush2.msra.mxu0 0.0
    %185 = vmatprep.subr.mxu0 0.0
    %186 = vmatpush2.msra.mxu0 0.0
    %187 = vmatprep.subr.mxu0 0.0
    %188 = vmatpush2.msra.mxu0 0.0
    %189 = vmatprep.subr.mxu0 0.0
    %190 = vmatpush2.msra.mxu0 0.0
    %191 = vmatprep.subr.mxu0 0.0
    %192 = vmatpush2.msra.mxu0 0.0
    %193 = vmatprep.mubr.f32.mxu0 0.0
    %194 = vmatmul.mubr.f32.gmra.mxu0 %v127
    %v195 = vpop.f32.mrf.mxu0
    %v196 = vadd.f32 0.0, %v195
    %v197 = vpop.f32.mrf.mxu0
    %198 = vdwg.mxu0
    %v199 = vlaneseq
    %v200 = vshrl.u32 %v199, 7
    %v201 = vsub.s32 0, %v200
    %v202 = vrot.slane %v119, %v201
    %v203 = vmul.f32 %v111, %v202
    %v204 = vlaneseq
    %v205 = vshrl.u32 %v204, 7
    %v206 = vsub.s32 1, %v205
    %v207 = vrot.slane %v119, %v206
    %v208 = vmul.f32 %v196, %v207
    %v209 = vadd.f32 %v203, %v208
    %v210 = vlaneseq
    %v211 = vshrl.u32 %v210, 7
    %v212 = vsub.s32 2, %v211
    %v213 = vrot.slane %v119, %v212
    %v214 = vadd.f32 %v209, %v213
    %v215 = vxor.u32 %v214, 2147483648
    %v216 = vmul.f32 %v215, 1.442695
    %v217 = vpow.pop %v216
    %v218 = vadd.f32 %v217, 1.0
    %v219 = vrcp.pop %v218
    %v220 = vmul.f32 1.0, %v219
    %v221 = vmul.f32 %v220, 0.0
    %v222 = vtanh.pop %v214
    %224 = vrot.lane.b32.xlu0 %v222, 64
    %v225 = vpop.permute.xlu0 %224
    %v227 = vmul.f32 %v220, %v225
    %229 = vrot.lane.b32.xlu0 %v227, 96
    %v230 = vpop.permute.xlu0 %229
    %v232 = vadd.f32 %v221, %v230
    %v233 = vlaneseq
    %v234 = vshrl.u32 %v233, 7
    %v235 = vsub.s32 3, %v234
    %v236 = vrot.slane %v119, %v235
    %v237 = vmul.f32 %v232, %v236
    %v238 = vlaneseq
    %v239 = vshrl.u32 %v238, 7
    %v240 = vsub.s32 4, %v239
    %v241 = vrot.slane %v119, %v240
    %v242 = vadd.f32 %v237, %v241
    %v243 = vtanh.pop %v242
    %245 = vrot.lane.b32.xlu0 %v243, 64
    %v246 = vpop.permute.xlu0 %245
    %v248 = vmul.f32 %v220, %v246
    %v249 = vld [vmem:[%s4] sm:$0xff]
    %v250 = vld [vmem:[%s4 + $0x8] sm:$0xff]
    %v251 = vld [vmem:[%s4 + $0x10] sm:$0xff]
    %v252 = vld [vmem:[%s4 + $0x18] sm:$0xff]
    %254 = vrot.lane.b32.xlu0 %v248, 64
    %v255 = vpop.permute.xlu0 %254
    %v256 = vsel %vm125, %v255, 0
    %258 = vmatprep.subr.mxu0 0.0
    %259 = vmatpush1.msra.mxu0 0.0
    %260 = vmatprep.subr.mxu0 0.0
    %261 = vmatpush1.msra.mxu0 0.0
    %262 = vmatprep.subr.mxu0 0.0
    %263 = vmatpush1.msra.mxu0 0.0
    %264 = vmatprep.subr.mxu0 0.0
    %265 = vmatpush1.msra.mxu0 0.0
    %266 = vmatprep.subr.mxu0 0.0
    %267 = vmatpush1.msra.mxu0 0.0
    %268 = vmatprep.subr.mxu0 0.0
    %269 = vmatpush1.msra.mxu0 0.0
    %270 = vmatprep.subr.mxu0 0.0
    %271 = vmatpush1.msra.mxu0 0.0
    %272 = vmatprep.subr.mxu0 0.0
    %273 = vmatpush1.msra.mxu0 0.0
    %274 = vmatprep.subr.mxu0 0.0
    %275 = vmatpush1.msra.mxu0 0.0
    %276 = vmatprep.subr.mxu0 0.0
    %277 = vmatpush1.msra.mxu0 0.0
    %278 = vmatprep.subr.mxu0 0.0
    %279 = vmatpush1.msra.mxu0 0.0
    %280 = vmatprep.subr.mxu0 0.0
    %281 = vmatpush1.msra.mxu0 0.0
    %282 = vmatprep.subr.mxu0 0.0
    %283 = vmatpush1.msra.mxu0 %v252
    %284 = vmatprep.subr.mxu0 0.0
    %285 = vmatpush1.msra.mxu0 %v251
    %286 = vmatprep.subr.mxu0 0.0
    %287 = vmatpush1.msra.mxu0 %v250
    %288 = vmatprep.subr.mxu0 0.0
    %289 = vmatpush1.msra.mxu0 %v249
    %290 = vmatprep.subr.mxu0 0.0
    %291 = vmatpush2.msra.mxu0 0.0
    %292 = vmatprep.subr.mxu0 0.0
    %293 = vmatpush2.msra.mxu0 0.0
    %294 = vmatprep.subr.mxu0 0.0
    %295 = vmatpush2.msra.mxu0 0.0
    %296 = vmatprep.subr.mxu0 0.0
    %297 = vmatpush2.msra.mxu0 0.0
    %298 = vmatprep.subr.mxu0 0.0
    %299 = vmatpush2.msra.mxu0 0.0
    %300 = vmatprep.subr.mxu0 0.0
    %301 = vmatpush2.msra.mxu0 0.0
    %302 = vmatprep.subr.mxu0 0.0
    %303 = vmatpush2.msra.mxu0 0.0
    %304 = vmatprep.subr.mxu0 0.0
    %305 = vmatpush2.msra.mxu0 0.0
    %306 = vmatprep.subr.mxu0 0.0
    %307 = vmatpush2.msra.mxu0 0.0
    %308 = vmatprep.subr.mxu0 0.0
    %309 = vmatpush2.msra.mxu0 0.0
    %310 = vmatprep.subr.mxu0 0.0
    %311 = vmatpush2.msra.mxu0 0.0
    %312 = vmatprep.subr.mxu0 0.0
    %313 = vmatpush2.msra.mxu0 0.0
    %314 = vmatprep.subr.mxu0 0.0
    %315 = vmatpush2.msra.mxu0 0.0
    %316 = vmatprep.subr.mxu0 0.0
    %317 = vmatpush2.msra.mxu0 0.0
    %318 = vmatprep.subr.mxu0 0.0
    %319 = vmatpush2.msra.mxu0 0.0
    %320 = vmatprep.subr.mxu0 0.0
    %321 = vmatpush2.msra.mxu0 0.0
    %322 = vmatprep.mubr.f32.mxu0 0.0
    %323 = vmatmul.mubr.f32.gmra.mxu0 %v256
    %v324 = vpop.f32.mrf.mxu0
    %v325 = vadd.f32 0.0, %v324
    %v326 = vpop.f32.mrf.mxu0
    %327 = vdwg.mxu0
    %v328 = vld [vmem:[%s5] sm:$0xff]
    %v329 = vld [vmem:[%s5 + $0x8] sm:$0xff]
    %v330 = vld [vmem:[%s5 + $0x10] sm:$0xff]
    %v331 = vld [vmem:[%s5 + $0x18] sm:$0xff]
    %332 = vmatprep.subr.mxu0 0.0
    %333 = vmatpush1.msra.mxu0 0.0
    %334 = vmatprep.subr.mxu0 0.0
    %335 = vmatpush1.msra.mxu0 0.0
    %336 = vmatprep.subr.mxu0 0.0
    %337 = vmatpush1.msra.mxu0 0.0
    %338 = vmatprep.subr.mxu0 0.0
    %339 = vmatpush1.msra.mxu0 0.0
    %340 = vmatprep.subr.mxu0 0.0
    %341 = vmatpush1.msra.mxu0 0.0
    %342 = vmatprep.subr.mxu0 0.0
    %343 = vmatpush1.msra.mxu0 0.0
    %344 = vmatprep.subr.mxu0 0.0
    %345 = vmatpush1.msra.mxu0 0.0
    %346 = vmatprep.subr.mxu0 0.0
    %347 = vmatpush1.msra.mxu0 0.0
    %348 = vmatprep.subr.mxu0 0.0
    %349 = vmatpush1.msra.mxu0 0.0
    %350 = vmatprep.subr.mxu0 0.0
    %351 = vmatpush1.msra.mxu0 0.0
    %352 = vmatprep.subr.mxu0 0.0
    %353 = vmatpush1.msra.mxu0 0.0
    %354 = vmatprep.subr.mxu0 0.0
    %355 = vmatpush1.msra.mxu0 0.0
    %356 = vmatprep.subr.mxu0 0.0
    %357 = vmatpush1.msra.mxu0 %v331
    %358 = vmatprep.subr.mxu0 0.0
    %359 = vmatpush1.msra.mxu0 %v330
    %360 = vmatprep.subr.mxu0 0.0
    %361 = vmatpush1.msra.mxu0 %v329
    %362 = vmatprep.subr.mxu0 0.0
    %363 = vmatpush1.msra.mxu0 %v328
    %364 = vmatprep.subr.mxu0 0.0
    %365 = vmatpush2.msra.mxu0 0.0
    %366 = vmatprep.subr.mxu0 0.0
    %367 = vmatpush2.msra.mxu0 0.0
    %368 = vmatprep.subr.mxu0 0.0
    %369 = vmatpush2.msra.mxu0 0.0
    %370 = vmatprep.subr.mxu0 0.0
    %371 = vmatpush2.msra.mxu0 0.0
    %372 = vmatprep.subr.mxu0 0.0
    %373 = vmatpush2.msra.mxu0 0.0
    %374 = vmatprep.subr.mxu0 0.0
    %375 = vmatpush2.msra.mxu0 0.0
    %376 = vmatprep.subr.mxu0 0.0
    %377 = vmatpush2.msra.mxu0 0.0
    %378 = vmatprep.subr.mxu0 0.0
    %379 = vmatpush2.msra.mxu0 0.0
    %380 = vmatprep.subr.mxu0 0.0
    %381 = vmatpush2.msra.mxu0 0.0
    %382 = vmatprep.subr.mxu0 0.0
    %383 = vmatpush2.msra.mxu0 0.0
    %384 = vmatprep.subr.mxu0 0.0
    %385 = vmatpush2.msra.mxu0 0.0
    %386 = vmatprep.subr.mxu0 0.0
    %387 = vmatpush2.msra.mxu0 0.0
    %388 = vmatprep.subr.mxu0 0.0
    %389 = vmatpush2.msra.mxu0 0.0
    %390 = vmatprep.subr.mxu0 0.0
    %391 = vmatpush2.msra.mxu0 0.0
    %392 = vmatprep.subr.mxu0 0.0
    %393 = vmatpush2.msra.mxu0 0.0
    %394 = vmatprep.subr.mxu0 0.0
    %395 = vmatpush2.msra.mxu0 0.0
    %396 = vmatprep.mubr.f32.mxu0 0.0
    %397 = vmatmul.mubr.f32.gmra.mxu0 %v127
    %v398 = vpop.f32.mrf.mxu0
    %v399 = vadd.f32 0.0, %v398
    %v400 = vpop.f32.mrf.mxu0
    %401 = vdwg.mxu0
    %v402 = vlaneseq
    %v403 = vshrl.u32 %v402, 7
    %v404 = vsub.s32 0, %v403
    %v405 = vrot.slane %v120, %v404
    %v406 = vmul.f32 %v325, %v405
    %v407 = vlaneseq
    %v408 = vshrl.u32 %v407, 7
    %v409 = vsub.s32 1, %v408
    %v410 = vrot.slane %v120, %v409
    %v411 = vmul.f32 %v399, %v410
    %v412 = vadd.f32 %v406, %v411
    %v413 = vlaneseq
    %v414 = vshrl.u32 %v413, 7
    %v415 = vsub.s32 2, %v414
    %v416 = vrot.slane %v120, %v415
    %v417 = vadd.f32 %v412, %v416
    %v418 = vxor.u32 %v417, 2147483648
    %v419 = vmul.f32 %v418, 1.442695
    %v420 = vpow.pop %v419
    %v421 = vadd.f32 %v420, 1.0
    %v422 = vrcp.pop %v421
    %v423 = vmul.f32 1.0, %v422
    %v424 = vmul.f32 %v423, 0.0
    %v425 = vtanh.pop %v417
    %427 = vrot.lane.b32.xlu0 %v425, 64
    %v428 = vpop.permute.xlu0 %427
    %v430 = vmul.f32 %v423, %v428
    %432 = vrot.lane.b32.xlu0 %v430, 96
    %v433 = vpop.permute.xlu0 %432
    %v435 = vadd.f32 %v424, %v433
    %v436 = vlaneseq
    %v437 = vshrl.u32 %v436, 7
    %v438 = vsub.s32 3, %v437
    %v439 = vrot.slane %v120, %v438
    %v440 = vmul.f32 %v435, %v439
    %v441 = vlaneseq
    %v442 = vshrl.u32 %v441, 7
    %v443 = vsub.s32 4, %v442
    %v444 = vrot.slane %v120, %v443
    %v445 = vadd.f32 %v440, %v444
    %v446 = vtanh.pop %v445
    %448 = vrot.lane.b32.xlu0 %v446, 64
    %v449 = vpop.permute.xlu0 %448
    %v451 = vmul.f32 %v423, %v449
    %s452 = scalar_lea.vmem %s3, 8
    %v453 = vld [vmem:[%s452] sm:$0xff]
    %s454 = scalar_lea.vmem %s6, 8
    %v455 = vld [vmem:[%s454] sm:$0xff]
    %456 = vmatprep.subr.mxu0 0.0
    %457 = vmatpush1.msra.mxu0 0.0
    %458 = vmatprep.subr.mxu0 0.0
    %459 = vmatpush1.msra.mxu0 0.0
    %460 = vmatprep.subr.mxu0 0.0
    %461 = vmatpush1.msra.mxu0 0.0
    %462 = vmatprep.subr.mxu0 0.0
    %463 = vmatpush1.msra.mxu0 0.0
    %464 = vmatprep.subr.mxu0 0.0
    %465 = vmatpush1.msra.mxu0 0.0
    %466 = vmatprep.subr.mxu0 0.0
    %467 = vmatpush1.msra.mxu0 0.0
    %468 = vmatprep.subr.mxu0 0.0
    %469 = vmatpush1.msra.mxu0 0.0
    %470 = vmatprep.subr.mxu0 0.0
    %471 = vmatpush1.msra.mxu0 0.0
    %472 = vmatprep.subr.mxu0 0.0
    %473 = vmatpush1.msra.mxu0 0.0
    %474 = vmatprep.subr.mxu0 0.0
    %475 = vmatpush1.msra.mxu0 0.0
    %476 = vmatprep.subr.mxu0 0.0
    %477 = vmatpush1.msra.mxu0 0.0
    %478 = vmatprep.subr.mxu0 0.0
    %479 = vmatpush1.msra.mxu0 0.0
    %480 = vmatprep.subr.mxu0 0.0
    %481 = vmatpush1.msra.mxu0 %v124
    %482 = vmatprep.subr.mxu0 0.0
    %483 = vmatpush1.msra.mxu0 %v123
    %484 = vmatprep.subr.mxu0 0.0
    %485 = vmatpush1.msra.mxu0 %v122
    %486 = vmatprep.subr.mxu0 0.0
    %487 = vmatpush1.msra.mxu0 %v121
    %488 = vmatprep.subr.mxu0 0.0
    %489 = vmatpush2.msra.mxu0 0.0
    %490 = vmatprep.subr.mxu0 0.0
    %491 = vmatpush2.msra.mxu0 0.0
    %492 = vmatprep.subr.mxu0 0.0
    %493 = vmatpush2.msra.mxu0 0.0
    %494 = vmatprep.subr.mxu0 0.0
    %495 = vmatpush2.msra.mxu0 0.0
    %496 = vmatprep.subr.mxu0 0.0
    %497 = vmatpush2.msra.mxu0 0.0
    %498 = vmatprep.subr.mxu0 0.0
    %499 = vmatpush2.msra.mxu0 0.0
    %500 = vmatprep.subr.mxu0 0.0
    %501 = vmatpush2.msra.mxu0 0.0
    %502 = vmatprep.subr.mxu0 0.0
    %503 = vmatpush2.msra.mxu0 0.0
    %504 = vmatprep.subr.mxu0 0.0
    %505 = vmatpush2.msra.mxu0 0.0
    %506 = vmatprep.subr.mxu0 0.0
    %507 = vmatpush2.msra.mxu0 0.0
    %508 = vmatprep.subr.mxu0 0.0
    %509 = vmatpush2.msra.mxu0 0.0
    %510 = vmatprep.subr.mxu0 0.0
    %511 = vmatpush2.msra.mxu0 0.0
    %512 = vmatprep.subr.mxu0 0.0
    %513 = vmatpush2.msra.mxu0 0.0
    %514 = vmatprep.subr.mxu0 0.0
    %515 = vmatpush2.msra.mxu0 0.0
    %516 = vmatprep.subr.mxu0 0.0
    %517 = vmatpush2.msra.mxu0 0.0
    %518 = vmatprep.subr.mxu0 0.0
    %519 = vmatpush2.msra.mxu0 0.0
    %520 = vmatprep.mubr.f32.mxu0 0.0
    %521 = vmatmul.mubr.f32.gmra.mxu0 %v256
    %v522 = vpop.f32.mrf.mxu0
    %v523 = vadd.f32 0.0, %v522
    %v524 = vpop.f32.mrf.mxu0
    %525 = vdwg.mxu0
    %v526 = vlaneseq
    %v527 = vshrl.u32 %v526, 7
    %v528 = vsub.s32 0, %v527
    %v529 = vrot.slane %v453, %v528
    %v530 = vmul.f32 %v111, %v529
    %v531 = vlaneseq
    %v532 = vshrl.u32 %v531, 7
    %v533 = vsub.s32 1, %v532
    %v534 = vrot.slane %v453, %v533
    %v535 = vmul.f32 %v523, %v534
    %v537 = vrot.slane %v535, 6
    %v539 = vadd.f32 %v530, %v537
    %v540 = vlaneseq
    %v541 = vshrl.u32 %v540, 7
    %v542 = vsub.s32 2, %v541
    %v543 = vrot.slane %v453, %v542
    %v544 = vadd.f32 %v539, %v543
    %v545 = vxor.u32 %v544, 2147483648
    %v546 = vmul.f32 %v545, 1.442695
    %v547 = vpow.pop %v546
    %v548 = vadd.f32 %v547, 1.0
    %v549 = vrcp.pop %v548
    %v550 = vmul.f32 1.0, %v549
    %v552 = vrot.slane %v232, 6
    %v554 = vmul.f32 %v550, %v552
    %v555 = vtanh.pop %v544
    %557 = vrot.lane.b32.xlu0 %v555, 64
    %v558 = vpop.permute.xlu0 %557
    %v560 = vmul.f32 %v550, %v558
    %562 = vrot.lane.b32.xlu0 %v560, 96
    %v563 = vpop.permute.xlu0 %562
    %v565 = vadd.f32 %v554, %v563
    %v566 = vlaneseq
    %v567 = vshrl.u32 %v566, 7
    %v568 = vsub.s32 3, %v567
    %v569 = vrot.slane %v453, %v568
    %v570 = vmul.f32 %v565, %v569
    %v571 = vlaneseq
    %v572 = vshrl.u32 %v571, 7
    %v573 = vsub.s32 4, %v572
    %v574 = vrot.slane %v453, %v573
    %v575 = vadd.f32 %v570, %v574
    %v576 = vtanh.pop %v575
    %578 = vrot.lane.b32.xlu0 %v576, 64
    %v579 = vpop.permute.xlu0 %578
    %v581 = vmul.f32 %v550, %v579
    %v583 = vrot.slane %v581, 2
    %584 = vrot.lane.b32.xlu0 %v583, 64
    %v585 = vpop.permute.xlu0 %584
    %v586 = vsel %vm125, %v585, 0
    %588 = vmatprep.subr.mxu0 0.0
    %589 = vmatpush1.msra.mxu0 0.0
    %590 = vmatprep.subr.mxu0 0.0
    %591 = vmatpush1.msra.mxu0 0.0
    %592 = vmatprep.subr.mxu0 0.0
    %593 = vmatpush1.msra.mxu0 0.0
    %594 = vmatprep.subr.mxu0 0.0
    %595 = vmatpush1.msra.mxu0 0.0
    %596 = vmatprep.subr.mxu0 0.0
    %597 = vmatpush1.msra.mxu0 0.0
    %598 = vmatprep.subr.mxu0 0.0
    %599 = vmatpush1.msra.mxu0 0.0
    %600 = vmatprep.subr.mxu0 0.0
    %601 = vmatpush1.msra.mxu0 0.0
    %602 = vmatprep.subr.mxu0 0.0
    %603 = vmatpush1.msra.mxu0 0.0
    %604 = vmatprep.subr.mxu0 0.0
    %605 = vmatpush1.msra.mxu0 0.0
    %606 = vmatprep.subr.mxu0 0.0
    %607 = vmatpush1.msra.mxu0 0.0
    %608 = vmatprep.subr.mxu0 0.0
    %609 = vmatpush1.msra.mxu0 0.0
    %610 = vmatprep.subr.mxu0 0.0
    %611 = vmatpush1.msra.mxu0 0.0
    %612 = vmatprep.subr.mxu0 0.0
    %613 = vmatpush1.msra.mxu0 %v252
    %614 = vmatprep.subr.mxu0 0.0
    %615 = vmatpush1.msra.mxu0 %v251
    %616 = vmatprep.subr.mxu0 0.0
    %617 = vmatpush1.msra.mxu0 %v250
    %618 = vmatprep.subr.mxu0 0.0
    %619 = vmatpush1.msra.mxu0 %v249
    %620 = vmatprep.subr.mxu0 0.0
    %621 = vmatpush2.msra.mxu0 0.0
    %622 = vmatprep.subr.mxu0 0.0
    %623 = vmatpush2.msra.mxu0 0.0
    %624 = vmatprep.subr.mxu0 0.0
    %625 = vmatpush2.msra.mxu0 0.0
    %626 = vmatprep.subr.mxu0 0.0
    %627 = vmatpush2.msra.mxu0 0.0
    %628 = vmatprep.subr.mxu0 0.0
    %629 = vmatpush2.msra.mxu0 0.0
    %630 = vmatprep.subr.mxu0 0.0
    %631 = vmatpush2.msra.mxu0 0.0
    %632 = vmatprep.subr.mxu0 0.0
    %633 = vmatpush2.msra.mxu0 0.0
    %634 = vmatprep.subr.mxu0 0.0
    %635 = vmatpush2.msra.mxu0 0.0
    %636 = vmatprep.subr.mxu0 0.0
    %637 = vmatpush2.msra.mxu0 0.0
    %638 = vmatprep.subr.mxu0 0.0
    %639 = vmatpush2.msra.mxu0 0.0
    %640 = vmatprep.subr.mxu0 0.0
    %641 = vmatpush2.msra.mxu0 0.0
    %642 = vmatprep.subr.mxu0 0.0
    %643 = vmatpush2.msra.mxu0 0.0
    %644 = vmatprep.subr.mxu0 0.0
    %645 = vmatpush2.msra.mxu0 0.0
    %646 = vmatprep.subr.mxu0 0.0
    %647 = vmatpush2.msra.mxu0 0.0
    %648 = vmatprep.subr.mxu0 0.0
    %649 = vmatpush2.msra.mxu0 0.0
    %650 = vmatprep.subr.mxu0 0.0
    %651 = vmatpush2.msra.mxu0 0.0
    %652 = vmatprep.mubr.f32.mxu0 0.0
    %653 = vmatmul.mubr.f32.gmra.mxu0 %v586
    %v654 = vpop.f32.mrf.mxu0
    %v655 = vadd.f32 0.0, %v654
    %v656 = vpop.f32.mrf.mxu0
    %657 = vdwg.mxu0
    %659 = vrot.lane.b32.xlu0 %v451, 64
    %v660 = vpop.permute.xlu0 %659
    %v661 = vsel %vm125, %v660, 0
    %663 = vmatprep.subr.mxu0 0.0
    %664 = vmatpush1.msra.mxu0 0.0
    %665 = vmatprep.subr.mxu0 0.0
    %666 = vmatpush1.msra.mxu0 0.0
    %667 = vmatprep.subr.mxu0 0.0
    %668 = vmatpush1.msra.mxu0 0.0
    %669 = vmatprep.subr.mxu0 0.0
    %670 = vmatpush1.msra.mxu0 0.0
    %671 = vmatprep.subr.mxu0 0.0
    %672 = vmatpush1.msra.mxu0 0.0
    %673 = vmatprep.subr.mxu0 0.0
    %674 = vmatpush1.msra.mxu0 0.0
    %675 = vmatprep.subr.mxu0 0.0
    %676 = vmatpush1.msra.mxu0 0.0
    %677 = vmatprep.subr.mxu0 0.0
    %678 = vmatpush1.msra.mxu0 0.0
    %679 = vmatprep.subr.mxu0 0.0
    %680 = vmatpush1.msra.mxu0 0.0
    %681 = vmatprep.subr.mxu0 0.0
    %682 = vmatpush1.msra.mxu0 0.0
    %683 = vmatprep.subr.mxu0 0.0
    %684 = vmatpush1.msra.mxu0 0.0
    %685 = vmatprep.subr.mxu0 0.0
    %686 = vmatpush1.msra.mxu0 0.0
    %687 = vmatprep.subr.mxu0 0.0
    %688 = vmatpush1.msra.mxu0 %v331
    %689 = vmatprep.subr.mxu0 0.0
    %690 = vmatpush1.msra.mxu0 %v330
    %691 = vmatprep.subr.mxu0 0.0
    %692 = vmatpush1.msra.mxu0 %v329
    %693 = vmatprep.subr.mxu0 0.0
    %694 = vmatpush1.msra.mxu0 %v328
    %695 = vmatprep.subr.mxu0 0.0
    %696 = vmatpush2.msra.mxu0 0.0
    %697 = vmatprep.subr.mxu0 0.0
    %698 = vmatpush2.msra.mxu0 0.0
    %699 = vmatprep.subr.mxu0 0.0
    %700 = vmatpush2.msra.mxu0 0.0
    %701 = vmatprep.subr.mxu0 0.0
    %702 = vmatpush2.msra.mxu0 0.0
    %703 = vmatprep.subr.mxu0 0.0
    %704 = vmatpush2.msra.mxu0 0.0
    %705 = vmatprep.subr.mxu0 0.0
    %706 = vmatpush2.msra.mxu0 0.0
    %707 = vmatprep.subr.mxu0 0.0
    %708 = vmatpush2.msra.mxu0 0.0
    %709 = vmatprep.subr.mxu0 0.0
    %710 = vmatpush2.msra.mxu0 0.0
    %711 = vmatprep.subr.mxu0 0.0
    %712 = vmatpush2.msra.mxu0 0.0
    %713 = vmatprep.subr.mxu0 0.0
    %714 = vmatpush2.msra.mxu0 0.0
    %715 = vmatprep.subr.mxu0 0.0
    %716 = vmatpush2.msra.mxu0 0.0
    %717 = vmatprep.subr.mxu0 0.0
    %718 = vmatpush2.msra.mxu0 0.0
    %719 = vmatprep.subr.mxu0 0.0
    %720 = vmatpush2.msra.mxu0 0.0
    %721 = vmatprep.subr.mxu0 0.0
    %722 = vmatpush2.msra.mxu0 0.0
    %723 = vmatprep.subr.mxu0 0.0
    %724 = vmatpush2.msra.mxu0 0.0
    %725 = vmatprep.subr.mxu0 0.0
    %726 = vmatpush2.msra.mxu0 0.0
    %727 = vmatprep.mubr.f32.mxu0 0.0
    %728 = vmatmul.mubr.f32.gmra.mxu0 %v661
    %v729 = vpop.f32.mrf.mxu0
    %v730 = vadd.f32 0.0, %v729
    %v731 = vpop.f32.mrf.mxu0
    %732 = vdwg.mxu0
    %v733 = vlaneseq
    %v734 = vshrl.u32 %v733, 7
    %v735 = vsub.s32 0, %v734
    %v736 = vrot.slane %v455, %v735
    %v737 = vmul.f32 %v655, %v736
    %v738 = vlaneseq
    %v739 = vshrl.u32 %v738, 7
    %v740 = vsub.s32 1, %v739
    %v741 = vrot.slane %v455, %v740
    %v742 = vmul.f32 %v730, %v741
    %v743 = vadd.f32 %v737, %v742
    %v744 = vlaneseq
    %v745 = vshrl.u32 %v744, 7
    %v746 = vsub.s32 2, %v745
    %v747 = vrot.slane %v455, %v746
    %v748 = vadd.f32 %v743, %v747
    %v749 = vxor.u32 %v748, 2147483648
    %v750 = vmul.f32 %v749, 1.442695
    %v751 = vpow.pop %v750
    %v752 = vadd.f32 %v751, 1.0
    %v753 = vrcp.pop %v752
    %v754 = vmul.f32 1.0, %v753
    %v755 = vmul.f32 %v754, %v435
    %v756 = vtanh.pop %v748
    %758 = vrot.lane.b32.xlu0 %v756, 64
    %v759 = vpop.permute.xlu0 %758
    %v761 = vmul.f32 %v754, %v759
    %763 = vrot.lane.b32.xlu0 %v761, 96
    %v764 = vpop.permute.xlu0 %763
    %v766 = vadd.f32 %v755, %v764
    %v767 = vlaneseq
    %v768 = vshrl.u32 %v767, 7
    %v769 = vsub.s32 3, %v768
    %v770 = vrot.slane %v455, %v769
    %v771 = vmul.f32 %v766, %v770
    %v772 = vlaneseq
    %v773 = vshrl.u32 %v772, 7
    %v774 = vsub.s32 4, %v773
    %v775 = vrot.slane %v455, %v774
    %v776 = vadd.f32 %v771, %v775
    %v777 = vtanh.pop %v776
    %779 = vrot.lane.b32.xlu0 %v777, 64
    %v780 = vpop.permute.xlu0 %779
    %v782 = vmul.f32 %v754, %v780
    %s783 = scalar_lea.vmem %s3, 16
    %v784 = vld [vmem:[%s783] sm:$0xff]
    %s785 = scalar_lea.vmem %s6, 16
    %v786 = vld [vmem:[%s785] sm:$0xff]
    %787 = vmatprep.subr.mxu0 0.0
    %788 = vmatpush1.msra.mxu0 0.0
    %789 = vmatprep.subr.mxu0 0.0
    %790 = vmatpush1.msra.mxu0 0.0
    %791 = vmatprep.subr.mxu0 0.0
    %792 = vmatpush1.msra.mxu0 0.0
    %793 = vmatprep.subr.mxu0 0.0
    %794 = vmatpush1.msra.mxu0 0.0
    %795 = vmatprep.subr.mxu0 0.0
    %796 = vmatpush1.msra.mxu0 0.0
    %797 = vmatprep.subr.mxu0 0.0
    %798 = vmatpush1.msra.mxu0 0.0
    %799 = vmatprep.subr.mxu0 0.0
    %800 = vmatpush1.msra.mxu0 0.0
    %801 = vmatprep.subr.mxu0 0.0
    %802 = vmatpush1.msra.mxu0 0.0
    %803 = vmatprep.subr.mxu0 0.0
    %804 = vmatpush1.msra.mxu0 0.0
    %805 = vmatprep.subr.mxu0 0.0
    %806 = vmatpush1.msra.mxu0 0.0
    %807 = vmatprep.subr.mxu0 0.0
    %808 = vmatpush1.msra.mxu0 0.0
    %809 = vmatprep.subr.mxu0 0.0
    %810 = vmatpush1.msra.mxu0 0.0
    %811 = vmatprep.subr.mxu0 0.0
    %812 = vmatpush1.msra.mxu0 %v124
    %813 = vmatprep.subr.mxu0 0.0
    %814 = vmatpush1.msra.mxu0 %v123
    %815 = vmatprep.subr.mxu0 0.0
    %816 = vmatpush1.msra.mxu0 %v122
    %817 = vmatprep.subr.mxu0 0.0
    %818 = vmatpush1.msra.mxu0 %v121
    %819 = vmatprep.subr.mxu0 0.0
    %820 = vmatpush2.msra.mxu0 0.0
    %821 = vmatprep.subr.mxu0 0.0
    %822 = vmatpush2.msra.mxu0 0.0
    %823 = vmatprep.subr.mxu0 0.0
    %824 = vmatpush2.msra.mxu0 0.0
    %825 = vmatprep.subr.mxu0 0.0
    %826 = vmatpush2.msra.mxu0 0.0
    %827 = vmatprep.subr.mxu0 0.0
    %828 = vmatpush2.msra.mxu0 0.0
    %829 = vmatprep.subr.mxu0 0.0
    %830 = vmatpush2.msra.mxu0 0.0
    %831 = vmatprep.subr.mxu0 0.0
    %832 = vmatpush2.msra.mxu0 0.0
    %833 = vmatprep.subr.mxu0 0.0
    %834 = vmatpush2.msra.mxu0 0.0
    %835 = vmatprep.subr.mxu0 0.0
    %836 = vmatpush2.msra.mxu0 0.0
    %837 = vmatprep.subr.mxu0 0.0
    %838 = vmatpush2.msra.mxu0 0.0
    %839 = vmatprep.subr.mxu0 0.0
    %840 = vmatpush2.msra.mxu0 0.0
    %841 = vmatprep.subr.mxu0 0.0
    %842 = vmatpush2.msra.mxu0 0.0
    %843 = vmatprep.subr.mxu0 0.0
    %844 = vmatpush2.msra.mxu0 0.0
    %845 = vmatprep.subr.mxu0 0.0
    %846 = vmatpush2.msra.mxu0 0.0
    %847 = vmatprep.subr.mxu0 0.0
    %848 = vmatpush2.msra.mxu0 0.0
    %849 = vmatprep.subr.mxu0 0.0
    %850 = vmatpush2.msra.mxu0 0.0
    %851 = vmatprep.mubr.f32.mxu0 0.0
    %852 = vmatmul.mubr.f32.gmra.mxu0 %v586
    %v853 = vpop.f32.mrf.mxu0
    %v854 = vadd.f32 0.0, %v853
    %v855 = vpop.f32.mrf.mxu0
    %856 = vdwg.mxu0
    %v857 = vlaneseq
    %v858 = vshrl.u32 %v857, 7
    %v859 = vsub.s32 0, %v858
    %v860 = vrot.slane %v784, %v859
    %v861 = vmul.f32 %v111, %v860
    %v862 = vlaneseq
    %v863 = vshrl.u32 %v862, 7
    %v864 = vsub.s32 1, %v863
    %v865 = vrot.slane %v784, %v864
    %v866 = vmul.f32 %v854, %v865
    %v868 = vrot.slane %v866, 4
    %v870 = vadd.f32 %v861, %v868
    %v871 = vlaneseq
    %v872 = vshrl.u32 %v871, 7
    %v873 = vsub.s32 2, %v872
    %v874 = vrot.slane %v784, %v873
    %v875 = vadd.f32 %v870, %v874
    %v876 = vxor.u32 %v875, 2147483648
    %v877 = vmul.f32 %v876, 1.442695
    %v878 = vpow.pop %v877
    %v879 = vadd.f32 %v878, 1.0
    %v880 = vrcp.pop %v879
    %v881 = vmul.f32 1.0, %v880
    %v883 = vrot.slane %v565, 6
    %v885 = vmul.f32 %v881, %v883
    %v886 = vtanh.pop %v875
    %888 = vrot.lane.b32.xlu0 %v886, 64
    %v889 = vpop.permute.xlu0 %888
    %v891 = vmul.f32 %v881, %v889
    %893 = vrot.lane.b32.xlu0 %v891, 96
    %v894 = vpop.permute.xlu0 %893
    %v896 = vadd.f32 %v885, %v894
    %v897 = vlaneseq
    %v898 = vshrl.u32 %v897, 7
    %v899 = vsub.s32 3, %v898
    %v900 = vrot.slane %v784, %v899
    %v901 = vmul.f32 %v896, %v900
    %v902 = vlaneseq
    %v903 = vshrl.u32 %v902, 7
    %v904 = vsub.s32 4, %v903
    %v905 = vrot.slane %v784, %v904
    %v906 = vadd.f32 %v901, %v905
    %v907 = vtanh.pop %v906
    %909 = vrot.lane.b32.xlu0 %v907, 64
    %v910 = vpop.permute.xlu0 %909
    %v912 = vmul.f32 %v881, %v910
    %v914 = vrot.slane %v912, 4
    %915 = vrot.lane.b32.xlu0 %v914, 64
    %v916 = vpop.permute.xlu0 %915
    %v917 = vsel %vm125, %v916, 0
    %919 = vmatprep.subr.mxu0 0.0
    %920 = vmatpush1.msra.mxu0 0.0
    %921 = vmatprep.subr.mxu0 0.0
    %922 = vmatpush1.msra.mxu0 0.0
    %923 = vmatprep.subr.mxu0 0.0
    %924 = vmatpush1.msra.mxu0 0.0
    %925 = vmatprep.subr.mxu0 0.0
    %926 = vmatpush1.msra.mxu0 0.0
    %927 = vmatprep.subr.mxu0 0.0
    %928 = vmatpush1.msra.mxu0 0.0
    %929 = vmatprep.subr.mxu0 0.0
    %930 = vmatpush1.msra.mxu0 0.0
    %931 = vmatprep.subr.mxu0 0.0
    %932 = vmatpush1.msra.mxu0 0.0
    %933 = vmatprep.subr.mxu0 0.0
    %934 = vmatpush1.msra.mxu0 0.0
    %935 = vmatprep.subr.mxu0 0.0
    %936 = vmatpush1.msra.mxu0 0.0
    %937 = vmatprep.subr.mxu0 0.0
    %938 = vmatpush1.msra.mxu0 0.0
    %939 = vmatprep.subr.mxu0 0.0
    %940 = vmatpush1.msra.mxu0 0.0
    %941 = vmatprep.subr.mxu0 0.0
    %942 = vmatpush1.msra.mxu0 0.0
    %943 = vmatprep.subr.mxu0 0.0
    %944 = vmatpush1.msra.mxu0 %v252
    %945 = vmatprep.subr.mxu0 0.0
    %946 = vmatpush1.msra.mxu0 %v251
    %947 = vmatprep.subr.mxu0 0.0
    %948 = vmatpush1.msra.mxu0 %v250
    %949 = vmatprep.subr.mxu0 0.0
    %950 = vmatpush1.msra.mxu0 %v249
    %951 = vmatprep.subr.mxu0 0.0
    %952 = vmatpush2.msra.mxu0 0.0
    %953 = vmatprep.subr.mxu0 0.0
    %954 = vmatpush2.msra.mxu0 0.0
    %955 = vmatprep.subr.mxu0 0.0
    %956 = vmatpush2.msra.mxu0 0.0
    %957 = vmatprep.subr.mxu0 0.0
    %958 = vmatpush2.msra.mxu0 0.0
    %959 = vmatprep.subr.mxu0 0.0
    %960 = vmatpush2.msra.mxu0 0.0
    %961 = vmatprep.subr.mxu0 0.0
    %962 = vmatpush2.msra.mxu0 0.0
    %963 = vmatprep.subr.mxu0 0.0
    %964 = vmatpush2.msra.mxu0 0.0
    %965 = vmatprep.subr.mxu0 0.0
    %966 = vmatpush2.msra.mxu0 0.0
    %967 = vmatprep.subr.mxu0 0.0
    %968 = vmatpush2.msra.mxu0 0.0
    %969 = vmatprep.subr.mxu0 0.0
    %970 = vmatpush2.msra.mxu0 0.0
    %971 = vmatprep.subr.mxu0 0.0
    %972 = vmatpush2.msra.mxu0 0.0
    %973 = vmatprep.subr.mxu0 0.0
    %974 = vmatpush2.msra.mxu0 0.0
    %975 = vmatprep.subr.mxu0 0.0
    %976 = vmatpush2.msra.mxu0 0.0
    %977 = vmatprep.subr.mxu0 0.0
    %978 = vmatpush2.msra.mxu0 0.0
    %979 = vmatprep.subr.mxu0 0.0
    %980 = vmatpush2.msra.mxu0 0.0
    %981 = vmatprep.subr.mxu0 0.0
    %982 = vmatpush2.msra.mxu0 0.0
    %983 = vmatprep.mubr.f32.mxu0 0.0
    %984 = vmatmul.mubr.f32.gmra.mxu0 %v917
    %v985 = vpop.f32.mrf.mxu0
    %v986 = vadd.f32 0.0, %v985
    %v987 = vpop.f32.mrf.mxu0
    %988 = vdwg.mxu0
    %990 = vrot.lane.b32.xlu0 %v782, 64
    %v991 = vpop.permute.xlu0 %990
    %v992 = vsel %vm125, %v991, 0
    %994 = vmatprep.subr.mxu0 0.0
    %995 = vmatpush1.msra.mxu0 0.0
    %996 = vmatprep.subr.mxu0 0.0
    %997 = vmatpush1.msra.mxu0 0.0
    %998 = vmatprep.subr.mxu0 0.0
    %999 = vmatpush1.msra.mxu0 0.0
    %1000 = vmatprep.subr.mxu0 0.0
    %1001 = vmatpush1.msra.mxu0 0.0
    %1002 = vmatprep.subr.mxu0 0.0
    %1003 = vmatpush1.msra.mxu0 0.0
    %1004 = vmatprep.subr.mxu0 0.0
    %1005 = vmatpush1.msra.mxu0 0.0
    %1006 = vmatprep.subr.mxu0 0.0
    %1007 = vmatpush1.msra.mxu0 0.0
    %1008 = vmatprep.subr.mxu0 0.0
    %1009 = vmatpush1.msra.mxu0 0.0
    %1010 = vmatprep.subr.mxu0 0.0
    %1011 = vmatpush1.msra.mxu0 0.0
    %1012 = vmatprep.subr.mxu0 0.0
    %1013 = vmatpush1.msra.mxu0 0.0
    %1014 = vmatprep.subr.mxu0 0.0
    %1015 = vmatpush1.msra.mxu0 0.0
    %1016 = vmatprep.subr.mxu0 0.0
    %1017 = vmatpush1.msra.mxu0 0.0
    %1018 = vmatprep.subr.mxu0 0.0
    %1019 = vmatpush1.msra.mxu0 %v331
    %1020 = vmatprep.subr.mxu0 0.0
    %1021 = vmatpush1.msra.mxu0 %v330
    %1022 = vmatprep.subr.mxu0 0.0
    %1023 = vmatpush1.msra.mxu0 %v329
    %1024 = vmatprep.subr.mxu0 0.0
    %1025 = vmatpush1.msra.mxu0 %v328
    %1026 = vmatprep.subr.mxu0 0.0
    %1027 = vmatpush2.msra.mxu0 0.0
    %1028 = vmatprep.subr.mxu0 0.0
    %1029 = vmatpush2.msra.mxu0 0.0
    %1030 = vmatprep.subr.mxu0 0.0
    %1031 = vmatpush2.msra.mxu0 0.0
    %1032 = vmatprep.subr.mxu0 0.0
    %1033 = vmatpush2.msra.mxu0 0.0
    %1034 = vmatprep.subr.mxu0 0.0
    %1035 = vmatpush2.msra.mxu0 0.0
    %1036 = vmatprep.subr.mxu0 0.0
    %1037 = vmatpush2.msra.mxu0 0.0
    %1038 = vmatprep.subr.mxu0 0.0
    %1039 = vmatpush2.msra.mxu0 0.0
    %1040 = vmatprep.subr.mxu0 0.0
    %1041 = vmatpush2.msra.mxu0 0.0
    %1042 = vmatprep.subr.mxu0 0.0
    %1043 = vmatpush2.msra.mxu0 0.0
    %1044 = vmatprep.subr.mxu0 0.0
    %1045 = vmatpush2.msra.mxu0 0.0
    %1046 = vmatprep.subr.mxu0 0.0
    %1047 = vmatpush2.msra.mxu0 0.0
    %1048 = vmatprep.subr.mxu0 0.0
    %1049 = vmatpush2.msra.mxu0 0.0
    %1050 = vmatprep.subr.mxu0 0.0
    %1051 = vmatpush2.msra.mxu0 0.0
    %1052 = vmatprep.subr.mxu0 0.0
    %1053 = vmatpush2.msra.mxu0 0.0
    %1054 = vmatprep.subr.mxu0 0.0
    %1055 = vmatpush2.msra.mxu0 0.0
    %1056 = vmatprep.subr.mxu0 0.0
    %1057 = vmatpush2.msra.mxu0 0.0
    %1058 = vmatprep.mubr.f32.mxu0 0.0
    %1059 = vmatmul.mubr.f32.gmra.mxu0 %v992
    %v1060 = vpop.f32.mrf.mxu0
    %v1061 = vadd.f32 0.0, %v1060
    %v1062 = vpop.f32.mrf.mxu0
    %1063 = vdwg.mxu0
    %v1064 = vlaneseq
    %v1065 = vshrl.u32 %v1064, 7
    %v1066 = vsub.s32 0, %v1065
    %v1067 = vrot.slane %v786, %v1066
    %v1068 = vmul.f32 %v986, %v1067
    %v1069 = vlaneseq
    %v1070 = vshrl.u32 %v1069, 7
    %v1071 = vsub.s32 1, %v1070
    %v1072 = vrot.slane %v786, %v1071
    %v1073 = vmul.f32 %v1061, %v1072
    %v1074 = vadd.f32 %v1068, %v1073
    %v1075 = vlaneseq
    %v1076 = vshrl.u32 %v1075, 7
    %v1077 = vsub.s32 2, %v1076
    %v1078 = vrot.slane %v786, %v1077
    %v1079 = vadd.f32 %v1074, %v1078
    %v1080 = vxor.u32 %v1079, 2147483648
    %v1081 = vmul.f32 %v1080, 1.442695
    %v1082 = vpow.pop %v1081
    %v1083 = vadd.f32 %v1082, 1.0
    %v1084 = vrcp.pop %v1083
    %v1085 = vmul.f32 1.0, %v1084
    %v1086 = vmul.f32 %v1085, %v766
    %v1087 = vtanh.pop %v1079
    %1089 = vrot.lane.b32.xlu0 %v1087, 64
    %v1090 = vpop.permute.xlu0 %1089
    %v1092 = vmul.f32 %v1085, %v1090
    %1094 = vrot.lane.b32.xlu0 %v1092, 96
    %v1095 = vpop.permute.xlu0 %1094
    %v1097 = vadd.f32 %v1086, %v1095
    %v1098 = vlaneseq
    %v1099 = vshrl.u32 %v1098, 7
    %v1100 = vsub.s32 3, %v1099
    %v1101 = vrot.slane %v786, %v1100
    %v1102 = vmul.f32 %v1097, %v1101
    %v1103 = vlaneseq
    %v1104 = vshrl.u32 %v1103, 7
    %v1105 = vsub.s32 4, %v1104
    %v1106 = vrot.slane %v786, %v1105
    %v1107 = vadd.f32 %v1102, %v1106
    %v1108 = vtanh.pop %v1107
    %1110 = vrot.lane.b32.xlu0 %v1108, 64
    %v1111 = vpop.permute.xlu0 %1110
    %v1113 = vmul.f32 %v1085, %v1111
    %s1114 = scalar_lea.vmem %s3, 24
    %v1115 = vld [vmem:[%s1114] sm:$0xff]
    %s1116 = scalar_lea.vmem %s6, 24
    %v1117 = vld [vmem:[%s1116] sm:$0xff]
    %1118 = vmatprep.subr.mxu0 0.0
    %1119 = vmatpush1.msra.mxu0 0.0
    %1120 = vmatprep.subr.mxu0 0.0
    %1121 = vmatpush1.msra.mxu0 0.0
    %1122 = vmatprep.subr.mxu0 0.0
    %1123 = vmatpush1.msra.mxu0 0.0
    %1124 = vmatprep.subr.mxu0 0.0
    %1125 = vmatpush1.msra.mxu0 0.0
    %1126 = vmatprep.subr.mxu0 0.0
    %1127 = vmatpush1.msra.mxu0 0.0
    %1128 = vmatprep.subr.mxu0 0.0
    %1129 = vmatpush1.msra.mxu0 0.0
    %1130 = vmatprep.subr.mxu0 0.0
    %1131 = vmatpush1.msra.mxu0 0.0
    %1132 = vmatprep.subr.mxu0 0.0
    %1133 = vmatpush1.msra.mxu0 0.0
    %1134 = vmatprep.subr.mxu0 0.0
    %1135 = vmatpush1.msra.mxu0 0.0
    %1136 = vmatprep.subr.mxu0 0.0
    %1137 = vmatpush1.msra.mxu0 0.0
    %1138 = vmatprep.subr.mxu0 0.0
    %1139 = vmatpush1.msra.mxu0 0.0
    %1140 = vmatprep.subr.mxu0 0.0
    %1141 = vmatpush1.msra.mxu0 0.0
    %1142 = vmatprep.subr.mxu0 0.0
    %1143 = vmatpush1.msra.mxu0 %v124
    %1144 = vmatprep.subr.mxu0 0.0
    %1145 = vmatpush1.msra.mxu0 %v123
    %1146 = vmatprep.subr.mxu0 0.0
    %1147 = vmatpush1.msra.mxu0 %v122
    %1148 = vmatprep.subr.mxu0 0.0
    %1149 = vmatpush1.msra.mxu0 %v121
    %1150 = vmatprep.subr.mxu0 0.0
    %1151 = vmatpush2.msra.mxu0 0.0
    %1152 = vmatprep.subr.mxu0 0.0
    %1153 = vmatpush2.msra.mxu0 0.0
    %1154 = vmatprep.subr.mxu0 0.0
    %1155 = vmatpush2.msra.mxu0 0.0
    %1156 = vmatprep.subr.mxu0 0.0
    %1157 = vmatpush2.msra.mxu0 0.0
    %1158 = vmatprep.subr.mxu0 0.0
    %1159 = vmatpush2.msra.mxu0 0.0
    %1160 = vmatprep.subr.mxu0 0.0
    %1161 = vmatpush2.msra.mxu0 0.0
    %1162 = vmatprep.subr.mxu0 0.0
    %1163 = vmatpush2.msra.mxu0 0.0
    %1164 = vmatprep.subr.mxu0 0.0
    %1165 = vmatpush2.msra.mxu0 0.0
    %1166 = vmatprep.subr.mxu0 0.0
    %1167 = vmatpush2.msra.mxu0 0.0
    %1168 = vmatprep.subr.mxu0 0.0
    %1169 = vmatpush2.msra.mxu0 0.0
    %1170 = vmatprep.subr.mxu0 0.0
    %1171 = vmatpush2.msra.mxu0 0.0
    %1172 = vmatprep.subr.mxu0 0.0
    %1173 = vmatpush2.msra.mxu0 0.0
    %1174 = vmatprep.subr.mxu0 0.0
    %1175 = vmatpush2.msra.mxu0 0.0
    %1176 = vmatprep.subr.mxu0 0.0
    %1177 = vmatpush2.msra.mxu0 0.0
    %1178 = vmatprep.subr.mxu0 0.0
    %1179 = vmatpush2.msra.mxu0 0.0
    %1180 = vmatprep.subr.mxu0 0.0
    %1181 = vmatpush2.msra.mxu0 0.0
    %1182 = vmatprep.mubr.f32.mxu0 0.0
    %1183 = vmatmul.mubr.f32.gmra.mxu0 %v917
    %v1184 = vpop.f32.mrf.mxu0
    %v1185 = vadd.f32 0.0, %v1184
    %v1186 = vpop.f32.mrf.mxu0
    %1187 = vdwg.mxu0
    %v1188 = vlaneseq
    %v1189 = vshrl.u32 %v1188, 7
    %v1190 = vsub.s32 0, %v1189
    %v1191 = vrot.slane %v1115, %v1190
    %v1192 = vmul.f32 %v111, %v1191
    %v1193 = vlaneseq
    %v1194 = vshrl.u32 %v1193, 7
    %v1195 = vsub.s32 1, %v1194
    %v1196 = vrot.slane %v1115, %v1195
    %v1197 = vmul.f32 %v1185, %v1196
    %v1199 = vrot.slane %v1197, 2
    %v1201 = vadd.f32 %v1192, %v1199
    %v1202 = vlaneseq
    %v1203 = vshrl.u32 %v1202, 7
    %v1204 = vsub.s32 2, %v1203
    %v1205 = vrot.slane %v1115, %v1204
    %v1206 = vadd.f32 %v1201, %v1205
    %v1207 = vxor.u32 %v1206, 2147483648
    %v1208 = vmul.f32 %v1207, 1.442695
    %v1209 = vpow.pop %v1208
    %v1210 = vadd.f32 %v1209, 1.0
    %v1211 = vrcp.pop %v1210
    %v1212 = vmul.f32 1.0, %v1211
    %v1214 = vrot.slane %v896, 6
    %v1216 = vmul.f32 %v1212, %v1214
    %v1217 = vtanh.pop %v1206
    %1219 = vrot.lane.b32.xlu0 %v1217, 64
    %v1220 = vpop.permute.xlu0 %1219
    %v1222 = vmul.f32 %v1212, %v1220
    %1224 = vrot.lane.b32.xlu0 %v1222, 96
    %v1225 = vpop.permute.xlu0 %1224
    %v1227 = vadd.f32 %v1216, %v1225
    %v1228 = vlaneseq
    %v1229 = vshrl.u32 %v1228, 7
    %v1230 = vsub.s32 3, %v1229
    %v1231 = vrot.slane %v1115, %v1230
    %v1232 = vmul.f32 %v1227, %v1231
    %v1233 = vlaneseq
    %v1234 = vshrl.u32 %v1233, 7
    %v1235 = vsub.s32 4, %v1234
    %v1236 = vrot.slane %v1115, %v1235
    %v1237 = vadd.f32 %v1232, %v1236
    %v1238 = vtanh.pop %v1237
    %1240 = vrot.lane.b32.xlu0 %v1238, 64
    %v1241 = vpop.permute.xlu0 %1240
    %v1243 = vmul.f32 %v1212, %v1241
    %v1245 = vrot.slane %v1243, 6
    %1246 = vrot.lane.b32.xlu0 %v1245, 64
    %v1247 = vpop.permute.xlu0 %1246
    %v1248 = vsel %vm125, %v1247, 0
    %1250 = vmatprep.subr.mxu0 0.0
    %1251 = vmatpush1.msra.mxu0 0.0
    %1252 = vmatprep.subr.mxu0 0.0
    %1253 = vmatpush1.msra.mxu0 0.0
    %1254 = vmatprep.subr.mxu0 0.0
    %1255 = vmatpush1.msra.mxu0 0.0
    %1256 = vmatprep.subr.mxu0 0.0
    %1257 = vmatpush1.msra.mxu0 0.0
    %1258 = vmatprep.subr.mxu0 0.0
    %1259 = vmatpush1.msra.mxu0 0.0
    %1260 = vmatprep.subr.mxu0 0.0
    %1261 = vmatpush1.msra.mxu0 0.0
    %1262 = vmatprep.subr.mxu0 0.0
    %1263 = vmatpush1.msra.mxu0 0.0
    %1264 = vmatprep.subr.mxu0 0.0
    %1265 = vmatpush1.msra.mxu0 0.0
    %1266 = vmatprep.subr.mxu0 0.0
    %1267 = vmatpush1.msra.mxu0 0.0
    %1268 = vmatprep.subr.mxu0 0.0
    %1269 = vmatpush1.msra.mxu0 0.0
    %1270 = vmatprep.subr.mxu0 0.0
    %1271 = vmatpush1.msra.mxu0 0.0
    %1272 = vmatprep.subr.mxu0 0.0
    %1273 = vmatpush1.msra.mxu0 0.0
    %1274 = vmatprep.subr.mxu0 0.0
    %1275 = vmatpush1.msra.mxu0 %v252
    %1276 = vmatprep.subr.mxu0 0.0
    %1277 = vmatpush1.msra.mxu0 %v251
    %1278 = vmatprep.subr.mxu0 0.0
    %1279 = vmatpush1.msra.mxu0 %v250
    %1280 = vmatprep.subr.mxu0 0.0
    %1281 = vmatpush1.msra.mxu0 %v249
    %1282 = vmatprep.subr.mxu0 0.0
    %1283 = vmatpush2.msra.mxu0 0.0
    %1284 = vmatprep.subr.mxu0 0.0
    %1285 = vmatpush2.msra.mxu0 0.0
    %1286 = vmatprep.subr.mxu0 0.0
    %1287 = vmatpush2.msra.mxu0 0.0
    %1288 = vmatprep.subr.mxu0 0.0
    %1289 = vmatpush2.msra.mxu0 0.0
    %1290 = vmatprep.subr.mxu0 0.0
    %1291 = vmatpush2.msra.mxu0 0.0
    %1292 = vmatprep.subr.mxu0 0.0
    %1293 = vmatpush2.msra.mxu0 0.0
    %1294 = vmatprep.subr.mxu0 0.0
    %1295 = vmatpush2.msra.mxu0 0.0
    %1296 = vmatprep.subr.mxu0 0.0
    %1297 = vmatpush2.msra.mxu0 0.0
    %1298 = vmatprep.subr.mxu0 0.0
    %1299 = vmatpush2.msra.mxu0 0.0
    %1300 = vmatprep.subr.mxu0 0.0
    %1301 = vmatpush2.msra.mxu0 0.0
    %1302 = vmatprep.subr.mxu0 0.0
    %1303 = vmatpush2.msra.mxu0 0.0
    %1304 = vmatprep.subr.mxu0 0.0
    %1305 = vmatpush2.msra.mxu0 0.0
    %1306 = vmatprep.subr.mxu0 0.0
    %1307 = vmatpush2.msra.mxu0 0.0
    %1308 = vmatprep.subr.mxu0 0.0
    %1309 = vmatpush2.msra.mxu0 0.0
    %1310 = vmatprep.subr.mxu0 0.0
    %1311 = vmatpush2.msra.mxu0 0.0
    %1312 = vmatprep.subr.mxu0 0.0
    %1313 = vmatpush2.msra.mxu0 0.0
    %1314 = vmatprep.mubr.f32.mxu0 0.0
    %1315 = vmatmul.mubr.f32.gmra.mxu0 %v1248
    %v1316 = vpop.f32.mrf.mxu0
    %v1317 = vadd.f32 0.0, %v1316
    %v1318 = vpop.f32.mrf.mxu0
    %1319 = vdwg.mxu0
    %1321 = vrot.lane.b32.xlu0 %v1113, 64
    %v1322 = vpop.permute.xlu0 %1321
    %v1323 = vsel %vm125, %v1322, 0
    %1325 = vmatprep.subr.mxu0 0.0
    %1326 = vmatpush1.msra.mxu0 0.0
    %1327 = vmatprep.subr.mxu0 0.0
    %1328 = vmatpush1.msra.mxu0 0.0
    %1329 = vmatprep.subr.mxu0 0.0
    %1330 = vmatpush1.msra.mxu0 0.0
    %1331 = vmatprep.subr.mxu0 0.0
    %1332 = vmatpush1.msra.mxu0 0.0
    %1333 = vmatprep.subr.mxu0 0.0
    %1334 = vmatpush1.msra.mxu0 0.0
    %1335 = vmatprep.subr.mxu0 0.0
    %1336 = vmatpush1.msra.mxu0 0.0
    %1337 = vmatprep.subr.mxu0 0.0
    %1338 = vmatpush1.msra.mxu0 0.0
    %1339 = vmatprep.subr.mxu0 0.0
    %1340 = vmatpush1.msra.mxu0 0.0
    %1341 = vmatprep.subr.mxu0 0.0
    %1342 = vmatpush1.msra.mxu0 0.0
    %1343 = vmatprep.subr.mxu0 0.0
    %1344 = vmatpush1.msra.mxu0 0.0
    %1345 = vmatprep.subr.mxu0 0.0
    %1346 = vmatpush1.msra.mxu0 0.0
    %1347 = vmatprep.subr.mxu0 0.0
    %1348 = vmatpush1.msra.mxu0 0.0
    %1349 = vmatprep.subr.mxu0 0.0
    %1350 = vmatpush1.msra.mxu0 %v331
    %1351 = vmatprep.subr.mxu0 0.0
    %1352 = vmatpush1.msra.mxu0 %v330
    %1353 = vmatprep.subr.mxu0 0.0
    %1354 = vmatpush1.msra.mxu0 %v329
    %1355 = vmatprep.subr.mxu0 0.0
    %1356 = vmatpush1.msra.mxu0 %v328
    %1357 = vmatprep.subr.mxu0 0.0
    %1358 = vmatpush2.msra.mxu0 0.0
    %1359 = vmatprep.subr.mxu0 0.0
    %1360 = vmatpush2.msra.mxu0 0.0
    %1361 = vmatprep.subr.mxu0 0.0
    %1362 = vmatpush2.msra.mxu0 0.0
    %1363 = vmatprep.subr.mxu0 0.0
    %1364 = vmatpush2.msra.mxu0 0.0
    %1365 = vmatprep.subr.mxu0 0.0
    %1366 = vmatpush2.msra.mxu0 0.0
    %1367 = vmatprep.subr.mxu0 0.0
    %1368 = vmatpush2.msra.mxu0 0.0
    %1369 = vmatprep.subr.mxu0 0.0
    %1370 = vmatpush2.msra.mxu0 0.0
    %1371 = vmatprep.subr.mxu0 0.0
    %1372 = vmatpush2.msra.mxu0 0.0
    %1373 = vmatprep.subr.mxu0 0.0
    %1374 = vmatpush2.msra.mxu0 0.0
    %1375 = vmatprep.subr.mxu0 0.0
    %1376 = vmatpush2.msra.mxu0 0.0
    %1377 = vmatprep.subr.mxu0 0.0
    %1378 = vmatpush2.msra.mxu0 0.0
    %1379 = vmatprep.subr.mxu0 0.0
    %1380 = vmatpush2.msra.mxu0 0.0
    %1381 = vmatprep.subr.mxu0 0.0
    %1382 = vmatpush2.msra.mxu0 0.0
    %1383 = vmatprep.subr.mxu0 0.0
    %1384 = vmatpush2.msra.mxu0 0.0
    %1385 = vmatprep.subr.mxu0 0.0
    %1386 = vmatpush2.msra.mxu0 0.0
    %1387 = vmatprep.subr.mxu0 0.0
    %1388 = vmatpush2.msra.mxu0 0.0
    %1389 = vmatprep.mubr.f32.mxu0 0.0
    %1390 = vmatmul.mubr.f32.gmra.mxu0 %v1323
    %v1391 = vpop.f32.mrf.mxu0
    %v1392 = vadd.f32 0.0, %v1391
    %v1393 = vpop.f32.mrf.mxu0
    %1394 = vdwg.mxu0
    %v1395 = vlaneseq
    %v1396 = vshrl.u32 %v1395, 7
    %v1397 = vsub.s32 0, %v1396
    %v1398 = vrot.slane %v1117, %v1397
    %v1399 = vmul.f32 %v1317, %v1398
    %v1400 = vlaneseq
    %v1401 = vshrl.u32 %v1400, 7
    %v1402 = vsub.s32 1, %v1401
    %v1403 = vrot.slane %v1117, %v1402
    %v1404 = vmul.f32 %v1392, %v1403
    %v1405 = vadd.f32 %v1399, %v1404
    %v1406 = vlaneseq
    %v1407 = vshrl.u32 %v1406, 7
    %v1408 = vsub.s32 2, %v1407
    %v1409 = vrot.slane %v1117, %v1408
    %v1410 = vadd.f32 %v1405, %v1409
    %v1411 = vxor.u32 %v1410, 2147483648
    %v1412 = vmul.f32 %v1411, 1.442695
    %v1413 = vpow.pop %v1412
    %v1414 = vadd.f32 %v1413, 1.0
    %v1415 = vrcp.pop %v1414
    %v1416 = vmul.f32 1.0, %v1415
    %v1417 = vmul.f32 %v1416, %v1097
    %v1418 = vtanh.pop %v1410
    %1420 = vrot.lane.b32.xlu0 %v1418, 64
    %v1421 = vpop.permute.xlu0 %1420
    %v1423 = vmul.f32 %v1416, %v1421
    %1425 = vrot.lane.b32.xlu0 %v1423, 96
    %v1426 = vpop.permute.xlu0 %1425
    %v1428 = vadd.f32 %v1417, %v1426
    %v1429 = vlaneseq
    %v1430 = vshrl.u32 %v1429, 7
    %v1431 = vsub.s32 3, %v1430
    %v1432 = vrot.slane %v1117, %v1431
    %v1433 = vmul.f32 %v1428, %v1432
    %v1434 = vlaneseq
    %v1435 = vshrl.u32 %v1434, 7
    %v1436 = vsub.s32 4, %v1435
    %v1437 = vrot.slane %v1117, %v1436
    %v1438 = vadd.f32 %v1433, %v1437
    %v1439 = vtanh.pop %v1438
    %1441 = vrot.lane.b32.xlu0 %v1439, 64
    %v1442 = vpop.permute.xlu0 %1441
    %v1444 = vmul.f32 %v1416, %v1442
    %s1445 = scalar_lea.vmem %s3, 32
    %v1446 = vld [vmem:[%s1445] sm:$0xff]
    %s1447 = scalar_lea.vmem %s6, 32
    %v1448 = vld [vmem:[%s1447] sm:$0xff]
    %1449 = vmatprep.subr.mxu0 0.0
    %1450 = vmatpush1.msra.mxu0 0.0
    %1451 = vmatprep.subr.mxu0 0.0
    %1452 = vmatpush1.msra.mxu0 0.0
    %1453 = vmatprep.subr.mxu0 0.0
    %1454 = vmatpush1.msra.mxu0 0.0
    %1455 = vmatprep.subr.mxu0 0.0
    %1456 = vmatpush1.msra.mxu0 0.0
    %1457 = vmatprep.subr.mxu0 0.0
    %1458 = vmatpush1.msra.mxu0 0.0
    %1459 = vmatprep.subr.mxu0 0.0
    %1460 = vmatpush1.msra.mxu0 0.0
    %1461 = vmatprep.subr.mxu0 0.0
    %1462 = vmatpush1.msra.mxu0 0.0
    %1463 = vmatprep.subr.mxu0 0.0
    %1464 = vmatpush1.msra.mxu0 0.0
    %1465 = vmatprep.subr.mxu0 0.0
    %1466 = vmatpush1.msra.mxu0 0.0
    %1467 = vmatprep.subr.mxu0 0.0
    %1468 = vmatpush1.msra.mxu0 0.0
    %1469 = vmatprep.subr.mxu0 0.0
    %1470 = vmatpush1.msra.mxu0 0.0
    %1471 = vmatprep.subr.mxu0 0.0
    %1472 = vmatpush1.msra.mxu0 0.0
    %1473 = vmatprep.subr.mxu0 0.0
    %1474 = vmatpush1.msra.mxu0 %v124
    %1475 = vmatprep.subr.mxu0 0.0
    %1476 = vmatpush1.msra.mxu0 %v123
    %1477 = vmatprep.subr.mxu0 0.0
    %1478 = vmatpush1.msra.mxu0 %v122
    %1479 = vmatprep.subr.mxu0 0.0
    %1480 = vmatpush1.msra.mxu0 %v121
    %1481 = vmatprep.subr.mxu0 0.0
    %1482 = vmatpush2.msra.mxu0 0.0
    %1483 = vmatprep.subr.mxu0 0.0
    %1484 = vmatpush2.msra.mxu0 0.0
    %1485 = vmatprep.subr.mxu0 0.0
    %1486 = vmatpush2.msra.mxu0 0.0
    %1487 = vmatprep.subr.mxu0 0.0
    %1488 = vmatpush2.msra.mxu0 0.0
    %1489 = vmatprep.subr.mxu0 0.0
    %1490 = vmatpush2.msra.mxu0 0.0
    %1491 = vmatprep.subr.mxu0 0.0
    %1492 = vmatpush2.msra.mxu0 0.0
    %1493 = vmatprep.subr.mxu0 0.0
    %1494 = vmatpush2.msra.mxu0 0.0
    %1495 = vmatprep.subr.mxu0 0.0
    %1496 = vmatpush2.msra.mxu0 0.0
    %1497 = vmatprep.subr.mxu0 0.0
    %1498 = vmatpush2.msra.mxu0 0.0
    %1499 = vmatprep.subr.mxu0 0.0
    %1500 = vmatpush2.msra.mxu0 0.0
    %1501 = vmatprep.subr.mxu0 0.0
    %1502 = vmatpush2.msra.mxu0 0.0
    %1503 = vmatprep.subr.mxu0 0.0
    %1504 = vmatpush2.msra.mxu0 0.0
    %1505 = vmatprep.subr.mxu0 0.0
    %1506 = vmatpush2.msra.mxu0 0.0
    %1507 = vmatprep.subr.mxu0 0.0
    %1508 = vmatpush2.msra.mxu0 0.0
    %1509 = vmatprep.subr.mxu0 0.0
    %1510 = vmatpush2.msra.mxu0 0.0
    %1511 = vmatprep.subr.mxu0 0.0
    %1512 = vmatpush2.msra.mxu0 0.0
    %1513 = vmatprep.mubr.f32.mxu0 0.0
    %1514 = vmatmul.mubr.f32.gmra.mxu0 %v1248
    %v1515 = vpop.f32.mrf.mxu0
    %v1516 = vadd.f32 0.0, %v1515
    %v1517 = vpop.f32.mrf.mxu0
    %1518 = vdwg.mxu0
    %v1519 = vlaneseq
    %v1520 = vshrl.u32 %v1519, 7
    %v1521 = vsub.s32 0, %v1520
    %v1522 = vrot.slane %v1446, %v1521
    %v1523 = vmul.f32 %v116, %v1522
    %v1524 = vlaneseq
    %v1525 = vshrl.u32 %v1524, 7
    %v1526 = vsub.s32 1, %v1525
    %v1527 = vrot.slane %v1446, %v1526
    %v1528 = vmul.f32 %v1516, %v1527
    %v1529 = vadd.f32 %v1523, %v1528
    %v1530 = vlaneseq
    %v1531 = vshrl.u32 %v1530, 7
    %v1532 = vsub.s32 2, %v1531
    %v1533 = vrot.slane %v1446, %v1532
    %v1534 = vadd.f32 %v1529, %v1533
    %v1535 = vxor.u32 %v1534, 2147483648
    %v1536 = vmul.f32 %v1535, 1.442695
    %v1537 = vpow.pop %v1536
    %v1538 = vadd.f32 %v1537, 1.0
    %v1539 = vrcp.pop %v1538
    %v1540 = vmul.f32 1.0, %v1539
    %v1542 = vrot.slane %v1227, 6
    %v1544 = vmul.f32 %v1540, %v1542
    %v1545 = vtanh.pop %v1534
    %1547 = vrot.lane.b32.xlu0 %v1545, 64
    %v1548 = vpop.permute.xlu0 %1547
    %v1550 = vmul.f32 %v1540, %v1548
    %1552 = vrot.lane.b32.xlu0 %v1550, 96
    %v1553 = vpop.permute.xlu0 %1552
    %v1555 = vadd.f32 %v1544, %v1553
    %v1556 = vlaneseq
    %v1557 = vshrl.u32 %v1556, 7
    %v1558 = vsub.s32 3, %v1557
    %v1559 = vrot.slane %v1446, %v1558
    %v1560 = vmul.f32 %v1555, %v1559
    %v1561 = vlaneseq
    %v1562 = vshrl.u32 %v1561, 7
    %v1563 = vsub.s32 4, %v1562
    %v1564 = vrot.slane %v1446, %v1563
    %v1565 = vadd.f32 %v1560, %v1564
    %v1566 = vtanh.pop %v1565
    %1568 = vrot.lane.b32.xlu0 %v1566, 64
    %v1569 = vpop.permute.xlu0 %1568
    %v1571 = vmul.f32 %v1540, %v1569
    %1573 = vrot.lane.b32.xlu0 %v1571, 64
    %v1574 = vpop.permute.xlu0 %1573
    %v1575 = vsel %vm125, %v1574, 0
    %1577 = vmatprep.subr.mxu0 0.0
    %1578 = vmatpush1.msra.mxu0 0.0
    %1579 = vmatprep.subr.mxu0 0.0
    %1580 = vmatpush1.msra.mxu0 0.0
    %1581 = vmatprep.subr.mxu0 0.0
    %1582 = vmatpush1.msra.mxu0 0.0
    %1583 = vmatprep.subr.mxu0 0.0
    %1584 = vmatpush1.msra.mxu0 0.0
    %1585 = vmatprep.subr.mxu0 0.0
    %1586 = vmatpush1.msra.mxu0 0.0
    %1587 = vmatprep.subr.mxu0 0.0
    %1588 = vmatpush1.msra.mxu0 0.0
    %1589 = vmatprep.subr.mxu0 0.0
    %1590 = vmatpush1.msra.mxu0 0.0
    %1591 = vmatprep.subr.mxu0 0.0
    %1592 = vmatpush1.msra.mxu0 0.0
    %1593 = vmatprep.subr.mxu0 0.0
    %1594 = vmatpush1.msra.mxu0 0.0
    %1595 = vmatprep.subr.mxu0 0.0
    %1596 = vmatpush1.msra.mxu0 0.0
    %1597 = vmatprep.subr.mxu0 0.0
    %1598 = vmatpush1.msra.mxu0 0.0
    %1599 = vmatprep.subr.mxu0 0.0
    %1600 = vmatpush1.msra.mxu0 0.0
    %1601 = vmatprep.subr.mxu0 0.0
    %1602 = vmatpush1.msra.mxu0 %v252
    %1603 = vmatprep.subr.mxu0 0.0
    %1604 = vmatpush1.msra.mxu0 %v251
    %1605 = vmatprep.subr.mxu0 0.0
    %1606 = vmatpush1.msra.mxu0 %v250
    %1607 = vmatprep.subr.mxu0 0.0
    %1608 = vmatpush1.msra.mxu0 %v249
    %1609 = vmatprep.subr.mxu0 0.0
    %1610 = vmatpush2.msra.mxu0 0.0
    %1611 = vmatprep.subr.mxu0 0.0
    %1612 = vmatpush2.msra.mxu0 0.0
    %1613 = vmatprep.subr.mxu0 0.0
    %1614 = vmatpush2.msra.mxu0 0.0
    %1615 = vmatprep.subr.mxu0 0.0
    %1616 = vmatpush2.msra.mxu0 0.0
    %1617 = vmatprep.subr.mxu0 0.0
    %1618 = vmatpush2.msra.mxu0 0.0
    %1619 = vmatprep.subr.mxu0 0.0
    %1620 = vmatpush2.msra.mxu0 0.0
    %1621 = vmatprep.subr.mxu0 0.0
    %1622 = vmatpush2.msra.mxu0 0.0
    %1623 = vmatprep.subr.mxu0 0.0
    %1624 = vmatpush2.msra.mxu0 0.0
    %1625 = vmatprep.subr.mxu0 0.0
    %1626 = vmatpush2.msra.mxu0 0.0
    %1627 = vmatprep.subr.mxu0 0.0
    %1628 = vmatpush2.msra.mxu0 0.0
    %1629 = vmatprep.subr.mxu0 0.0
    %1630 = vmatpush2.msra.mxu0 0.0
    %1631 = vmatprep.subr.mxu0 0.0
    %1632 = vmatpush2.msra.mxu0 0.0
    %1633 = vmatprep.subr.mxu0 0.0
    %1634 = vmatpush2.msra.mxu0 0.0
    %1635 = vmatprep.subr.mxu0 0.0
    %1636 = vmatpush2.msra.mxu0 0.0
    %1637 = vmatprep.subr.mxu0 0.0
    %1638 = vmatpush2.msra.mxu0 0.0
    %1639 = vmatprep.subr.mxu0 0.0
    %1640 = vmatpush2.msra.mxu0 0.0
    %1641 = vmatprep.mubr.f32.mxu0 0.0
    %1642 = vmatmul.mubr.f32.gmra.mxu0 %v1575
    %v1643 = vpop.f32.mrf.mxu0
    %v1644 = vadd.f32 0.0, %v1643
    %v1645 = vpop.f32.mrf.mxu0
    %1646 = vdwg.mxu0
    %1648 = vrot.lane.b32.xlu0 %v1444, 64
    %v1649 = vpop.permute.xlu0 %1648
    %v1650 = vsel %vm125, %v1649, 0
    %1652 = vmatprep.subr.mxu0 0.0
    %1653 = vmatpush1.msra.mxu0 0.0
    %1654 = vmatprep.subr.mxu0 0.0
    %1655 = vmatpush1.msra.mxu0 0.0
    %1656 = vmatprep.subr.mxu0 0.0
    %1657 = vmatpush1.msra.mxu0 0.0
    %1658 = vmatprep.subr.mxu0 0.0
    %1659 = vmatpush1.msra.mxu0 0.0
    %1660 = vmatprep.subr.mxu0 0.0
    %1661 = vmatpush1.msra.mxu0 0.0
    %1662 = vmatprep.subr.mxu0 0.0
    %1663 = vmatpush1.msra.mxu0 0.0
    %1664 = vmatprep.subr.mxu0 0.0
    %1665 = vmatpush1.msra.mxu0 0.0
    %1666 = vmatprep.subr.mxu0 0.0
    %1667 = vmatpush1.msra.mxu0 0.0
    %1668 = vmatprep.subr.mxu0 0.0
    %1669 = vmatpush1.msra.mxu0 0.0
    %1670 = vmatprep.subr.mxu0 0.0
    %1671 = vmatpush1.msra.mxu0 0.0
    %1672 = vmatprep.subr.mxu0 0.0
    %1673 = vmatpush1.msra.mxu0 0.0
    %1674 = vmatprep.subr.mxu0 0.0
    %1675 = vmatpush1.msra.mxu0 0.0
    %1676 = vmatprep.subr.mxu0 0.0
    %1677 = vmatpush1.msra.mxu0 %v331
    %1678 = vmatprep.subr.mxu0 0.0
    %1679 = vmatpush1.msra.mxu0 %v330
    %1680 = vmatprep.subr.mxu0 0.0
    %1681 = vmatpush1.msra.mxu0 %v329
    %1682 = vmatprep.subr.mxu0 0.0
    %1683 = vmatpush1.msra.mxu0 %v328
    %1684 = vmatprep.subr.mxu0 0.0
    %1685 = vmatpush2.msra.mxu0 0.0
    %1686 = vmatprep.subr.mxu0 0.0
    %1687 = vmatpush2.msra.mxu0 0.0
    %1688 = vmatprep.subr.mxu0 0.0
    %1689 = vmatpush2.msra.mxu0 0.0
    %1690 = vmatprep.subr.mxu0 0.0
    %1691 = vmatpush2.msra.mxu0 0.0
    %1692 = vmatprep.subr.mxu0 0.0
    %1693 = vmatpush2.msra.mxu0 0.0
    %1694 = vmatprep.subr.mxu0 0.0
    %1695 = vmatpush2.msra.mxu0 0.0
    %1696 = vmatprep.subr.mxu0 0.0
    %1697 = vmatpush2.msra.mxu0 0.0
    %1698 = vmatprep.subr.mxu0 0.0
    %1699 = vmatpush2.msra.mxu0 0.0
    %1700 = vmatprep.subr.mxu0 0.0
    %1701 = vmatpush2.msra.mxu0 0.0
    %1702 = vmatprep.subr.mxu0 0.0
    %1703 = vmatpush2.msra.mxu0 0.0
    %1704 = vmatprep.subr.mxu0 0.0
    %1705 = vmatpush2.msra.mxu0 0.0
    %1706 = vmatprep.subr.mxu0 0.0
    %1707 = vmatpush2.msra.mxu0 0.0
    %1708 = vmatprep.subr.mxu0 0.0
    %1709 = vmatpush2.msra.mxu0 0.0
    %1710 = vmatprep.subr.mxu0 0.0
    %1711 = vmatpush2.msra.mxu0 0.0
    %1712 = vmatprep.subr.mxu0 0.0
    %1713 = vmatpush2.msra.mxu0 0.0
    %1714 = vmatprep.subr.mxu0 0.0
    %1715 = vmatpush2.msra.mxu0 0.0
    %1716 = vmatprep.mubr.f32.mxu0 0.0
    %1717 = vmatmul.mubr.f32.gmra.mxu0 %v1650
    %v1718 = vpop.f32.mrf.mxu0
    %v1719 = vadd.f32 0.0, %v1718
    %v1720 = vpop.f32.mrf.mxu0
    %1721 = vdwg.mxu0
    %v1722 = vlaneseq
    %v1723 = vshrl.u32 %v1722, 7
    %v1724 = vsub.s32 0, %v1723
    %v1725 = vrot.slane %v1448, %v1724
    %v1726 = vmul.f32 %v1644, %v1725
    %v1727 = vlaneseq
    %v1728 = vshrl.u32 %v1727, 7
    %v1729 = vsub.s32 1, %v1728
    %v1730 = vrot.slane %v1448, %v1729
    %v1731 = vmul.f32 %v1719, %v1730
    %v1732 = vadd.f32 %v1726, %v1731
    %v1733 = vlaneseq
    %v1734 = vshrl.u32 %v1733, 7
    %v1735 = vsub.s32 2, %v1734
    %v1736 = vrot.slane %v1448, %v1735
    %v1737 = vadd.f32 %v1732, %v1736
    %v1738 = vxor.u32 %v1737, 2147483648
    %v1739 = vmul.f32 %v1738, 1.442695
    %v1740 = vpow.pop %v1739
    %v1741 = vadd.f32 %v1740, 1.0
    %v1742 = vrcp.pop %v1741
    %v1743 = vmul.f32 1.0, %v1742
    %v1744 = vmul.f32 %v1743, %v1428
    %v1745 = vtanh.pop %v1737
    %1747 = vrot.lane.b32.xlu0 %v1745, 64
    %v1748 = vpop.permute.xlu0 %1747
    %v1750 = vmul.f32 %v1743, %v1748
    %1752 = vrot.lane.b32.xlu0 %v1750, 96
    %v1753 = vpop.permute.xlu0 %1752
    %v1755 = vadd.f32 %v1744, %v1753
    %v1756 = vlaneseq
    %v1757 = vshrl.u32 %v1756, 7
    %v1758 = vsub.s32 3, %v1757
    %v1759 = vrot.slane %v1448, %v1758
    %v1760 = vmul.f32 %v1755, %v1759
    %v1761 = vlaneseq
    %v1762 = vshrl.u32 %v1761, 7
    %v1763 = vsub.s32 4, %v1762
    %v1764 = vrot.slane %v1448, %v1763
    %v1765 = vadd.f32 %v1760, %v1764
    %v1766 = vtanh.pop %v1765
    %1768 = vrot.lane.b32.xlu0 %v1766, 64
    %v1769 = vpop.permute.xlu0 %1768
    %v1771 = vmul.f32 %v1743, %v1769
    %s1772 = scalar_lea.vmem %s3, 40
    %v1773 = vld [vmem:[%s1772] sm:$0xff]
    %s1774 = scalar_lea.vmem %s6, 40
    %v1775 = vld [vmem:[%s1774] sm:$0xff]
    %1776 = vmatprep.subr.mxu0 0.0
    %1777 = vmatpush1.msra.mxu0 0.0
    %1778 = vmatprep.subr.mxu0 0.0
    %1779 = vmatpush1.msra.mxu0 0.0
    %1780 = vmatprep.subr.mxu0 0.0
    %1781 = vmatpush1.msra.mxu0 0.0
    %1782 = vmatprep.subr.mxu0 0.0
    %1783 = vmatpush1.msra.mxu0 0.0
    %1784 = vmatprep.subr.mxu0 0.0
    %1785 = vmatpush1.msra.mxu0 0.0
    %1786 = vmatprep.subr.mxu0 0.0
    %1787 = vmatpush1.msra.mxu0 0.0
    %1788 = vmatprep.subr.mxu0 0.0
    %1789 = vmatpush1.msra.mxu0 0.0
    %1790 = vmatprep.subr.mxu0 0.0
    %1791 = vmatpush1.msra.mxu0 0.0
    %1792 = vmatprep.subr.mxu0 0.0
    %1793 = vmatpush1.msra.mxu0 0.0
    %1794 = vmatprep.subr.mxu0 0.0
    %1795 = vmatpush1.msra.mxu0 0.0
    %1796 = vmatprep.subr.mxu0 0.0
    %1797 = vmatpush1.msra.mxu0 0.0
    %1798 = vmatprep.subr.mxu0 0.0
    %1799 = vmatpush1.msra.mxu0 0.0
    %1800 = vmatprep.subr.mxu0 0.0
    %1801 = vmatpush1.msra.mxu0 %v124
    %1802 = vmatprep.subr.mxu0 0.0
    %1803 = vmatpush1.msra.mxu0 %v123
    %1804 = vmatprep.subr.mxu0 0.0
    %1805 = vmatpush1.msra.mxu0 %v122
    %1806 = vmatprep.subr.mxu0 0.0
    %1807 = vmatpush1.msra.mxu0 %v121
    %1808 = vmatprep.subr.mxu0 0.0
    %1809 = vmatpush2.msra.mxu0 0.0
    %1810 = vmatprep.subr.mxu0 0.0
    %1811 = vmatpush2.msra.mxu0 0.0
    %1812 = vmatprep.subr.mxu0 0.0
    %1813 = vmatpush2.msra.mxu0 0.0
    %1814 = vmatprep.subr.mxu0 0.0
    %1815 = vmatpush2.msra.mxu0 0.0
    %1816 = vmatprep.subr.mxu0 0.0
    %1817 = vmatpush2.msra.mxu0 0.0
    %1818 = vmatprep.subr.mxu0 0.0
    %1819 = vmatpush2.msra.mxu0 0.0
    %1820 = vmatprep.subr.mxu0 0.0
    %1821 = vmatpush2.msra.mxu0 0.0
    %1822 = vmatprep.subr.mxu0 0.0
    %1823 = vmatpush2.msra.mxu0 0.0
    %1824 = vmatprep.subr.mxu0 0.0
    %1825 = vmatpush2.msra.mxu0 0.0
    %1826 = vmatprep.subr.mxu0 0.0
    %1827 = vmatpush2.msra.mxu0 0.0
    %1828 = vmatprep.subr.mxu0 0.0
    %1829 = vmatpush2.msra.mxu0 0.0
    %1830 = vmatprep.subr.mxu0 0.0
    %1831 = vmatpush2.msra.mxu0 0.0
    %1832 = vmatprep.subr.mxu0 0.0
    %1833 = vmatpush2.msra.mxu0 0.0
    %1834 = vmatprep.subr.mxu0 0.0
    %1835 = vmatpush2.msra.mxu0 0.0
    %1836 = vmatprep.subr.mxu0 0.0
    %1837 = vmatpush2.msra.mxu0 0.0
    %1838 = vmatprep.subr.mxu0 0.0
    %1839 = vmatpush2.msra.mxu0 0.0
    %1840 = vmatprep.mubr.f32.mxu0 0.0
    %1841 = vmatmul.mubr.f32.gmra.mxu0 %v1575
    %v1842 = vpop.f32.mrf.mxu0
    %v1843 = vadd.f32 0.0, %v1842
    %v1844 = vpop.f32.mrf.mxu0
    %1845 = vdwg.mxu0
    %v1846 = vlaneseq
    %v1847 = vshrl.u32 %v1846, 7
    %v1848 = vsub.s32 0, %v1847
    %v1849 = vrot.slane %v1773, %v1848
    %v1850 = vmul.f32 %v116, %v1849
    %v1851 = vlaneseq
    %v1852 = vshrl.u32 %v1851, 7
    %v1853 = vsub.s32 1, %v1852
    %v1854 = vrot.slane %v1773, %v1853
    %v1855 = vmul.f32 %v1843, %v1854
    %v1857 = vrot.slane %v1855, 6
    %v1859 = vadd.f32 %v1850, %v1857
    %v1860 = vlaneseq
    %v1861 = vshrl.u32 %v1860, 7
    %v1862 = vsub.s32 2, %v1861
    %v1863 = vrot.slane %v1773, %v1862
    %v1864 = vadd.f32 %v1859, %v1863
    %v1865 = vxor.u32 %v1864, 2147483648
    %v1866 = vmul.f32 %v1865, 1.442695
    %v1867 = vpow.pop %v1866
    %v1868 = vadd.f32 %v1867, 1.0
    %v1869 = vrcp.pop %v1868
    %v1870 = vmul.f32 1.0, %v1869
    %v1872 = vrot.slane %v1555, 6
    %v1874 = vmul.f32 %v1870, %v1872
    %v1875 = vtanh.pop %v1864
    %1877 = vrot.lane.b32.xlu0 %v1875, 64
    %v1878 = vpop.permute.xlu0 %1877
    %v1880 = vmul.f32 %v1870, %v1878
    %1882 = vrot.lane.b32.xlu0 %v1880, 96
    %v1883 = vpop.permute.xlu0 %1882
    %v1885 = vadd.f32 %v1874, %v1883
    %v1886 = vlaneseq
    %v1887 = vshrl.u32 %v1886, 7
    %v1888 = vsub.s32 3, %v1887
    %v1889 = vrot.slane %v1773, %v1888
    %v1890 = vmul.f32 %v1885, %v1889
    %v1891 = vlaneseq
    %v1892 = vshrl.u32 %v1891, 7
    %v1893 = vsub.s32 4, %v1892
    %v1894 = vrot.slane %v1773, %v1893
    %v1895 = vadd.f32 %v1890, %v1894
    %v1896 = vtanh.pop %v1895
    %1898 = vrot.lane.b32.xlu0 %v1896, 64
    %v1899 = vpop.permute.xlu0 %1898
    %v1901 = vmul.f32 %v1870, %v1899
    %v1903 = vrot.slane %v1901, 2
    %1904 = vrot.lane.b32.xlu0 %v1903, 64
    %v1905 = vpop.permute.xlu0 %1904
    %v1906 = vsel %vm125, %v1905, 0
    %1908 = vmatprep.subr.mxu0 0.0
    %1909 = vmatpush1.msra.mxu0 0.0
    %1910 = vmatprep.subr.mxu0 0.0
    %1911 = vmatpush1.msra.mxu0 0.0
    %1912 = vmatprep.subr.mxu0 0.0
    %1913 = vmatpush1.msra.mxu0 0.0
    %1914 = vmatprep.subr.mxu0 0.0
    %1915 = vmatpush1.msra.mxu0 0.0
    %1916 = vmatprep.subr.mxu0 0.0
    %1917 = vmatpush1.msra.mxu0 0.0
    %1918 = vmatprep.subr.mxu0 0.0
    %1919 = vmatpush1.msra.mxu0 0.0
    %1920 = vmatprep.subr.mxu0 0.0
    %1921 = vmatpush1.msra.mxu0 0.0
    %1922 = vmatprep.subr.mxu0 0.0
    %1923 = vmatpush1.msra.mxu0 0.0
    %1924 = vmatprep.subr.mxu0 0.0
    %1925 = vmatpush1.msra.mxu0 0.0
    %1926 = vmatprep.subr.mxu0 0.0
    %1927 = vmatpush1.msra.mxu0 0.0
    %1928 = vmatprep.subr.mxu0 0.0
    %1929 = vmatpush1.msra.mxu0 0.0
    %1930 = vmatprep.subr.mxu0 0.0
    %1931 = vmatpush1.msra.mxu0 0.0
    %1932 = vmatprep.subr.mxu0 0.0
    %1933 = vmatpush1.msra.mxu0 %v252
    %1934 = vmatprep.subr.mxu0 0.0
    %1935 = vmatpush1.msra.mxu0 %v251
    %1936 = vmatprep.subr.mxu0 0.0
    %1937 = vmatpush1.msra.mxu0 %v250
    %1938 = vmatprep.subr.mxu0 0.0
    %1939 = vmatpush1.msra.mxu0 %v249
    %1940 = vmatprep.subr.mxu0 0.0
    %1941 = vmatpush2.msra.mxu0 0.0
    %1942 = vmatprep.subr.mxu0 0.0
    %1943 = vmatpush2.msra.mxu0 0.0
    %1944 = vmatprep.subr.mxu0 0.0
    %1945 = vmatpush2.msra.mxu0 0.0
    %1946 = vmatprep.subr.mxu0 0.0
    %1947 = vmatpush2.msra.mxu0 0.0
    %1948 = vmatprep.subr.mxu0 0.0
    %1949 = vmatpush2.msra.mxu0 0.0
    %1950 = vmatprep.subr.mxu0 0.0
    %1951 = vmatpush2.msra.mxu0 0.0
    %1952 = vmatprep.subr.mxu0 0.0
    %1953 = vmatpush2.msra.mxu0 0.0
    %1954 = vmatprep.subr.mxu0 0.0
    %1955 = vmatpush2.msra.mxu0 0.0
    %1956 = vmatprep.subr.mxu0 0.0
    %1957 = vmatpush2.msra.mxu0 0.0
    %1958 = vmatprep.subr.mxu0 0.0
    %1959 = vmatpush2.msra.mxu0 0.0
    %1960 = vmatprep.subr.mxu0 0.0
    %1961 = vmatpush2.msra.mxu0 0.0
    %1962 = vmatprep.subr.mxu0 0.0
    %1963 = vmatpush2.msra.mxu0 0.0
    %1964 = vmatprep.subr.mxu0 0.0
    %1965 = vmatpush2.msra.mxu0 0.0
    %1966 = vmatprep.subr.mxu0 0.0
    %1967 = vmatpush2.msra.mxu0 0.0
    %1968 = vmatprep.subr.mxu0 0.0
    %1969 = vmatpush2.msra.mxu0 0.0
    %1970 = vmatprep.subr.mxu0 0.0
    %1971 = vmatpush2.msra.mxu0 0.0
    %1972 = vmatprep.mubr.f32.mxu0 0.0
    %1973 = vmatmul.mubr.f32.gmra.mxu0 %v1906
    %v1974 = vpop.f32.mrf.mxu0
    %v1975 = vadd.f32 0.0, %v1974
    %v1976 = vpop.f32.mrf.mxu0
    %1977 = vdwg.mxu0
    %1979 = vrot.lane.b32.xlu0 %v1771, 64
    %v1980 = vpop.permute.xlu0 %1979
    %v1981 = vsel %vm125, %v1980, 0
    %1983 = vmatprep.subr.mxu0 0.0
    %1984 = vmatpush1.msra.mxu0 0.0
    %1985 = vmatprep.subr.mxu0 0.0
    %1986 = vmatpush1.msra.mxu0 0.0
    %1987 = vmatprep.subr.mxu0 0.0
    %1988 = vmatpush1.msra.mxu0 0.0
    %1989 = vmatprep.subr.mxu0 0.0
    %1990 = vmatpush1.msra.mxu0 0.0
    %1991 = vmatprep.subr.mxu0 0.0
    %1992 = vmatpush1.msra.mxu0 0.0
    %1993 = vmatprep.subr.mxu0 0.0
    %1994 = vmatpush1.msra.mxu0 0.0
    %1995 = vmatprep.subr.mxu0 0.0
    %1996 = vmatpush1.msra.mxu0 0.0
    %1997 = vmatprep.subr.mxu0 0.0
    %1998 = vmatpush1.msra.mxu0 0.0
    %1999 = vmatprep.subr.mxu0 0.0
    %2000 = vmatpush1.msra.mxu0 0.0
    %2001 = vmatprep.subr.mxu0 0.0
    %2002 = vmatpush1.msra.mxu0 0.0
    %2003 = vmatprep.subr.mxu0 0.0
    %2004 = vmatpush1.msra.mxu0 0.0
    %2005 = vmatprep.subr.mxu0 0.0
    %2006 = vmatpush1.msra.mxu0 0.0
    %2007 = vmatprep.subr.mxu0 0.0
    %2008 = vmatpush1.msra.mxu0 %v331
    %2009 = vmatprep.subr.mxu0 0.0
    %2010 = vmatpush1.msra.mxu0 %v330
    %2011 = vmatprep.subr.mxu0 0.0
    %2012 = vmatpush1.msra.mxu0 %v329
    %2013 = vmatprep.subr.mxu0 0.0
    %2014 = vmatpush1.msra.mxu0 %v328
    %2015 = vmatprep.subr.mxu0 0.0
    %2016 = vmatpush2.msra.mxu0 0.0
    %2017 = vmatprep.subr.mxu0 0.0
    %2018 = vmatpush2.msra.mxu0 0.0
    %2019 = vmatprep.subr.mxu0 0.0
    %2020 = vmatpush2.msra.mxu0 0.0
    %2021 = vmatprep.subr.mxu0 0.0
    %2022 = vmatpush2.msra.mxu0 0.0
    %2023 = vmatprep.subr.mxu0 0.0
    %2024 = vmatpush2.msra.mxu0 0.0
    %2025 = vmatprep.subr.mxu0 0.0
    %2026 = vmatpush2.msra.mxu0 0.0
    %2027 = vmatprep.subr.mxu0 0.0
    %2028 = vmatpush2.msra.mxu0 0.0
    %2029 = vmatprep.subr.mxu0 0.0
    %2030 = vmatpush2.msra.mxu0 0.0
    %2031 = vmatprep.subr.mxu0 0.0
    %2032 = vmatpush2.msra.mxu0 0.0
    %2033 = vmatprep.subr.mxu0 0.0
    %2034 = vmatpush2.msra.mxu0 0.0
    %2035 = vmatprep.subr.mxu0 0.0
    %2036 = vmatpush2.msra.mxu0 0.0
    %2037 = vmatprep.subr.mxu0 0.0
    %2038 = vmatpush2.msra.mxu0 0.0
    %2039 = vmatprep.subr.mxu0 0.0
    %2040 = vmatpush2.msra.mxu0 0.0
    %2041 = vmatprep.subr.mxu0 0.0
    %2042 = vmatpush2.msra.mxu0 0.0
    %2043 = vmatprep.subr.mxu0 0.0
    %2044 = vmatpush2.msra.mxu0 0.0
    %2045 = vmatprep.subr.mxu0 0.0
    %2046 = vmatpush2.msra.mxu0 0.0
    %2047 = vmatprep.mubr.f32.mxu0 0.0
    %2048 = vmatmul.mubr.f32.gmra.mxu0 %v1981
    %v2049 = vpop.f32.mrf.mxu0
    %v2050 = vadd.f32 0.0, %v2049
    %v2051 = vpop.f32.mrf.mxu0
    %2052 = vdwg.mxu0
    %v2053 = vlaneseq
    %v2054 = vshrl.u32 %v2053, 7
    %v2055 = vsub.s32 0, %v2054
    %v2056 = vrot.slane %v1775, %v2055
    %v2057 = vmul.f32 %v1975, %v2056
    %v2058 = vlaneseq
    %v2059 = vshrl.u32 %v2058, 7
    %v2060 = vsub.s32 1, %v2059
    %v2061 = vrot.slane %v1775, %v2060
    %v2062 = vmul.f32 %v2050, %v2061
    %v2063 = vadd.f32 %v2057, %v2062
    %v2064 = vlaneseq
    %v2065 = vshrl.u32 %v2064, 7
    %v2066 = vsub.s32 2, %v2065
    %v2067 = vrot.slane %v1775, %v2066
    %v2068 = vadd.f32 %v2063, %v2067
    %v2069 = vxor.u32 %v2068, 2147483648
    %v2070 = vmul.f32 %v2069, 1.442695
    %v2071 = vpow.pop %v2070
    %v2072 = vadd.f32 %v2071, 1.0
    %v2073 = vrcp.pop %v2072
    %v2074 = vmul.f32 1.0, %v2073
    %v2075 = vmul.f32 %v2074, %v1755
    %v2076 = vtanh.pop %v2068
    %2078 = vrot.lane.b32.xlu0 %v2076, 64
    %v2079 = vpop.permute.xlu0 %2078
    %v2081 = vmul.f32 %v2074, %v2079
    %2083 = vrot.lane.b32.xlu0 %v2081, 96
    %v2084 = vpop.permute.xlu0 %2083
    %v2086 = vadd.f32 %v2075, %v2084
    %v2087 = vlaneseq
    %v2088 = vshrl.u32 %v2087, 7
    %v2089 = vsub.s32 3, %v2088
    %v2090 = vrot.slane %v1775, %v2089
    %v2091 = vmul.f32 %v2086, %v2090
    %v2092 = vlaneseq
    %v2093 = vshrl.u32 %v2092, 7
    %v2094 = vsub.s32 4, %v2093
    %v2095 = vrot.slane %v1775, %v2094
    %v2096 = vadd.f32 %v2091, %v2095
    %v2097 = vtanh.pop %v2096
    %2099 = vrot.lane.b32.xlu0 %v2097, 64
    %v2100 = vpop.permute.xlu0 %2099
    %v2102 = vmul.f32 %v2074, %v2100
    %s2103 = scalar_lea.vmem %s3, 48
    %v2104 = vld [vmem:[%s2103] sm:$0xff]
    %s2105 = scalar_lea.vmem %s6, 48
    %v2106 = vld [vmem:[%s2105] sm:$0xff]
    %2107 = vmatprep.subr.mxu0 0.0
    %2108 = vmatpush1.msra.mxu0 0.0
    %2109 = vmatprep.subr.mxu0 0.0
    %2110 = vmatpush1.msra.mxu0 0.0
    %2111 = vmatprep.subr.mxu0 0.0
    %2112 = vmatpush1.msra.mxu0 0.0
    %2113 = vmatprep.subr.mxu0 0.0
    %2114 = vmatpush1.msra.mxu0 0.0
    %2115 = vmatprep.subr.mxu0 0.0
    %2116 = vmatpush1.msra.mxu0 0.0
    %2117 = vmatprep.subr.mxu0 0.0
    %2118 = vmatpush1.msra.mxu0 0.0
    %2119 = vmatprep.subr.mxu0 0.0
    %2120 = vmatpush1.msra.mxu0 0.0
    %2121 = vmatprep.subr.mxu0 0.0
    %2122 = vmatpush1.msra.mxu0 0.0
    %2123 = vmatprep.subr.mxu0 0.0
    %2124 = vmatpush1.msra.mxu0 0.0
    %2125 = vmatprep.subr.mxu0 0.0
    %2126 = vmatpush1.msra.mxu0 0.0
    %2127 = vmatprep.subr.mxu0 0.0
    %2128 = vmatpush1.msra.mxu0 0.0
    %2129 = vmatprep.subr.mxu0 0.0
    %2130 = vmatpush1.msra.mxu0 0.0
    %2131 = vmatprep.subr.mxu0 0.0
    %2132 = vmatpush1.msra.mxu0 %v124
    %2133 = vmatprep.subr.mxu0 0.0
    %2134 = vmatpush1.msra.mxu0 %v123
    %2135 = vmatprep.subr.mxu0 0.0
    %2136 = vmatpush1.msra.mxu0 %v122
    %2137 = vmatprep.subr.mxu0 0.0
    %2138 = vmatpush1.msra.mxu0 %v121
    %2139 = vmatprep.subr.mxu0 0.0
    %2140 = vmatpush2.msra.mxu0 0.0
    %2141 = vmatprep.subr.mxu0 0.0
    %2142 = vmatpush2.msra.mxu0 0.0
    %2143 = vmatprep.subr.mxu0 0.0
    %2144 = vmatpush2.msra.mxu0 0.0
    %2145 = vmatprep.subr.mxu0 0.0
    %2146 = vmatpush2.msra.mxu0 0.0
    %2147 = vmatprep.subr.mxu0 0.0
    %2148 = vmatpush2.msra.mxu0 0.0
    %2149 = vmatprep.subr.mxu0 0.0
    %2150 = vmatpush2.msra.mxu0 0.0
    %2151 = vmatprep.subr.mxu0 0.0
    %2152 = vmatpush2.msra.mxu0 0.0
    %2153 = vmatprep.subr.mxu0 0.0
    %2154 = vmatpush2.msra.mxu0 0.0
    %2155 = vmatprep.subr.mxu0 0.0
    %2156 = vmatpush2.msra.mxu0 0.0
    %2157 = vmatprep.subr.mxu0 0.0
    %2158 = vmatpush2.msra.mxu0 0.0
    %2159 = vmatprep.subr.mxu0 0.0
    %2160 = vmatpush2.msra.mxu0 0.0
    %2161 = vmatprep.subr.mxu0 0.0
    %2162 = vmatpush2.msra.mxu0 0.0
    %2163 = vmatprep.subr.mxu0 0.0
    %2164 = vmatpush2.msra.mxu0 0.0
    %2165 = vmatprep.subr.mxu0 0.0
    %2166 = vmatpush2.msra.mxu0 0.0
    %2167 = vmatprep.subr.mxu0 0.0
    %2168 = vmatpush2.msra.mxu0 0.0
    %2169 = vmatprep.subr.mxu0 0.0
    %2170 = vmatpush2.msra.mxu0 0.0
    %2171 = vmatprep.mubr.f32.mxu0 0.0
    %2172 = vmatmul.mubr.f32.gmra.mxu0 %v1906
    %v2173 = vpop.f32.mrf.mxu0
    %v2174 = vadd.f32 0.0, %v2173
    %v2175 = vpop.f32.mrf.mxu0
    %2176 = vdwg.mxu0
    %v2177 = vlaneseq
    %v2178 = vshrl.u32 %v2177, 7
    %v2179 = vsub.s32 0, %v2178
    %v2180 = vrot.slane %v2104, %v2179
    %v2181 = vmul.f32 %v116, %v2180
    %v2182 = vlaneseq
    %v2183 = vshrl.u32 %v2182, 7
    %v2184 = vsub.s32 1, %v2183
    %v2185 = vrot.slane %v2104, %v2184
    %v2186 = vmul.f32 %v2174, %v2185
    %v2188 = vrot.slane %v2186, 4
    %v2190 = vadd.f32 %v2181, %v2188
    %v2191 = vlaneseq
    %v2192 = vshrl.u32 %v2191, 7
    %v2193 = vsub.s32 2, %v2192
    %v2194 = vrot.slane %v2104, %v2193
    %v2195 = vadd.f32 %v2190, %v2194
    %v2196 = vxor.u32 %v2195, 2147483648
    %v2197 = vmul.f32 %v2196, 1.442695
    %v2198 = vpow.pop %v2197
    %v2199 = vadd.f32 %v2198, 1.0
    %v2200 = vrcp.pop %v2199
    %v2201 = vmul.f32 1.0, %v2200
    %v2203 = vrot.slane %v1885, 6
    %v2205 = vmul.f32 %v2201, %v2203
    %v2206 = vtanh.pop %v2195
    %2208 = vrot.lane.b32.xlu0 %v2206, 64
    %v2209 = vpop.permute.xlu0 %2208
    %v2211 = vmul.f32 %v2201, %v2209
    %2213 = vrot.lane.b32.xlu0 %v2211, 96
    %v2214 = vpop.permute.xlu0 %2213
    %v2216 = vadd.f32 %v2205, %v2214
    %v2217 = vlaneseq
    %v2218 = vshrl.u32 %v2217, 7
    %v2219 = vsub.s32 3, %v2218
    %v2220 = vrot.slane %v2104, %v2219
    %v2221 = vmul.f32 %v2216, %v2220
    %v2222 = vlaneseq
    %v2223 = vshrl.u32 %v2222, 7
    %v2224 = vsub.s32 4, %v2223
    %v2225 = vrot.slane %v2104, %v2224
    %v2226 = vadd.f32 %v2221, %v2225
    %v2227 = vtanh.pop %v2226
    %2229 = vrot.lane.b32.xlu0 %v2227, 64
    %v2230 = vpop.permute.xlu0 %2229
    %v2232 = vmul.f32 %v2201, %v2230
    %v2234 = vrot.slane %v2232, 4
    %2235 = vrot.lane.b32.xlu0 %v2234, 64
    %v2236 = vpop.permute.xlu0 %2235
    %v2237 = vsel %vm125, %v2236, 0
    %2239 = vmatprep.subr.mxu0 0.0
    %2240 = vmatpush1.msra.mxu0 0.0
    %2241 = vmatprep.subr.mxu0 0.0
    %2242 = vmatpush1.msra.mxu0 0.0
    %2243 = vmatprep.subr.mxu0 0.0
    %2244 = vmatpush1.msra.mxu0 0.0
    %2245 = vmatprep.subr.mxu0 0.0
    %2246 = vmatpush1.msra.mxu0 0.0
    %2247 = vmatprep.subr.mxu0 0.0
    %2248 = vmatpush1.msra.mxu0 0.0
    %2249 = vmatprep.subr.mxu0 0.0
    %2250 = vmatpush1.msra.mxu0 0.0
    %2251 = vmatprep.subr.mxu0 0.0
    %2252 = vmatpush1.msra.mxu0 0.0
    %2253 = vmatprep.subr.mxu0 0.0
    %2254 = vmatpush1.msra.mxu0 0.0
    %2255 = vmatprep.subr.mxu0 0.0
    %2256 = vmatpush1.msra.mxu0 0.0
    %2257 = vmatprep.subr.mxu0 0.0
    %2258 = vmatpush1.msra.mxu0 0.0
    %2259 = vmatprep.subr.mxu0 0.0
    %2260 = vmatpush1.msra.mxu0 0.0
    %2261 = vmatprep.subr.mxu0 0.0
    %2262 = vmatpush1.msra.mxu0 0.0
    %2263 = vmatprep.subr.mxu0 0.0
    %2264 = vmatpush1.msra.mxu0 %v252
    %2265 = vmatprep.subr.mxu0 0.0
    %2266 = vmatpush1.msra.mxu0 %v251
    %2267 = vmatprep.subr.mxu0 0.0
    %2268 = vmatpush1.msra.mxu0 %v250
    %2269 = vmatprep.subr.mxu0 0.0
    %2270 = vmatpush1.msra.mxu0 %v249
    %2271 = vmatprep.subr.mxu0 0.0
    %2272 = vmatpush2.msra.mxu0 0.0
    %2273 = vmatprep.subr.mxu0 0.0
    %2274 = vmatpush2.msra.mxu0 0.0
    %2275 = vmatprep.subr.mxu0 0.0
    %2276 = vmatpush2.msra.mxu0 0.0
    %2277 = vmatprep.subr.mxu0 0.0
    %2278 = vmatpush2.msra.mxu0 0.0
    %2279 = vmatprep.subr.mxu0 0.0
    %2280 = vmatpush2.msra.mxu0 0.0
    %2281 = vmatprep.subr.mxu0 0.0
    %2282 = vmatpush2.msra.mxu0 0.0
    %2283 = vmatprep.subr.mxu0 0.0
    %2284 = vmatpush2.msra.mxu0 0.0
    %2285 = vmatprep.subr.mxu0 0.0
    %2286 = vmatpush2.msra.mxu0 0.0
    %2287 = vmatprep.subr.mxu0 0.0
    %2288 = vmatpush2.msra.mxu0 0.0
    %2289 = vmatprep.subr.mxu0 0.0
    %2290 = vmatpush2.msra.mxu0 0.0
    %2291 = vmatprep.subr.mxu0 0.0
    %2292 = vmatpush2.msra.mxu0 0.0
    %2293 = vmatprep.subr.mxu0 0.0
    %2294 = vmatpush2.msra.mxu0 0.0
    %2295 = vmatprep.subr.mxu0 0.0
    %2296 = vmatpush2.msra.mxu0 0.0
    %2297 = vmatprep.subr.mxu0 0.0
    %2298 = vmatpush2.msra.mxu0 0.0
    %2299 = vmatprep.subr.mxu0 0.0
    %2300 = vmatpush2.msra.mxu0 0.0
    %2301 = vmatprep.subr.mxu0 0.0
    %2302 = vmatpush2.msra.mxu0 0.0
    %2303 = vmatprep.mubr.f32.mxu0 0.0
    %2304 = vmatmul.mubr.f32.gmra.mxu0 %v2237
    %v2305 = vpop.f32.mrf.mxu0
    %v2306 = vadd.f32 0.0, %v2305
    %v2307 = vpop.f32.mrf.mxu0
    %2308 = vdwg.mxu0
    %2310 = vrot.lane.b32.xlu0 %v2102, 64
    %v2311 = vpop.permute.xlu0 %2310
    %v2312 = vsel %vm125, %v2311, 0
    %2314 = vmatprep.subr.mxu0 0.0
    %2315 = vmatpush1.msra.mxu0 0.0
    %2316 = vmatprep.subr.mxu0 0.0
    %2317 = vmatpush1.msra.mxu0 0.0
    %2318 = vmatprep.subr.mxu0 0.0
    %2319 = vmatpush1.msra.mxu0 0.0
    %2320 = vmatprep.subr.mxu0 0.0
    %2321 = vmatpush1.msra.mxu0 0.0
    %2322 = vmatprep.subr.mxu0 0.0
    %2323 = vmatpush1.msra.mxu0 0.0
    %2324 = vmatprep.subr.mxu0 0.0
    %2325 = vmatpush1.msra.mxu0 0.0
    %2326 = vmatprep.subr.mxu0 0.0
    %2327 = vmatpush1.msra.mxu0 0.0
    %2328 = vmatprep.subr.mxu0 0.0
    %2329 = vmatpush1.msra.mxu0 0.0
    %2330 = vmatprep.subr.mxu0 0.0
    %2331 = vmatpush1.msra.mxu0 0.0
    %2332 = vmatprep.subr.mxu0 0.0
    %2333 = vmatpush1.msra.mxu0 0.0
    %2334 = vmatprep.subr.mxu0 0.0
    %2335 = vmatpush1.msra.mxu0 0.0
    %2336 = vmatprep.subr.mxu0 0.0
    %2337 = vmatpush1.msra.mxu0 0.0
    %2338 = vmatprep.subr.mxu0 0.0
    %2339 = vmatpush1.msra.mxu0 %v331
    %2340 = vmatprep.subr.mxu0 0.0
    %2341 = vmatpush1.msra.mxu0 %v330
    %2342 = vmatprep.subr.mxu0 0.0
    %2343 = vmatpush1.msra.mxu0 %v329
    %2344 = vmatprep.subr.mxu0 0.0
    %2345 = vmatpush1.msra.mxu0 %v328
    %2346 = vmatprep.subr.mxu0 0.0
    %2347 = vmatpush2.msra.mxu0 0.0
    %2348 = vmatprep.subr.mxu0 0.0
    %2349 = vmatpush2.msra.mxu0 0.0
    %2350 = vmatprep.subr.mxu0 0.0
    %2351 = vmatpush2.msra.mxu0 0.0
    %2352 = vmatprep.subr.mxu0 0.0
    %2353 = vmatpush2.msra.mxu0 0.0
    %2354 = vmatprep.subr.mxu0 0.0
    %2355 = vmatpush2.msra.mxu0 0.0
    %2356 = vmatprep.subr.mxu0 0.0
    %2357 = vmatpush2.msra.mxu0 0.0
    %2358 = vmatprep.subr.mxu0 0.0
    %2359 = vmatpush2.msra.mxu0 0.0
    %2360 = vmatprep.subr.mxu0 0.0
    %2361 = vmatpush2.msra.mxu0 0.0
    %2362 = vmatprep.subr.mxu0 0.0
    %2363 = vmatpush2.msra.mxu0 0.0
    %2364 = vmatprep.subr.mxu0 0.0
    %2365 = vmatpush2.msra.mxu0 0.0
    %2366 = vmatprep.subr.mxu0 0.0
    %2367 = vmatpush2.msra.mxu0 0.0
    %2368 = vmatprep.subr.mxu0 0.0
    %2369 = vmatpush2.msra.mxu0 0.0
    %2370 = vmatprep.subr.mxu0 0.0
    %2371 = vmatpush2.msra.mxu0 0.0
    %2372 = vmatprep.subr.mxu0 0.0
    %2373 = vmatpush2.msra.mxu0 0.0
    %2374 = vmatprep.subr.mxu0 0.0
    %2375 = vmatpush2.msra.mxu0 0.0
    %2376 = vmatprep.subr.mxu0 0.0
    %2377 = vmatpush2.msra.mxu0 0.0
    %2378 = vmatprep.mubr.f32.mxu0 0.0
    %2379 = vmatmul.mubr.f32.gmra.mxu0 %v2312
    %v2380 = vpop.f32.mrf.mxu0
    %v2381 = vadd.f32 0.0, %v2380
    %v2382 = vpop.f32.mrf.mxu0
    %2383 = vdwg.mxu0
    %v2384 = vlaneseq
    %v2385 = vshrl.u32 %v2384, 7
    %v2386 = vsub.s32 0, %v2385
    %v2387 = vrot.slane %v2106, %v2386
    %v2388 = vmul.f32 %v2306, %v2387
    %v2389 = vlaneseq
    %v2390 = vshrl.u32 %v2389, 7
    %v2391 = vsub.s32 1, %v2390
    %v2392 = vrot.slane %v2106, %v2391
    %v2393 = vmul.f32 %v2381, %v2392
    %v2394 = vadd.f32 %v2388, %v2393
    %v2395 = vlaneseq
    %v2396 = vshrl.u32 %v2395, 7
    %v2397 = vsub.s32 2, %v2396
    %v2398 = vrot.slane %v2106, %v2397
    %v2399 = vadd.f32 %v2394, %v2398
    %v2400 = vxor.u32 %v2399, 2147483648
    %v2401 = vmul.f32 %v2400, 1.442695
    %v2402 = vpow.pop %v2401
    %v2403 = vadd.f32 %v2402, 1.0
    %v2404 = vrcp.pop %v2403
    %v2405 = vmul.f32 1.0, %v2404
    %v2406 = vmul.f32 %v2405, %v2086
    %v2407 = vtanh.pop %v2399
    %2409 = vrot.lane.b32.xlu0 %v2407, 64
    %v2410 = vpop.permute.xlu0 %2409
    %v2412 = vmul.f32 %v2405, %v2410
    %2414 = vrot.lane.b32.xlu0 %v2412, 96
    %v2415 = vpop.permute.xlu0 %2414
    %v2417 = vadd.f32 %v2406, %v2415
    %v2418 = vlaneseq
    %v2419 = vshrl.u32 %v2418, 7
    %v2420 = vsub.s32 3, %v2419
    %v2421 = vrot.slane %v2106, %v2420
    %v2422 = vmul.f32 %v2417, %v2421
    %v2423 = vlaneseq
    %v2424 = vshrl.u32 %v2423, 7
    %v2425 = vsub.s32 4, %v2424
    %v2426 = vrot.slane %v2106, %v2425
    %v2427 = vadd.f32 %v2422, %v2426
    %v2428 = vtanh.pop %v2427
    %2430 = vrot.lane.b32.xlu0 %v2428, 64
    %v2431 = vpop.permute.xlu0 %2430
    %v2433 = vmul.f32 %v2405, %v2431
    %s2434 = scalar_lea.vmem %s3, 56
    %v2435 = vld [vmem:[%s2434] sm:$0xff]
    %s2436 = scalar_lea.vmem %s6, 56
    %v2437 = vld [vmem:[%s2436] sm:$0xff]
    %2438 = vmatprep.subr.mxu0 0.0
    %2439 = vmatpush1.msra.mxu0 0.0
    %2440 = vmatprep.subr.mxu0 0.0
    %2441 = vmatpush1.msra.mxu0 0.0
    %2442 = vmatprep.subr.mxu0 0.0
    %2443 = vmatpush1.msra.mxu0 0.0
    %2444 = vmatprep.subr.mxu0 0.0
    %2445 = vmatpush1.msra.mxu0 0.0
    %2446 = vmatprep.subr.mxu0 0.0
    %2447 = vmatpush1.msra.mxu0 0.0
    %2448 = vmatprep.subr.mxu0 0.0
    %2449 = vmatpush1.msra.mxu0 0.0
    %2450 = vmatprep.subr.mxu0 0.0
    %2451 = vmatpush1.msra.mxu0 0.0
    %2452 = vmatprep.subr.mxu0 0.0
    %2453 = vmatpush1.msra.mxu0 0.0
    %2454 = vmatprep.subr.mxu0 0.0
    %2455 = vmatpush1.msra.mxu0 0.0
    %2456 = vmatprep.subr.mxu0 0.0
    %2457 = vmatpush1.msra.mxu0 0.0
    %2458 = vmatprep.subr.mxu0 0.0
    %2459 = vmatpush1.msra.mxu0 0.0
    %2460 = vmatprep.subr.mxu0 0.0
    %2461 = vmatpush1.msra.mxu0 0.0
    %2462 = vmatprep.subr.mxu0 0.0
    %2463 = vmatpush1.msra.mxu0 %v124
    %2464 = vmatprep.subr.mxu0 0.0
    %2465 = vmatpush1.msra.mxu0 %v123
    %2466 = vmatprep.subr.mxu0 0.0
    %2467 = vmatpush1.msra.mxu0 %v122
    %2468 = vmatprep.subr.mxu0 0.0
    %2469 = vmatpush1.msra.mxu0 %v121
    %2470 = vmatprep.subr.mxu0 0.0
    %2471 = vmatpush2.msra.mxu0 0.0
    %2472 = vmatprep.subr.mxu0 0.0
    %2473 = vmatpush2.msra.mxu0 0.0
    %2474 = vmatprep.subr.mxu0 0.0
    %2475 = vmatpush2.msra.mxu0 0.0
    %2476 = vmatprep.subr.mxu0 0.0
    %2477 = vmatpush2.msra.mxu0 0.0
    %2478 = vmatprep.subr.mxu0 0.0
    %2479 = vmatpush2.msra.mxu0 0.0
    %2480 = vmatprep.subr.mxu0 0.0
    %2481 = vmatpush2.msra.mxu0 0.0
    %2482 = vmatprep.subr.mxu0 0.0
    %2483 = vmatpush2.msra.mxu0 0.0
    %2484 = vmatprep.subr.mxu0 0.0
    %2485 = vmatpush2.msra.mxu0 0.0
    %2486 = vmatprep.subr.mxu0 0.0
    %2487 = vmatpush2.msra.mxu0 0.0
    %2488 = vmatprep.subr.mxu0 0.0
    %2489 = vmatpush2.msra.mxu0 0.0
    %2490 = vmatprep.subr.mxu0 0.0
    %2491 = vmatpush2.msra.mxu0 0.0
    %2492 = vmatprep.subr.mxu0 0.0
    %2493 = vmatpush2.msra.mxu0 0.0
    %2494 = vmatprep.subr.mxu0 0.0
    %2495 = vmatpush2.msra.mxu0 0.0
    %2496 = vmatprep.subr.mxu0 0.0
    %2497 = vmatpush2.msra.mxu0 0.0
    %2498 = vmatprep.subr.mxu0 0.0
    %2499 = vmatpush2.msra.mxu0 0.0
    %2500 = vmatprep.subr.mxu0 0.0
    %2501 = vmatpush2.msra.mxu0 0.0
    %2502 = vmatprep.mubr.f32.mxu0 0.0
    %2503 = vmatmul.mubr.f32.gmra.mxu0 %v2237
    %v2504 = vpop.f32.mrf.mxu0
    %v2505 = vadd.f32 0.0, %v2504
    %v2506 = vpop.f32.mrf.mxu0
    %2507 = vdwg.mxu0
    %v2508 = vlaneseq
    %v2509 = vshrl.u32 %v2508, 7
    %v2510 = vsub.s32 0, %v2509
    %v2511 = vrot.slane %v2435, %v2510
    %v2512 = vmul.f32 %v116, %v2511
    %v2513 = vlaneseq
    %v2514 = vshrl.u32 %v2513, 7
    %v2515 = vsub.s32 1, %v2514
    %v2516 = vrot.slane %v2435, %v2515
    %v2517 = vmul.f32 %v2505, %v2516
    %v2519 = vrot.slane %v2517, 2
    %v2521 = vadd.f32 %v2512, %v2519
    %v2522 = vlaneseq
    %v2523 = vshrl.u32 %v2522, 7
    %v2524 = vsub.s32 2, %v2523
    %v2525 = vrot.slane %v2435, %v2524
    %v2526 = vadd.f32 %v2521, %v2525
    %v2527 = vxor.u32 %v2526, 2147483648
    %v2528 = vmul.f32 %v2527, 1.442695
    %v2529 = vpow.pop %v2528
    %v2530 = vadd.f32 %v2529, 1.0
    %v2531 = vrcp.pop %v2530
    %v2532 = vmul.f32 1.0, %v2531
    %v2534 = vrot.slane %v2216, 6
    %v2536 = vmul.f32 %v2532, %v2534
    %v2537 = vtanh.pop %v2526
    %2539 = vrot.lane.b32.xlu0 %v2537, 64
    %v2540 = vpop.permute.xlu0 %2539
    %v2542 = vmul.f32 %v2532, %v2540
    %2544 = vrot.lane.b32.xlu0 %v2542, 96
    %v2545 = vpop.permute.xlu0 %2544
    %v2547 = vadd.f32 %v2536, %v2545
    %v2548 = vlaneseq
    %v2549 = vshrl.u32 %v2548, 7
    %v2550 = vsub.s32 3, %v2549
    %v2551 = vrot.slane %v2435, %v2550
    %v2552 = vmul.f32 %v2547, %v2551
    %v2553 = vlaneseq
    %v2554 = vshrl.u32 %v2553, 7
    %v2555 = vsub.s32 4, %v2554
    %v2556 = vrot.slane %v2435, %v2555
    %v2557 = vadd.f32 %v2552, %v2556
    %v2558 = vtanh.pop %v2557
    %2560 = vrot.lane.b32.xlu0 %v2558, 64
    %v2561 = vpop.permute.xlu0 %2560
    %v2563 = vmul.f32 %v2532, %v2561
    %v2565 = vrot.slane %v2563, 6
    %2566 = vrot.lane.b32.xlu0 %v2565, 64
    %v2567 = vpop.permute.xlu0 %2566
    %v2568 = vsel %vm125, %v2567, 0
    %2570 = vmatprep.subr.mxu0 0.0
    %2571 = vmatpush1.msra.mxu0 0.0
    %2572 = vmatprep.subr.mxu0 0.0
    %2573 = vmatpush1.msra.mxu0 0.0
    %2574 = vmatprep.subr.mxu0 0.0
    %2575 = vmatpush1.msra.mxu0 0.0
    %2576 = vmatprep.subr.mxu0 0.0
    %2577 = vmatpush1.msra.mxu0 0.0
    %2578 = vmatprep.subr.mxu0 0.0
    %2579 = vmatpush1.msra.mxu0 0.0
    %2580 = vmatprep.subr.mxu0 0.0
    %2581 = vmatpush1.msra.mxu0 0.0
    %2582 = vmatprep.subr.mxu0 0.0
    %2583 = vmatpush1.msra.mxu0 0.0
    %2584 = vmatprep.subr.mxu0 0.0
    %2585 = vmatpush1.msra.mxu0 0.0
    %2586 = vmatprep.subr.mxu0 0.0
    %2587 = vmatpush1.msra.mxu0 0.0
    %2588 = vmatprep.subr.mxu0 0.0
    %2589 = vmatpush1.msra.mxu0 0.0
    %2590 = vmatprep.subr.mxu0 0.0
    %2591 = vmatpush1.msra.mxu0 0.0
    %2592 = vmatprep.subr.mxu0 0.0
    %2593 = vmatpush1.msra.mxu0 0.0
    %2594 = vmatprep.subr.mxu0 0.0
    %2595 = vmatpush1.msra.mxu0 %v252
    %2596 = vmatprep.subr.mxu0 0.0
    %2597 = vmatpush1.msra.mxu0 %v251
    %2598 = vmatprep.subr.mxu0 0.0
    %2599 = vmatpush1.msra.mxu0 %v250
    %2600 = vmatprep.subr.mxu0 0.0
    %2601 = vmatpush1.msra.mxu0 %v249
    %2602 = vmatprep.subr.mxu0 0.0
    %2603 = vmatpush2.msra.mxu0 0.0
    %2604 = vmatprep.subr.mxu0 0.0
    %2605 = vmatpush2.msra.mxu0 0.0
    %2606 = vmatprep.subr.mxu0 0.0
    %2607 = vmatpush2.msra.mxu0 0.0
    %2608 = vmatprep.subr.mxu0 0.0
    %2609 = vmatpush2.msra.mxu0 0.0
    %2610 = vmatprep.subr.mxu0 0.0
    %2611 = vmatpush2.msra.mxu0 0.0
    %2612 = vmatprep.subr.mxu0 0.0
    %2613 = vmatpush2.msra.mxu0 0.0
    %2614 = vmatprep.subr.mxu0 0.0
    %2615 = vmatpush2.msra.mxu0 0.0
    %2616 = vmatprep.subr.mxu0 0.0
    %2617 = vmatpush2.msra.mxu0 0.0
    %2618 = vmatprep.subr.mxu0 0.0
    %2619 = vmatpush2.msra.mxu0 0.0
    %2620 = vmatprep.subr.mxu0 0.0
    %2621 = vmatpush2.msra.mxu0 0.0
    %2622 = vmatprep.subr.mxu0 0.0
    %2623 = vmatpush2.msra.mxu0 0.0
    %2624 = vmatprep.subr.mxu0 0.0
    %2625 = vmatpush2.msra.mxu0 0.0
    %2626 = vmatprep.subr.mxu0 0.0
    %2627 = vmatpush2.msra.mxu0 0.0
    %2628 = vmatprep.subr.mxu0 0.0
    %2629 = vmatpush2.msra.mxu0 0.0
    %2630 = vmatprep.subr.mxu0 0.0
    %2631 = vmatpush2.msra.mxu0 0.0
    %2632 = vmatprep.subr.mxu0 0.0
    %2633 = vmatpush2.msra.mxu0 0.0
    %2634 = vmatprep.mubr.f32.mxu0 0.0
    %2635 = vmatmul.mubr.f32.gmra.mxu0 %v2568
    %v2636 = vpop.f32.mrf.mxu0
    %v2637 = vadd.f32 0.0, %v2636
    %v2638 = vpop.f32.mrf.mxu0
    %2639 = vdwg.mxu0
    %2641 = vrot.lane.b32.xlu0 %v2433, 64
    %v2642 = vpop.permute.xlu0 %2641
    %v2643 = vsel %vm125, %v2642, 0
    %2645 = vmatprep.subr.mxu0 0.0
    %2646 = vmatpush1.msra.mxu0 0.0
    %2647 = vmatprep.subr.mxu0 0.0
    %2648 = vmatpush1.msra.mxu0 0.0
    %2649 = vmatprep.subr.mxu0 0.0
    %2650 = vmatpush1.msra.mxu0 0.0
    %2651 = vmatprep.subr.mxu0 0.0
    %2652 = vmatpush1.msra.mxu0 0.0
    %2653 = vmatprep.subr.mxu0 0.0
    %2654 = vmatpush1.msra.mxu0 0.0
    %2655 = vmatprep.subr.mxu0 0.0
    %2656 = vmatpush1.msra.mxu0 0.0
    %2657 = vmatprep.subr.mxu0 0.0
    %2658 = vmatpush1.msra.mxu0 0.0
    %2659 = vmatprep.subr.mxu0 0.0
    %2660 = vmatpush1.msra.mxu0 0.0
    %2661 = vmatprep.subr.mxu0 0.0
    %2662 = vmatpush1.msra.mxu0 0.0
    %2663 = vmatprep.subr.mxu0 0.0
    %2664 = vmatpush1.msra.mxu0 0.0
    %2665 = vmatprep.subr.mxu0 0.0
    %2666 = vmatpush1.msra.mxu0 0.0
    %2667 = vmatprep.subr.mxu0 0.0
    %2668 = vmatpush1.msra.mxu0 0.0
    %2669 = vmatprep.subr.mxu0 0.0
    %2670 = vmatpush1.msra.mxu0 %v331
    %2671 = vmatprep.subr.mxu0 0.0
    %2672 = vmatpush1.msra.mxu0 %v330
    %2673 = vmatprep.subr.mxu0 0.0
    %2674 = vmatpush1.msra.mxu0 %v329
    %2675 = vmatprep.subr.mxu0 0.0
    %2676 = vmatpush1.msra.mxu0 %v328
    %2677 = vmatprep.subr.mxu0 0.0
    %2678 = vmatpush2.msra.mxu0 0.0
    %2679 = vmatprep.subr.mxu0 0.0
    %2680 = vmatpush2.msra.mxu0 0.0
    %2681 = vmatprep.subr.mxu0 0.0
    %2682 = vmatpush2.msra.mxu0 0.0
    %2683 = vmatprep.subr.mxu0 0.0
    %2684 = vmatpush2.msra.mxu0 0.0
    %2685 = vmatprep.subr.mxu0 0.0
    %2686 = vmatpush2.msra.mxu0 0.0
    %2687 = vmatprep.subr.mxu0 0.0
    %2688 = vmatpush2.msra.mxu0 0.0
    %2689 = vmatprep.subr.mxu0 0.0
    %2690 = vmatpush2.msra.mxu0 0.0
    %2691 = vmatprep.subr.mxu0 0.0
    %2692 = vmatpush2.msra.mxu0 0.0
    %2693 = vmatprep.subr.mxu0 0.0
    %2694 = vmatpush2.msra.mxu0 0.0
    %2695 = vmatprep.subr.mxu0 0.0
    %2696 = vmatpush2.msra.mxu0 0.0
    %2697 = vmatprep.subr.mxu0 0.0
    %2698 = vmatpush2.msra.mxu0 0.0
    %2699 = vmatprep.subr.mxu0 0.0
    %2700 = vmatpush2.msra.mxu0 0.0
    %2701 = vmatprep.subr.mxu0 0.0
    %2702 = vmatpush2.msra.mxu0 0.0
    %2703 = vmatprep.subr.mxu0 0.0
    %2704 = vmatpush2.msra.mxu0 0.0
    %2705 = vmatprep.subr.mxu0 0.0
    %2706 = vmatpush2.msra.mxu0 0.0
    %2707 = vmatprep.subr.mxu0 0.0
    %2708 = vmatpush2.msra.mxu0 0.0
    %2709 = vmatprep.mubr.f32.mxu0 0.0
    %2710 = vmatmul.mubr.f32.gmra.mxu0 %v2643
    %v2711 = vpop.f32.mrf.mxu0
    %v2712 = vadd.f32 0.0, %v2711
    %v2713 = vpop.f32.mrf.mxu0
    %2714 = vdwg.mxu0
    %v2715 = vlaneseq
    %v2716 = vshrl.u32 %v2715, 7
    %v2717 = vsub.s32 0, %v2716
    %v2718 = vrot.slane %v2437, %v2717
    %v2719 = vmul.f32 %v2637, %v2718
    %v2720 = vlaneseq
    %v2721 = vshrl.u32 %v2720, 7
    %v2722 = vsub.s32 1, %v2721
    %v2723 = vrot.slane %v2437, %v2722
    %v2724 = vmul.f32 %v2712, %v2723
    %v2725 = vadd.f32 %v2719, %v2724
    %v2726 = vlaneseq
    %v2727 = vshrl.u32 %v2726, 7
    %v2728 = vsub.s32 2, %v2727
    %v2729 = vrot.slane %v2437, %v2728
    %v2730 = vadd.f32 %v2725, %v2729
    %v2731 = vxor.u32 %v2730, 2147483648
    %v2732 = vmul.f32 %v2731, 1.442695
    %v2733 = vpow.pop %v2732
    %v2734 = vadd.f32 %v2733, 1.0
    %v2735 = vrcp.pop %v2734
    %v2736 = vmul.f32 1.0, %v2735
    %v2737 = vmul.f32 %v2736, %v2417
    %v2738 = vtanh.pop %v2730
    %2740 = vrot.lane.b32.xlu0 %v2738, 64
    %v2741 = vpop.permute.xlu0 %2740
    %v2743 = vmul.f32 %v2736, %v2741
    %2745 = vrot.lane.b32.xlu0 %v2743, 96
    %v2746 = vpop.permute.xlu0 %2745
    %v2748 = vadd.f32 %v2737, %v2746
    %v2749 = vlaneseq
    %v2750 = vshrl.u32 %v2749, 7
    %v2751 = vsub.s32 3, %v2750
    %v2752 = vrot.slane %v2437, %v2751
    %v2753 = vmul.f32 %v2748, %v2752
    %v2754 = vlaneseq
    %v2755 = vshrl.u32 %v2754, 7
    %v2756 = vsub.s32 4, %v2755
    %v2757 = vrot.slane %v2437, %v2756
    %v2758 = vadd.f32 %v2753, %v2757
    %v2759 = vtanh.pop %v2758
    %2761 = vrot.lane.b32.xlu0 %v2759, 64
    %v2762 = vpop.permute.xlu0 %2761
    %v2764 = vmul.f32 %v2736, %v2762
    %v2765 = vld [vmem:[%s7] sm:$0xff]
    %v2766 = vld [vmem:[%s7 + $0x8] sm:$0xff]
    %v2767 = vld [vmem:[%s7 + $0x10] sm:$0xff]
    %v2768 = vld [vmem:[%s7 + $0x18] sm:$0xff]
    %v2769 = vld [vmem:[%s8] sm:$0x1]
    %v2771 = vlaneseq
    %v2772 = vshrl.u32 %v2771, 7
    %v2773 = vsub.s32 0, %v2772
    %v2774 = vrot.slane %v2769, %v2773
    %2777 = vrot.lane.b32.xlu0 %v2764, 64
    %v2778 = vpop.permute.xlu0 %2777
    %v2779 = vsel %vm125, %v2778, 0
    %2781 = vmatprep.subr.mxu0 0.0
    %2782 = vmatpush1.msra.mxu0 0.0
    %2783 = vmatprep.subr.mxu0 0.0
    %2784 = vmatpush1.msra.mxu0 0.0
    %2785 = vmatprep.subr.mxu0 0.0
    %2786 = vmatpush1.msra.mxu0 0.0
    %2787 = vmatprep.subr.mxu0 0.0
    %2788 = vmatpush1.msra.mxu0 0.0
    %2789 = vmatprep.subr.mxu0 0.0
    %2790 = vmatpush1.msra.mxu0 0.0
    %2791 = vmatprep.subr.mxu0 0.0
    %2792 = vmatpush1.msra.mxu0 0.0
    %2793 = vmatprep.subr.mxu0 0.0
    %2794 = vmatpush1.msra.mxu0 0.0
    %2795 = vmatprep.subr.mxu0 0.0
    %2796 = vmatpush1.msra.mxu0 0.0
    %2797 = vmatprep.subr.mxu0 0.0
    %2798 = vmatpush1.msra.mxu0 0.0
    %2799 = vmatprep.subr.mxu0 0.0
    %2800 = vmatpush1.msra.mxu0 0.0
    %2801 = vmatprep.subr.mxu0 0.0
    %2802 = vmatpush1.msra.mxu0 0.0
    %2803 = vmatprep.subr.mxu0 0.0
    %2804 = vmatpush1.msra.mxu0 0.0
    %2805 = vmatprep.subr.mxu0 0.0
    %2806 = vmatpush1.msra.mxu0 %v2768
    %2807 = vmatprep.subr.mxu0 0.0
    %2808 = vmatpush1.msra.mxu0 %v2767
    %2809 = vmatprep.subr.mxu0 0.0
    %2810 = vmatpush1.msra.mxu0 %v2766
    %2811 = vmatprep.subr.mxu0 0.0
    %2812 = vmatpush1.msra.mxu0 %v2765
    %2813 = vmatprep.subr.mxu0 0.0
    %2814 = vmatpush2.msra.mxu0 0.0
    %2815 = vmatprep.subr.mxu0 0.0
    %2816 = vmatpush2.msra.mxu0 0.0
    %2817 = vmatprep.subr.mxu0 0.0
    %2818 = vmatpush2.msra.mxu0 0.0
    %2819 = vmatprep.subr.mxu0 0.0
    %2820 = vmatpush2.msra.mxu0 0.0
    %2821 = vmatprep.subr.mxu0 0.0
    %2822 = vmatpush2.msra.mxu0 0.0
    %2823 = vmatprep.subr.mxu0 0.0
    %2824 = vmatpush2.msra.mxu0 0.0
    %2825 = vmatprep.subr.mxu0 0.0
    %2826 = vmatpush2.msra.mxu0 0.0
    %2827 = vmatprep.subr.mxu0 0.0
    %2828 = vmatpush2.msra.mxu0 0.0
    %2829 = vmatprep.subr.mxu0 0.0
    %2830 = vmatpush2.msra.mxu0 0.0
    %2831 = vmatprep.subr.mxu0 0.0
    %2832 = vmatpush2.msra.mxu0 0.0
    %2833 = vmatprep.subr.mxu0 0.0
    %2834 = vmatpush2.msra.mxu0 0.0
    %2835 = vmatprep.subr.mxu0 0.0
    %2836 = vmatpush2.msra.mxu0 0.0
    %2837 = vmatprep.subr.mxu0 0.0
    %2838 = vmatpush2.msra.mxu0 0.0
    %2839 = vmatprep.subr.mxu0 0.0
    %2840 = vmatpush2.msra.mxu0 0.0
    %2841 = vmatprep.subr.mxu0 0.0
    %2842 = vmatpush2.msra.mxu0 0.0
    %2843 = vmatprep.subr.mxu0 0.0
    %2844 = vmatpush2.msra.mxu0 0.0
    %2845 = vmatprep.mubr.f32.mxu0 0.0
    %2846 = vmatmul.mubr.f32.gmra.mxu0 %v2779
    %v2847 = vpop.f32.mrf.mxu0
    %v2848 = vadd.f32 %v2774, %v2847
    %v2849 = vpop.f32.mrf.mxu0
    %2850 = vdwg.mxu0
    %vm2851 = vcmask 58368
    %2852 = vst.msk [vmem:[#allocation2] sm:$0x3] %vm2851, %v2848
    // Predicated region
    $region38: #{bnlstm_forward.1} parent=1 // pred_check
      _
    $region39: #{bnlstm_forward.1} parent=1 // pred_check_branch
      %2854 = sbr.rel (0) target = $region41
    $region40: #{bnlstm_forward.1} parent=1 // pred_region
      %s2856 = ssub.s32 32, 32
      %2857 = vsyncadd [#allocation3], %s2856
      %s2859 = sshll.u32 [#allocation2], 4
      %s2860 = int_to_ptr.vmem [resolvable:$true] %s2859
      %2862 = dma.vmem_to_hbm [thread:$0]  %s2860, 32, %s9, [#allocation3]
    $region41: #{bnlstm_forward.1} parent=1 // pred_fallthru
      _
    // Predicated region
    $region42: #{bnlstm_forward.1} parent=1 // pred_check
      _
    $region43: #{bnlstm_forward.1} parent=1 // pred_check_branch
      %2864 = sbr.rel (0) target = $region45
    $region44: #{bnlstm_forward.1} parent=1 // pred_region
      %2865 = dma.done [#allocation3], 32
    $region45: #{bnlstm_forward.1} parent=1 // pred_fallthru
      _
    %2866 = vsyncpa [#allocation3], 1

</llo_original>
